<compile_context>
chip_gen: v6e
topology: v6e:2x2x1
jax: 0.10.0
libtpu: 0.0.40
codegen_flags: <defaults>
</compile_context>

<pallas_src>
import jax
import jax.numpy as jnp
from jax import lax
from jax.experimental import pallas as pl
from jax.experimental.pallas import tpu as pltpu

H = W = 28
HW = H * W                 # 784
C_OUT = 16
NUM_CLASSES = 10
K_FC = C_OUT * HW          # 12544 = 98 * 128 (lane-aligned)
BN_EPS = 1e-5


def _largest_divisor_leq(n, cap):
    cap = max(1, min(n, cap))
    for d in range(cap, 0, -1):
        if n % d == 0:
            return d
    return 1


def _conv_batch_tile(batch):
    # <= 64 images per grid step (VMEM-safe on v7x's 64 MiB), but keep at
    # least 2 grid steps when possible so both TensorCores get work.
    tb = _largest_divisor_leq(batch, 64)
    if batch > 1 and batch // tb < 2:
        tb = _largest_divisor_leq(batch, batch // 2)
    return tb


# ----------------------------------------------------------------------------
# Kernel 1: fused conv-as-matmul (BN scale pre-folded) + shift + ReLU.
#   Per grid step: (TB, 16, 9) @ (TB, 9, 784) -> (TB, 16, 784), pixels on
#   lanes, channel-major (== NCHW flatten order). Output stored in bf16.
# ----------------------------------------------------------------------------
def conv_bn_relu_kernel(p_ref, w_ref, shift_ref, o_ref):
    # p_ref: (TB, 9, HW) f32   w_ref: (C_OUT, 9) f32
    # shift_ref: (C_OUT, 1) f32   o_ref: (TB, C_OUT, HW) bf16
    tb = p_ref.shape[0]
    w_b = jnp.broadcast_to(w_ref[...][None], (tb, C_OUT, 9))
    y = lax.dot_general(
        w_b, p_ref[...],
        dimension_numbers=(((2,), (1,)), ((0,), (0,))),   # batched (16,9)@(9,784)
        preferred_element_type=jnp.float32)               # (TB, C_OUT, HW)
    o_ref[...] = jnp.maximum(y + shift_ref[...][None], 0.0).astype(o_ref.dtype)


def conv_bn_relu(patches, w_scaled, shift):
    batch = patches.shape[0]
    tb = _conv_batch_tile(batch)
    return pl.pallas_call(
        conv_bn_relu_kernel,
        out_shape=jax.ShapeDtypeStruct((batch, C_OUT, HW), jnp.bfloat16),
        grid_spec=pltpu.PrefetchScalarGridSpec(
            num_scalar_prefetch=0,
            grid=(batch // tb,),
            in_specs=[
                pl.BlockSpec((tb, 9, HW), lambda i: (i, 0, 0)),
                pl.BlockSpec((C_OUT, 9), lambda i: (0, 0)),     # resident
                pl.BlockSpec((C_OUT, 1), lambda i: (0, 0)),     # resident
            ],
            out_specs=pl.BlockSpec((tb, C_OUT, HW), lambda i: (i, 0, 0)),
        ),
        compiler_params=pltpu.CompilerParams(
            dimension_semantics=("parallel",)),
    )(patches, w_scaled, shift)


# ----------------------------------------------------------------------------
# Kernel 2: fully-connected layer, single K step, bf16 x bf16 -> f32.
#   x: (B, K) bf16     w: (N, K) bf16 (native PyTorch layout, K on lanes)
#   b: (N, 1) f32  ->  o^T: (N, B) f32   (tiny transpose done in the wrapper)
# ----------------------------------------------------------------------------
def fc_kernel(x_ref, w_ref, b_ref, o_ref):
    # out^T = w @ x^T: contract the lane (K) axes of both operands so the big
    # weight tile never gets transposed; the small x tile is the one Mosaic
    # relayouts if needed.
    y = lax.dot_general(
        w_ref[...], x_ref[...],
        dimension_numbers=(((1,), (1,)), ((), ())),
        preferred_element_type=jnp.float32)               # (N, TBF) f32
    o_ref[...] = y + b_ref[...]


def fc(x, w, b):
    batch, k = x.shape
    n = w.shape[0]
    # Whole K in one step (bf16 weight ~245 KB << VMEM). Batch is tiled on the
    # transposed-output lane axis only when 128-aligned tiles are possible.
    tbf = 128 if (batch % 128 == 0 and batch >= 256) else batch
    return pl.pallas_call(
        fc_kernel,
        out_shape=jax.ShapeDtypeStruct((n, batch), jnp.float32),
        grid_spec=pltpu.PrefetchScalarGridSpec(
            num_scalar_prefetch=0,
            grid=(batch // tbf,),
            in_specs=[
                pl.BlockSpec((tbf, k), lambda i: (i, 0)),
                pl.BlockSpec((n, k), lambda i: (0, 0)),    # resident weight
                pl.BlockSpec((n, 1), lambda i: (0, 0)),
            ],
            out_specs=pl.BlockSpec((n, tbf), lambda i: (0, i)),
        ),
        compiler_params=pltpu.CompilerParams(
            dimension_semantics=("parallel",)),
    )(x, w, b)


# ----------------------------------------------------------------------------
# Glue: parameter setup, im2col, BN folding
# ----------------------------------------------------------------------------
def init_params(key):
    ks = jax.random.split(key, 7)
    conv_w = jax.random.normal(ks[0], (C_OUT, 1, 3, 3), jnp.float32) * 0.1
    conv_b = jax.random.normal(ks[1], (C_OUT,), jnp.float32) * 0.1
    bn_gamma = 1.0 + 0.1 * jax.random.normal(ks[2], (C_OUT,), jnp.float32)
    bn_beta = 0.1 * jax.random.normal(ks[3], (C_OUT,), jnp.float32)
    bn_mean = 0.1 * jax.random.normal(ks[4], (C_OUT,), jnp.float32)
    bn_var = jnp.abs(jax.random.normal(ks[5], (C_OUT,), jnp.float32)) + 0.5
    # Native PyTorch layout (out_features, in_features); stored bf16 to halve
    # the dominant HBM weight stream. Kernel accumulates in f32.
    fc_w = (jax.random.normal(ks[6], (NUM_CLASSES, K_FC), jnp.float32) * 0.01
            ).astype(jnp.bfloat16)
    fc_b = jnp.linspace(-0.1, 0.1, NUM_CLASSES, dtype=jnp.float32)
    return dict(conv_w=conv_w, conv_b=conv_b, bn_gamma=bn_gamma,
                bn_beta=bn_beta, bn_mean=bn_mean, bn_var=bn_var,
                fc_w=fc_w, fc_b=fc_b)


def im2col_3x3_pad1(x):
    # x: (B, 1, H, W) NCHW -> patches (B, 9, H*W); tap index t = i*3 + j,
    # pixels on the last (lane) axis.
    batch = x.shape[0]
    xp = jnp.pad(x, ((0, 0), (0, 0), (1, 1), (1, 1)))
    taps = [xp[:, 0, i:i + H, j:j + W] for i in range(3) for j in range(3)]
    return jnp.stack(taps, axis=1).reshape(batch, 9, HW)


def forward(params, x):
    batch = x.shape[0]
    # QuantStub: identity in the fp32 forward.
    patches = im2col_3x3_pad1(x)                                  # (B, 9, 784)

    # Fold BN (running stats) into the conv weights; keep only a shift.
    inv_std = lax.rsqrt(params["bn_var"] + BN_EPS)
    scale = params["bn_gamma"] * inv_std                          # (16,)
    w_scaled = params["conv_w"].reshape(C_OUT, 9) * scale[:, None]
    shift = ((params["conv_b"] - params["bn_mean"]) * scale
             + params["bn_beta"]).reshape(C_OUT, 1)

    act = conv_bn_relu(patches, w_scaled, shift)                  # (B,16,784) bf16

    # NCHW flatten: channel-major output -> contiguous reshape (free).
    flat = act.reshape(batch, K_FC)                               # (B, 12544) bf16

    out_t = fc(flat, params["fc_w"],
               params["fc_b"].reshape(NUM_CLASSES, 1))            # (10, B) f32
    # DeQuantStub: identity.
    return out_t.T                                                # (B, 10)


def reference_forward(params, x):
    batch = x.shape[0]
    patches = im2col_3x3_pad1(x)                                  # (B, 9, 784)
    conv_w = params["conv_w"].reshape(C_OUT, 9)
    conv = (jnp.einsum("oc,bcp->bop", conv_w, patches)
            + params["conv_b"][None, :, None])
    inv_std = 1.0 / jnp.sqrt(params["bn_var"] + BN_EPS)
    bn = ((conv - params["bn_mean"][None, :, None])
          * (params["bn_gamma"] * inv_std)[None, :, None]
          + params["bn_beta"][None, :, None])
    act = jnp.maximum(bn, 0.0)                                    # (B,16,784) NCHW
    # Match the kernel's bf16 activation quantization before the FC.
    act = act.astype(jnp.bfloat16).astype(jnp.float32)
    flat = act.reshape(batch, K_FC)
    w = params["fc_w"].astype(jnp.float32)
    return flat @ w.T + params["fc_b"]


if __name__ == "__main__":
    key = jax.random.PRNGKey(0)
    pkey, xkey = jax.random.split(key)
    params = init_params(pkey)

    B = 2
    x = jax.random.normal(xkey, (B, 1, H, W), jnp.float32)  # NCHW, like PyTorch

    out = jax.block_until_ready(jax.jit(forward)(params, x))
    ref = reference_forward(params, x)
    assert out.shape == (B, NUM_CLASSES)
    err = jnp.max(jnp.abs(out - ref))
    assert jnp.allclose(out, ref, atol=2e-3, rtol=2e-3), f"max abs err = {err}"
    print("KERNEL_OK")
</pallas_src>

<mosaic_0001>
module attributes {stable_mosaic.version = 11 : i64} {
  func.func @conv_bn_relu_kernel(%arg0: i32, %arg1: memref<1x9x784xf32, #tpu.memory_space<vmem>>, %arg2: memref<16x9xf32, #tpu.memory_space<vmem>>, %arg3: memref<16x1xf32, #tpu.memory_space<vmem>>, %arg4: memref<1x16x784xbf16, #tpu.memory_space<vmem>>) attributes {dimension_semantics = [#tpu.dimension_semantics<parallel>], iteration_bounds = array<i64: 2>, scalar_prefetch = 0 : i64, scratch_operands = 0 : i64, tpu.core_type = #tpu.core_type<tc>, window_params = [{transform_indices = @transform_0, window_bounds = array<i64: 1, 9, 784>}, {pipeline_mode = #tpu.pipeline_mode<synchronous>, transform_indices = @transform_1, window_bounds = array<i64: 16, 9>}, {pipeline_mode = #tpu.pipeline_mode<synchronous>, transform_indices = @transform_2, window_bounds = array<i64: 16, 1>}, {transform_indices = @transform_3, window_bounds = array<i64: 1, 16, 784>}]} {
    %c0 = arith.constant 0 : index
    %c0_0 = arith.constant 0 : index
    %0 = vector.load %arg2[%c0, %c0_0] : memref<16x9xf32, #tpu.memory_space<vmem>>, vector<16x9xf32>
    %1 = vector.shape_cast %0 : vector<16x9xf32> to vector<1x16x9xf32>
    %c0_1 = arith.constant 0 : index
    %c0_2 = arith.constant 0 : index
    %c0_3 = arith.constant 0 : index
    %2 = vector.load %arg1[%c0_1, %c0_2, %c0_3] : memref<1x9x784xf32, #tpu.memory_space<vmem>>, vector<1x9x784xf32>
    %cst = arith.constant dense<0.000000e+00> : vector<1x16x784xf32>
    %3 = tpu.matmul %1, %2, %cst {dimension_numbers = #tpu.dot_dimension_numbers<[2], [1], [1], [2], [0, 0, 0, 1, 1, 2], [0], [0]>} : vector<1x16x9xf32>, vector<1x9x784xf32>, vector<1x16x784xf32> -> vector<1x16x784xf32>
    %c0_4 = arith.constant 0 : index
    %c0_5 = arith.constant 0 : index
    %4 = vector.load %arg3[%c0_4, %c0_5] : memref<16x1xf32, #tpu.memory_space<vmem>>, vector<16x1xf32>
    %5 = vector.shape_cast %4 : vector<16x1xf32> to vector<1x16x1xf32>
    %6 = vector.broadcast %5 : vector<1x16x1xf32> to vector<1x16x784xf32>
    %7 = arith.addf %3, %6 : vector<1x16x784xf32>
    %cst_6 = arith.constant 0.000000e+00 : f32
    %8 = vector.broadcast %cst_6 : f32 to vector<1x16x784xf32>
    %9 = arith.maximumf %7, %8 : vector<1x16x784xf32>
    %10 = arith.truncf %9 : vector<1x16x784xf32> to vector<1x16x784xbf16>
    %c0_7 = arith.constant 0 : index
    %c0_8 = arith.constant 0 : index
    %c0_9 = arith.constant 0 : index
    %11 = vector.load %arg4[%c0_7, %c0_8, %c0_9] : memref<1x16x784xbf16, #tpu.memory_space<vmem>>, vector<1x16x784xbf16>
    tpu.vector_store %arg4[%c0_7, %c0_8, %c0_9], %10 {strides = array<i32>} : memref<1x16x784xbf16, #tpu.memory_space<vmem>>, vector<1x16x784xbf16>,
    return
  }
  func.func @transform_0(%arg0: i32) -> (i32, i32, i32) {
    %c0_i32 = arith.constant 0 : i32
    %c0_i32_0 = arith.constant 0 : i32
    %c0_i32_1 = arith.constant 0 : i32
    return %arg0, %c0_i32, %c0_i32_0 : i32, i32, i32
  }
  func.func @transform_1(%arg0: i32) -> (i32, i32) {
    %c0_i32 = arith.constant 0 : i32
    %c0_i32_0 = arith.constant 0 : i32
    %c0_i32_1 = arith.constant 0 : i32
    return %c0_i32, %c0_i32_0 : i32, i32
  }
  func.func @transform_2(%arg0: i32) -> (i32, i32) {
    %c0_i32 = arith.constant 0 : i32
    %c0_i32_0 = arith.constant 0 : i32
    %c0_i32_1 = arith.constant 0 : i32
    return %c0_i32, %c0_i32_0 : i32, i32
  }
  func.func @transform_3(%arg0: i32) -> (i32, i32, i32) {
    %c0_i32 = arith.constant 0 : i32
    %c0_i32_0 = arith.constant 0 : i32
    %c0_i32_1 = arith.constant 0 : i32
    return %arg0, %c0_i32, %c0_i32_0 : i32, i32, i32
  }
}

module attributes {stable_mosaic.version = 11 : i64} {
  func.func @fc_kernel(%arg0: i32, %arg1: memref<2x12544xbf16, #tpu.memory_space<vmem>>, %arg2: memref<10x12544xbf16, #tpu.memory_space<vmem>>, %arg3: memref<10x1xf32, #tpu.memory_space<vmem>>, %arg4: memref<10x2xf32, #tpu.memory_space<vmem>>) attributes {dimension_semantics = [#tpu.dimension_semantics<parallel>], iteration_bounds = array<i64: 1>, scalar_prefetch = 0 : i64, scratch_operands = 0 : i64, tpu.core_type = #tpu.core_type<tc>, window_params = [{transform_indices = @transform_0, window_bounds = array<i64: 2, 12544>}, {pipeline_mode = #tpu.pipeline_mode<synchronous>, transform_indices = @transform_1, window_bounds = array<i64: 10, 12544>}, {pipeline_mode = #tpu.pipeline_mode<synchronous>, transform_indices = @transform_2, window_bounds = array<i64: 10, 1>}, {transform_indices = @transform_3, window_bounds = array<i64: 10, 2>}]} {
    %c0 = arith.constant 0 : index
    %c0_0 = arith.constant 0 : index
    %0 = vector.load %arg2[%c0, %c0_0] : memref<10x12544xbf16, #tpu.memory_space<vmem>>, vector<10x12544xbf16>
    %c0_1 = arith.constant 0 : index
    %c0_2 = arith.constant 0 : index
    %1 = vector.load %arg1[%c0_1, %c0_2] : memref<2x12544xbf16, #tpu.memory_space<vmem>>, vector<2x12544xbf16>
    %cst = arith.constant dense<0.000000e+00> : vector<10x2xf32>
    %2 = tpu.matmul %0, %1, %cst {dimension_numbers = #tpu.dot_dimension_numbers<[1], [1], [0], [0], [0, 0, 1, 0], [], []>} : vector<10x12544xbf16>, vector<2x12544xbf16>, vector<10x2xf32> -> vector<10x2xf32>
    %c0_3 = arith.constant 0 : index
    %c0_4 = arith.constant 0 : index
    %3 = vector.load %arg3[%c0_3, %c0_4] : memref<10x1xf32, #tpu.memory_space<vmem>>, vector<10x1xf32>
    %4 = vector.broadcast %3 : vector<10x1xf32> to vector<10x2xf32>
    %5 = arith.addf %2, %4 : vector<10x2xf32>
    %c0_5 = arith.constant 0 : index
    %c0_6 = arith.constant 0 : index
    %6 = vector.load %arg4[%c0_5, %c0_6] : memref<10x2xf32, #tpu.memory_space<vmem>>, vector<10x2xf32>
    tpu.vector_store %arg4[%c0_5, %c0_6], %5 {strides = array<i32>} : memref<10x2xf32, #tpu.memory_space<vmem>>, vector<10x2xf32>,
    return
  }
  func.func @transform_0(%arg0: i32) -> (i32, i32) {
    %c0_i32 = arith.constant 0 : i32
    %c0_i32_0 = arith.constant 0 : i32
    return %arg0, %c0_i32 : i32, i32
  }
  func.func @transform_1(%arg0: i32) -> (i32, i32) {
    %c0_i32 = arith.constant 0 : i32
    %c0_i32_0 = arith.constant 0 : i32
    %c0_i32_1 = arith.constant 0 : i32
    return %c0_i32, %c0_i32_0 : i32, i32
  }
  func.func @transform_2(%arg0: i32) -> (i32, i32) {
    %c0_i32 = arith.constant 0 : i32
    %c0_i32_0 = arith.constant 0 : i32
    %c0_i32_1 = arith.constant 0 : i32
    return %c0_i32, %c0_i32_0 : i32, i32
  }
  func.func @transform_3(%arg0: i32) -> (i32, i32) {
    %c0_i32 = arith.constant 0 : i32
    %c0_i32_0 = arith.constant 0 : i32
    return %c0_i32, %arg0 : i32, i32
  }
}

</mosaic_0001>

<llo_original>
// kernel: forward.2
$region0: #{forward.2}
  #allocation0 [shape = 'u32[]', space=smem, size = 0x4, offset = 0x4, fixed_abs, tag = 'smem constant byte address 0x4 - core index']
  #allocation1 [shape = 'u32[144,128]{1,0:T(1,128)}', space=vmem, size = 0x12000, scoped, tag = 'internal scratch']
  %s0 = inlined_call_operand.vmem [shape: f32[2,9,784], index: 0, kind: input, shape index: {}]
  %s1 = inlined_call_operand.vmem [shape: f32[16,9], index: 1, kind: input, shape index: {}]
  %s2 = inlined_call_operand.vmem [shape: f32[16,1], index: 2, kind: input, shape index: {}]
  %s3 = inlined_call_operand.vmem [shape: bf16[2,16,784], index: 3, kind: output, shape index: {}]
  %s4 = sld [smem:[#allocation0]]
  $region45: #{forward.2} parent=0
    _
  %s6 = ssub.s32 1, %s4
  %s7 = scalar_select 0, %s6, %s4
  loop: start=0, step=1, limit=4
  $region2: #{forward.2} parent=0 // loop_pre_header
    _
  $region3: #{forward.2} parent=0 // loop_header
    %s9 = sphi 0, %s13
    %p10 = scmp.ge.s32.totalorder %s9, 4
    %s19 = sphi 0, %s21
    %s22 = sphi 0, %s19
    %s23 = sphi 0, %s22
    %s39 = sphi 0, %s23
    %s43 = sphi 0, %s43
    %s45 = sphi 0, %s43
    %s46 = sphi 0, %s45
    %s60 = sphi 0, %s46
    %s64 = sphi 0, %s64
    %s66 = sphi 0, %s64
    %s67 = sphi 0, %s66
    %s81 = sphi 0, %s67
    %s87 = sphi 0, %s89
    %s90 = sphi 0, %s87
    %s91 = sphi 0, %s90
    %s107 = sphi 0, %s91
  $region4: #{forward.2} parent=0 // loop_header_branch
    %12 = sbr.rel (%p10) target = $region8
  $region5: #{forward.2} parent=0 // loop_body
    %s14 = ssub.s32 %s9, 1
    %s15 = ssub.s32 %s9, 2
    %s16 = sadd.s32 %s9, 1
    %s17 = ssub.s32 %s9, %s16
    %p18 = scmp.eq.s32.totalorder %s17, 0
    %s20 = sadd.s32 %s19, 1
    %s21 = scalar_select %p18, %s19, %s20
    %p24 = pneg %p18
    %p25 = scmp.eq.s32.totalorder %s9, 1
    %p26 = por %p24, %p25
    %p27 = scmp.ne.s32.totalorder %s19, %s22
    %p28 = scmp.eq.s32.totalorder %s9, 0
    %p29 = por %p27, %p28
    %p30 = scmp.ne.s32.totalorder %s19, %s22
    %p31 = scmp.eq.s32.totalorder %s14, 1
    %p32 = por %p30, %p31
    %p33 = scmp.ne.s32.totalorder %s22, %s23
    %p34 = scmp.eq.s32.totalorder %s14, 0
    %p35 = por %p33, %p34
    %p36 = scmp.ne.s32.totalorder %s22, %s23
    %p37 = scmp.eq.s32.totalorder %s15, 1
    %p38 = por %p36, %p37
    %p40 = scmp.ne.s32.totalorder %s23, %s39
    %p41 = scmp.eq.s32.totalorder %s15, 0
    %p42 = por %p40, %p41
    %s44 = sadd.s32 %s43, 1
    %p47 = scmp.eq.s32.totalorder %s9, 1
    %p48 = scmp.ne.s32.totalorder %s43, %s45
    %p49 = scmp.eq.s32.totalorder %s9, 0
    %p50 = por %p48, %p49
    %p51 = scmp.ne.s32.totalorder %s43, %s45
    %p52 = scmp.eq.s32.totalorder %s14, 1
    %p53 = por %p51, %p52
    %p54 = scmp.ne.s32.totalorder %s45, %s46
    %p55 = scmp.eq.s32.totalorder %s14, 0
    %p56 = por %p54, %p55
    %p57 = scmp.ne.s32.totalorder %s45, %s46
    %p58 = scmp.eq.s32.totalorder %s15, 1
    %p59 = por %p57, %p58
    %p61 = scmp.ne.s32.totalorder %s46, %s60
    %p62 = scmp.eq.s32.totalorder %s15, 0
    %p63 = por %p61, %p62
    %s65 = sadd.s32 %s64, 1
    %p68 = scmp.eq.s32.totalorder %s9, 1
    %p69 = scmp.ne.s32.totalorder %s64, %s66
    %p70 = scmp.eq.s32.totalorder %s9, 0
    %p71 = por %p69, %p70
    %p72 = scmp.ne.s32.totalorder %s64, %s66
    %p73 = scmp.eq.s32.totalorder %s14, 1
    %p74 = por %p72, %p73
    %p75 = scmp.ne.s32.totalorder %s66, %s67
    %p76 = scmp.eq.s32.totalorder %s14, 0
    %p77 = por %p75, %p76
    %p78 = scmp.ne.s32.totalorder %s66, %s67
    %p79 = scmp.eq.s32.totalorder %s15, 1
    %p80 = por %p78, %p79
    %p82 = scmp.ne.s32.totalorder %s67, %s81
    %p83 = scmp.eq.s32.totalorder %s15, 0
    %p84 = por %p82, %p83
    %s85 = ssub.s32 %s9, %s16
    %p86 = scmp.eq.s32.totalorder %s85, 0
    %s88 = sadd.s32 %s87, 1
    %s89 = scalar_select %p86, %s87, %s88
    %p92 = pneg %p86
    %p93 = scmp.eq.s32.totalorder %s9, 1
    %p94 = por %p92, %p93
    %p95 = scmp.ne.s32.totalorder %s87, %s90
    %p96 = scmp.eq.s32.totalorder %s9, 0
    %p97 = por %p95, %p96
    %p98 = scmp.ne.s32.totalorder %s87, %s90
    %p99 = scmp.eq.s32.totalorder %s14, 1
    %p100 = por %p98, %p99
    %p101 = scmp.ne.s32.totalorder %s90, %s91
    %p102 = scmp.eq.s32.totalorder %s14, 0
    %p103 = por %p101, %p102
    %p104 = scmp.ne.s32.totalorder %s90, %s91
    %p105 = scmp.eq.s32.totalorder %s15, 1
    %p106 = por %p104, %p105
    %p108 = scmp.ne.s32.totalorder %s91, %s107
    %p109 = scmp.eq.s32.totalorder %s15, 0
    %p110 = por %p108, %p109
    %p111 = scmp.le.s32.totalorder 1, %s9
    %p112 = scmp.lt.s32.totalorder %s9, 3
    %p113 = pnand %p111, %p112
    %p114 = pneg %p113
    // Predicated region
    $region9: #{forward.2} parent=5 // pred_check
      _
    $region10: #{forward.2} parent=5 // pred_check_branch
      %116 = sbr.rel (%p113) target = $region12
    $region11: #{forward.2} parent=5 // pred_region
      %s117 = ssub.s32 %s9, 1
      // Predicated region
      $region13: #{forward.2} parent=11 // pred_check
        %p118 = pneg %p56
      $region14: #{forward.2} parent=11 // pred_check_branch
        %120 = sbr.rel (%p118) target = $region16
      $region15: #{forward.2} parent=11 // pred_region
        _
      $region16: #{forward.2} parent=11 // pred_fallthru
        _
      // Predicated region
      $region17: #{forward.2} parent=11 // pred_check
        %p121 = pneg %p77
      $region18: #{forward.2} parent=11 // pred_check_branch
        %123 = sbr.rel (%p121) target = $region20
      $region19: #{forward.2} parent=11 // pred_region
        _
      $region20: #{forward.2} parent=11 // pred_fallthru
        _
    $region12: #{forward.2} parent=5 // pred_fallthru
      _
    %p124 = scmp.lt.s32.totalorder %s9, 2
    // Predicated region
    $region21: #{forward.2} parent=5 // pred_check
      %p125 = pneg %p124
    $region22: #{forward.2} parent=5 // pred_check_branch
      %127 = sbr.rel (%p125) target = $region24
    $region23: #{forward.2} parent=5 // pred_region
      // Predicated region
      $region25: #{forward.2} parent=23 // pred_check
        %p128 = pneg %p29
      $region26: #{forward.2} parent=23 // pred_check_branch
        %130 = sbr.rel (%p128) target = $region28
      $region27: #{forward.2} parent=23 // pred_region
        %p131 = scmp.lt.s32.totalorder %s9, 1
        %s132 = scalar_select %p131, %s9, 1
        %s133 = smul.addr %s132, 14
        %s134 = smul.addr %s133, 8
        %s135 = scalar_lea.vmem %s0, %s134
      $region28: #{forward.2} parent=23 // pred_fallthru
        _
    $region24: #{forward.2} parent=5 // pred_fallthru
      _
    %p136 = scmp.le.s32.totalorder 1, %s9
    %p137 = scmp.lt.s32.totalorder %s9, 3
    %p138 = pnand %p136, %p137
    %p139 = pneg %p138
    // Predicated region
    $region29: #{forward.2} parent=5 // pred_check
      _
    $region30: #{forward.2} parent=5 // pred_check_branch
      %141 = sbr.rel (%p138) target = $region32
    $region31: #{forward.2} parent=5 // pred_region
      %s142 = ssub.s32 %s9, 1
      %p143 = scmp.lt.s32.totalorder %s14, 1
      %s144 = scalar_select %p143, %s14, 1
      %s145 = smul.addr %s144, 14
      %s146 = smul.addr %s145, 8
      %s147 = scalar_lea.vmem %s0, %s146
      %p148 = pneg %p35
      %p149 = pneg %p32
      %p150 = pneg %p56
      %p151 = pneg %p53
      %p152 = pneg %p77
      %p153 = pneg %p74
      %p154 = pneg %p103
      %p155 = pneg %p100
      %p156 = scmp.lt.s32.totalorder %s14, 1
      %s157 = scalar_select %p156, %s14, 1
      %s158 = smul.addr %s157, 14
      %s159 = smul.addr %s158, 4
      %s160 = scalar_lea.vmem %s3, %s159
      %p161 = scmp.lt.s32.totalorder %s14, 1
      %s162 = scalar_select %p161, %s14, 1
      %s163 = smul.addr %s162, 14
      %s164 = smul.addr %s163, 8
      %s165 = scalar_lea.vmem %s0, %s164
      %p166 = scmp.lt.s32.totalorder %s14, 1
      %s167 = scalar_select %p166, %s14, 1
      %s168 = smul.addr %s167, 14
      %s169 = smul.addr %s168, 4
      %s170 = scalar_lea.vmem %s3, %s169
      %v171 = vld [vmem:[%s1] sm:$0xff]
      %v172 = vld [vmem:[%s1 + $0x8] sm:$0xff]
      %v173 = vld [vmem:[%s165] sm:$0xff]
      %v174 = vld [vmem:[%s165 + $0x8] sm:$0xff]
      %v175 = vld [vmem:[%s165 + $0x10] sm:$0xff]
      %v176 = vld [vmem:[%s165 + $0x18] sm:$0xff]
      %v177 = vld [vmem:[%s165 + $0x20] sm:$0xff]
      %v178 = vld [vmem:[%s165 + $0x28] sm:$0xff]
      %v179 = vld [vmem:[%s165 + $0x30] sm:$0xff]
      %v180 = vld [vmem:[%s165 + $0x38] sm:$0x1]
      %v181 = vld [vmem:[%s165 + $0x40] sm:$0x1]
      %v182 = vld [vmem:[%s165 + $0x48] sm:$0x1]
      %v183 = vld [vmem:[%s165 + $0x50] sm:$0x1]
      %v184 = vld [vmem:[%s165 + $0x58] sm:$0x1]
      %v185 = vld [vmem:[%s165 + $0x60] sm:$0x1]
      %v186 = vld [vmem:[%s165 + $0x68] sm:$0x1]
      %v187 = vld [vmem:[%s2] sm:$0xff]
      %v188 = vld [vmem:[%s2 + $0x8] sm:$0xff]
      %190 = vset.pattern.permute.xlu0 0
      %191 = vperm.xlu0 %190, %v187
      %v192 = vpop.permute.xlu0 %191
      %195 = vset.pattern.permute.xlu0 0
      %196 = vperm.xlu0 %195, %v188
      %v197 = vpop.permute.xlu0 %196
      %vm199 = vcmask 72704
      %v201 = vsel %vm199, %v171, 0
      %v204 = vsel %vm199, %v172, 0
      %vm206 = vcmask 1040384
      %v208 = vsel %vm206, %v180, 0
      %v211 = vsel %vm206, %v181, 0
      %v214 = vsel %vm206, %v182, 0
      %v217 = vsel %vm206, %v183, 0
      %v220 = vsel %vm206, %v184, 0
      %v223 = vsel %vm206, %v185, 0
      %v226 = vsel %vm206, %v186, 0
      %228 = vmatprep.subr.mxu0 0.0
      %229 = vmatpush1.msra.mxu0 0.0
      %230 = vmatprep.subr.mxu0 0.0
      %231 = vmatpush1.msra.mxu0 0.0
      %232 = vmatprep.subr.mxu0 0.0
      %233 = vmatpush1.msra.mxu0 0.0
      %234 = vmatprep.subr.mxu0 0.0
      %235 = vmatpush1.msra.mxu0 0.0
      %236 = vmatprep.subr.mxu0 0.0
      %237 = vmatpush1.msra.mxu0 0.0
      %238 = vmatprep.subr.mxu0 0.0
      %239 = vmatpush1.msra.mxu0 0.0
      %240 = vmatprep.subr.mxu0 0.0
      %241 = vmatpush1.msra.mxu0 0.0
      %242 = vmatprep.subr.mxu0 0.0
      %243 = vmatpush1.msra.mxu0 0.0
      %244 = vmatprep.subr.mxu0 0.0
      %245 = vmatpush1.msra.mxu0 0.0
      %246 = vmatprep.subr.mxu0 0.0
      %247 = vmatpush1.msra.mxu0 0.0
      %248 = vmatprep.subr.mxu0 0.0
      %249 = vmatpush1.msra.mxu0 0.0
      %250 = vmatprep.subr.mxu0 0.0
      %251 = vmatpush1.msra.mxu0 0.0
      %252 = vmatprep.subr.mxu0 0.0
      %253 = vmatpush1.msra.mxu0 0.0
      %254 = vmatprep.subr.mxu0 0.0
      %255 = vmatpush1.msra.mxu0 0.0
      %256 = vmatprep.subr.mxu0 %v211
      %257 = vmatpush1.msra.mxu0 %v208
      %258 = vmatprep.subr.mxu0 %v174
      %259 = vmatpush1.msra.mxu0 %v173
      %260 = vmatprep.subr.mxu0 0.0
      %261 = vmatpush2.msra.mxu0 0.0
      %262 = vmatprep.subr.mxu0 0.0
      %263 = vmatpush2.msra.mxu0 0.0
      %264 = vmatprep.subr.mxu0 0.0
      %265 = vmatpush2.msra.mxu0 0.0
      %266 = vmatprep.subr.mxu0 0.0
      %267 = vmatpush2.msra.mxu0 0.0
      %268 = vmatprep.subr.mxu0 0.0
      %269 = vmatpush2.msra.mxu0 0.0
      %270 = vmatprep.subr.mxu0 0.0
      %271 = vmatpush2.msra.mxu0 0.0
      %272 = vmatprep.subr.mxu0 0.0
      %273 = vmatpush2.msra.mxu0 0.0
      %274 = vmatprep.subr.mxu0 0.0
      %275 = vmatpush2.msra.mxu0 0.0
      %276 = vmatprep.subr.mxu0 0.0
      %277 = vmatpush2.msra.mxu0 0.0
      %278 = vmatprep.subr.mxu0 0.0
      %279 = vmatpush2.msra.mxu0 0.0
      %280 = vmatprep.subr.mxu0 0.0
      %281 = vmatpush2.msra.mxu0 0.0
      %282 = vmatprep.subr.mxu0 0.0
      %283 = vmatpush2.msra.mxu0 0.0
      %284 = vmatprep.subr.mxu0 0.0
      %285 = vmatpush2.msra.mxu0 0.0
      %286 = vmatprep.subr.mxu0 0.0
      %287 = vmatpush2.msra.mxu0 0.0
      %288 = vmatprep.subr.mxu0 0.0
      %289 = vmatpush2.msra.mxu0 0.0
      %290 = vmatprep.subr.mxu0 0.0
      %291 = vmatpush2.msra.mxu0 0.0
      %292 = vmatprep.mubr.f32.mxu0 0.0
      %293 = vmatmul.mubr.f32.gmra.mxu0 %v201
      %v294 = vpop.f32.mrf.mxu0
      %v295 = vadd.f32 %v192, %v294
      %v296 = vpop.f32.mrf.mxu0
      %v297 = vadd.f32 %v192, %v296
      %298 = vmatprep.mubr.f32.mxu0 0.0
      %299 = vmatmul.mubr.f32.gmra.mxu0 %v204
      %v300 = vpop.f32.mrf.mxu0
      %v301 = vadd.f32 %v197, %v300
      %v302 = vpop.f32.mrf.mxu0
      %v303 = vadd.f32 %v197, %v302
      %304 = vdwg.mxu0
      %305 = vmatprep.subr.mxu0 0.0
      %306 = vmatpush1.msra.mxu0 0.0
      %307 = vmatprep.subr.mxu0 0.0
      %308 = vmatpush1.msra.mxu0 0.0
      %309 = vmatprep.subr.mxu0 0.0
      %310 = vmatpush1.msra.mxu0 0.0
      %311 = vmatprep.subr.mxu0 0.0
      %312 = vmatpush1.msra.mxu0 0.0
      %313 = vmatprep.subr.mxu0 0.0
      %314 = vmatpush1.msra.mxu0 0.0
      %315 = vmatprep.subr.mxu0 0.0
      %316 = vmatpush1.msra.mxu0 0.0
      %317 = vmatprep.subr.mxu0 0.0
      %318 = vmatpush1.msra.mxu0 0.0
      %319 = vmatprep.subr.mxu0 0.0
      %320 = vmatpush1.msra.mxu0 0.0
      %321 = vmatprep.subr.mxu0 0.0
      %322 = vmatpush1.msra.mxu0 0.0
      %323 = vmatprep.subr.mxu0 0.0
      %324 = vmatpush1.msra.mxu0 0.0
      %325 = vmatprep.subr.mxu0 0.0
      %326 = vmatpush1.msra.mxu0 0.0
      %327 = vmatprep.subr.mxu0 0.0
      %328 = vmatpush1.msra.mxu0 0.0
      %329 = vmatprep.subr.mxu0 0.0
      %330 = vmatpush1.msra.mxu0 0.0
      %331 = vmatprep.subr.mxu0 0.0
      %332 = vmatpush1.msra.mxu0 0.0
      %333 = vmatprep.subr.mxu0 %v217
      %334 = vmatpush1.msra.mxu0 %v214
      %335 = vmatprep.subr.mxu0 %v176
      %336 = vmatpush1.msra.mxu0 %v175
      %337 = vmatprep.subr.mxu0 0.0
      %338 = vmatpush2.msra.mxu0 0.0
      %339 = vmatprep.subr.mxu0 0.0
      %340 = vmatpush2.msra.mxu0 0.0
      %341 = vmatprep.subr.mxu0 0.0
      %342 = vmatpush2.msra.mxu0 0.0
      %343 = vmatprep.subr.mxu0 0.0
      %344 = vmatpush2.msra.mxu0 0.0
      %345 = vmatprep.subr.mxu0 0.0
      %346 = vmatpush2.msra.mxu0 0.0
      %347 = vmatprep.subr.mxu0 0.0
      %348 = vmatpush2.msra.mxu0 0.0
      %349 = vmatprep.subr.mxu0 0.0
      %350 = vmatpush2.msra.mxu0 0.0
      %351 = vmatprep.subr.mxu0 0.0
      %352 = vmatpush2.msra.mxu0 0.0
      %353 = vmatprep.subr.mxu0 0.0
      %354 = vmatpush2.msra.mxu0 0.0
      %355 = vmatprep.subr.mxu0 0.0
      %356 = vmatpush2.msra.mxu0 0.0
      %357 = vmatprep.subr.mxu0 0.0
      %358 = vmatpush2.msra.mxu0 0.0
      %359 = vmatprep.subr.mxu0 0.0
      %360 = vmatpush2.msra.mxu0 0.0
      %361 = vmatprep.subr.mxu0 0.0
      %362 = vmatpush2.msra.mxu0 0.0
      %363 = vmatprep.subr.mxu0 0.0
      %364 = vmatpush2.msra.mxu0 0.0
      %365 = vmatprep.subr.mxu0 0.0
      %366 = vmatpush2.msra.mxu0 0.0
      %367 = vmatprep.subr.mxu0 0.0
      %368 = vmatpush2.msra.mxu0 0.0
      %369 = vmatprep.mubr.f32.mxu0 0.0
      %370 = vmatmul.mubr.f32.gmra.mxu0 %v201
      %v371 = vpop.f32.mrf.mxu0
      %v372 = vadd.f32 %v192, %v371
      %v373 = vpop.f32.mrf.mxu0
      %v374 = vadd.f32 %v192, %v373
      %375 = vmatprep.mubr.f32.mxu0 0.0
      %376 = vmatmul.mubr.f32.gmra.mxu0 %v204
      %v377 = vpop.f32.mrf.mxu0
      %v378 = vadd.f32 %v197, %v377
      %v379 = vpop.f32.mrf.mxu0
      %v380 = vadd.f32 %v197, %v379
      %381 = vdwg.mxu0
      %382 = vmatprep.subr.mxu0 0.0
      %383 = vmatpush1.msra.mxu0 0.0
      %384 = vmatprep.subr.mxu0 0.0
      %385 = vmatpush1.msra.mxu0 0.0
      %386 = vmatprep.subr.mxu0 0.0
      %387 = vmatpush1.msra.mxu0 0.0
      %388 = vmatprep.subr.mxu0 0.0
      %389 = vmatpush1.msra.mxu0 0.0
      %390 = vmatprep.subr.mxu0 0.0
      %391 = vmatpush1.msra.mxu0 0.0
      %392 = vmatprep.subr.mxu0 0.0
      %393 = vmatpush1.msra.mxu0 0.0
      %394 = vmatprep.subr.mxu0 0.0
      %395 = vmatpush1.msra.mxu0 0.0
      %396 = vmatprep.subr.mxu0 0.0
      %397 = vmatpush1.msra.mxu0 0.0
      %398 = vmatprep.subr.mxu0 0.0
      %399 = vmatpush1.msra.mxu0 0.0
      %400 = vmatprep.subr.mxu0 0.0
      %401 = vmatpush1.msra.mxu0 0.0
      %402 = vmatprep.subr.mxu0 0.0
      %403 = vmatpush1.msra.mxu0 0.0
      %404 = vmatprep.subr.mxu0 0.0
      %405 = vmatpush1.msra.mxu0 0.0
      %406 = vmatprep.subr.mxu0 0.0
      %407 = vmatpush1.msra.mxu0 0.0
      %408 = vmatprep.subr.mxu0 0.0
      %409 = vmatpush1.msra.mxu0 0.0
      %410 = vmatprep.subr.mxu0 %v223
      %411 = vmatpush1.msra.mxu0 %v220
      %412 = vmatprep.subr.mxu0 %v178
      %413 = vmatpush1.msra.mxu0 %v177
      %414 = vmatprep.subr.mxu0 0.0
      %415 = vmatpush2.msra.mxu0 0.0
      %416 = vmatprep.subr.mxu0 0.0
      %417 = vmatpush2.msra.mxu0 0.0
      %418 = vmatprep.subr.mxu0 0.0
      %419 = vmatpush2.msra.mxu0 0.0
      %420 = vmatprep.subr.mxu0 0.0
      %421 = vmatpush2.msra.mxu0 0.0
      %422 = vmatprep.subr.mxu0 0.0
      %423 = vmatpush2.msra.mxu0 0.0
      %424 = vmatprep.subr.mxu0 0.0
      %425 = vmatpush2.msra.mxu0 0.0
      %426 = vmatprep.subr.mxu0 0.0
      %427 = vmatpush2.msra.mxu0 0.0
      %428 = vmatprep.subr.mxu0 0.0
      %429 = vmatpush2.msra.mxu0 0.0
      %430 = vmatprep.subr.mxu0 0.0
      %431 = vmatpush2.msra.mxu0 0.0
      %432 = vmatprep.subr.mxu0 0.0
      %433 = vmatpush2.msra.mxu0 0.0
      %434 = vmatprep.subr.mxu0 0.0
      %435 = vmatpush2.msra.mxu0 0.0
      %436 = vmatprep.subr.mxu0 0.0
      %437 = vmatpush2.msra.mxu0 0.0
      %438 = vmatprep.subr.mxu0 0.0
      %439 = vmatpush2.msra.mxu0 0.0
      %440 = vmatprep.subr.mxu0 0.0
      %441 = vmatpush2.msra.mxu0 0.0
      %442 = vmatprep.subr.mxu0 0.0
      %443 = vmatpush2.msra.mxu0 0.0
      %444 = vmatprep.subr.mxu0 0.0
      %445 = vmatpush2.msra.mxu0 0.0
      %446 = vmatprep.mubr.f32.mxu0 0.0
      %447 = vmatmul.mubr.f32.gmra.mxu0 %v201
      %v448 = vpop.f32.mrf.mxu0
      %v449 = vadd.f32 %v192, %v448
      %v450 = vpop.f32.mrf.mxu0
      %v451 = vadd.f32 %v192, %v450
      %452 = vmatprep.mubr.f32.mxu0 0.0
      %453 = vmatmul.mubr.f32.gmra.mxu0 %v204
      %v454 = vpop.f32.mrf.mxu0
      %v455 = vadd.f32 %v197, %v454
      %v456 = vpop.f32.mrf.mxu0
      %v457 = vadd.f32 %v197, %v456
      %458 = vdwg.mxu0
      %459 = vmatprep.subr.mxu0 0.0
      %460 = vmatpush1.msra.mxu0 0.0
      %461 = vmatprep.subr.mxu0 0.0
      %462 = vmatpush1.msra.mxu0 0.0
      %463 = vmatprep.subr.mxu0 0.0
      %464 = vmatpush1.msra.mxu0 0.0
      %465 = vmatprep.subr.mxu0 0.0
      %466 = vmatpush1.msra.mxu0 0.0
      %467 = vmatprep.subr.mxu0 0.0
      %468 = vmatpush1.msra.mxu0 0.0
      %469 = vmatprep.subr.mxu0 0.0
      %470 = vmatpush1.msra.mxu0 0.0
      %471 = vmatprep.subr.mxu0 0.0
      %472 = vmatpush1.msra.mxu0 0.0
      %473 = vmatprep.subr.mxu0 0.0
      %474 = vmatpush1.msra.mxu0 0.0
      %475 = vmatprep.subr.mxu0 0.0
      %476 = vmatpush1.msra.mxu0 0.0
      %477 = vmatprep.subr.mxu0 0.0
      %478 = vmatpush1.msra.mxu0 0.0
      %479 = vmatprep.subr.mxu0 0.0
      %480 = vmatpush1.msra.mxu0 0.0
      %481 = vmatprep.subr.mxu0 0.0
      %482 = vmatpush1.msra.mxu0 0.0
      %483 = vmatprep.subr.mxu0 0.0
      %484 = vmatpush1.msra.mxu0 0.0
      %485 = vmatprep.subr.mxu0 0.0
      %486 = vmatpush1.msra.mxu0 0.0
      %487 = vmatprep.subr.mxu0 0.0
      %488 = vmatpush1.msra.mxu0 %v226
      %489 = vmatprep.subr.mxu0 0.0
      %490 = vmatpush1.msra.mxu0 %v179
      %491 = vmatprep.subr.mxu0 0.0
      %492 = vmatpush2.msra.mxu0 0.0
      %493 = vmatprep.subr.mxu0 0.0
      %494 = vmatpush2.msra.mxu0 0.0
      %495 = vmatprep.subr.mxu0 0.0
      %496 = vmatpush2.msra.mxu0 0.0
      %497 = vmatprep.subr.mxu0 0.0
      %498 = vmatpush2.msra.mxu0 0.0
      %499 = vmatprep.subr.mxu0 0.0
      %500 = vmatpush2.msra.mxu0 0.0
      %501 = vmatprep.subr.mxu0 0.0
      %502 = vmatpush2.msra.mxu0 0.0
      %503 = vmatprep.subr.mxu0 0.0
      %504 = vmatpush2.msra.mxu0 0.0
      %505 = vmatprep.subr.mxu0 0.0
      %506 = vmatpush2.msra.mxu0 0.0
      %507 = vmatprep.subr.mxu0 0.0
      %508 = vmatpush2.msra.mxu0 0.0
      %509 = vmatprep.subr.mxu0 0.0
      %510 = vmatpush2.msra.mxu0 0.0
      %511 = vmatprep.subr.mxu0 0.0
      %512 = vmatpush2.msra.mxu0 0.0
      %513 = vmatprep.subr.mxu0 0.0
      %514 = vmatpush2.msra.mxu0 0.0
      %515 = vmatprep.subr.mxu0 0.0
      %516 = vmatpush2.msra.mxu0 0.0
      %517 = vmatprep.subr.mxu0 0.0
      %518 = vmatpush2.msra.mxu0 0.0
      %519 = vmatprep.subr.mxu0 0.0
      %520 = vmatpush2.msra.mxu0 0.0
      %521 = vmatprep.subr.mxu0 0.0
      %522 = vmatpush2.msra.mxu0 0.0
      %523 = vmatprep.mubr.f32.mxu0 0.0
      %524 = vmatmul.mubr.f32.gmra.mxu0 %v201
      %v525 = vpop.f32.mrf.mxu0
      %v526 = vadd.f32 %v192, %v525
      %v527 = vpop.f32.mrf.mxu0
      %528 = vmatprep.mubr.f32.mxu0 0.0
      %529 = vmatmul.mubr.f32.gmra.mxu0 %v204
      %v530 = vpop.f32.mrf.mxu0
      %v531 = vadd.f32 %v197, %v530
      %v532 = vpop.f32.mrf.mxu0
      %533 = vdwg.mxu0
      %v534 = vmax.f32 %v295, 0.0
      %v535 = vmax.f32 %v297, 0.0
      %v536 = vmax.f32 %v372, 0.0
      %v537 = vmax.f32 %v374, 0.0
      %v538 = vmax.f32 %v449, 0.0
      %v539 = vmax.f32 %v451, 0.0
      %v540 = vmax.f32 %v526, 0.0
      %v541 = vmax.f32 %v301, 0.0
      %v542 = vmax.f32 %v303, 0.0
      %v543 = vmax.f32 %v378, 0.0
      %v544 = vmax.f32 %v380, 0.0
      %v545 = vmax.f32 %v455, 0.0
      %v546 = vmax.f32 %v457, 0.0
      %v547 = vmax.f32 %v531, 0.0
      %v548 = vpack.c.bf16 %v541, %v534
      %v549 = vpack.c.bf16 %v542, %v535
      %v550 = vpack.c.bf16 %v543, %v536
      %v551 = vpack.c.bf16 %v544, %v537
      %v552 = vpack.c.bf16 %v545, %v538
      %v553 = vpack.c.bf16 %v546, %v539
      %v554 = vpack.c.bf16 %v547, %v540
      %v562 = vunpack.c.l.b16 %v548
      %v563 = vunpack.c.l.b16 %v549
      %v564 = vunpack.c.l.b16 %v550
      %v565 = vunpack.c.l.b16 %v551
      %v566 = vunpack.c.l.b16 %v552
      %v567 = vunpack.c.l.b16 %v553
      %v568 = vunpack.c.l.b16 %v554
      %v569 = vunpack.c.h.b16 %v548
      %v570 = vunpack.c.h.b16 %v549
      %v571 = vunpack.c.h.b16 %v550
      %v572 = vunpack.c.h.b16 %v551
      %v573 = vunpack.c.h.b16 %v552
      %v574 = vunpack.c.h.b16 %v553
      %v575 = vunpack.c.h.b16 %v554
      %v576 = vpack.c.b16 %v563, %v562
      %v577 = vpack.c.b16 %v565, %v564
      %v578 = vpack.c.b16 %v567, %v566
      %v579 = vpack.c.b16 %v568, %v568
      %v580 = vpack.c.b16 %v570, %v569
      %v581 = vpack.c.b16 %v572, %v571
      %v582 = vpack.c.b16 %v574, %v573
      %v583 = vpack.c.b16 %v575, %v575
      %592 = vst [vmem:[%s170] sm:$0xff] %v576
      %593 = vst [vmem:[%s170 + $0x8] sm:$0xff] %v577
      %594 = vst [vmem:[%s170 + $0x10] sm:$0xff] %v578
      %vm595 = vcmask 125952
      %596 = vst.msk [vmem:[%s170 + $0x18] sm:$0xf] %vm595, %v579
      %597 = vst [vmem:[%s170 + $0x1c] sm:$0xff] %v580
      %598 = vst [vmem:[%s170 + $0x24] sm:$0xff] %v581
      %599 = vst [vmem:[%s170 + $0x2c] sm:$0xff] %v582
      %600 = vst.msk [vmem:[%s170 + $0x34] sm:$0xf] %vm595, %v583
      %p601 = scmp.lt.s32.totalorder %s14, 1
      %s602 = scalar_select %p601, %s14, 1
      %s603 = smul.addr %s602, 14
      %s604 = smul.addr %s603, 4
      %s605 = scalar_lea.vmem %s3, %s604
      // Predicated region
      $region33: #{forward.2} parent=31 // pred_check
        %p606 = pneg %p100
      $region34: #{forward.2} parent=31 // pred_check_branch
        %608 = sbr.rel (%p606) target = $region36
      $region35: #{forward.2} parent=31 // pred_region
        _
      $region36: #{forward.2} parent=31 // pred_fallthru
        _
    $region32: #{forward.2} parent=5 // pred_fallthru
      _
    %p609 = scmp.le.s32.totalorder 2, %s9
    // Predicated region
    $region37: #{forward.2} parent=5 // pred_check
      %p610 = pneg %p609
    $region38: #{forward.2} parent=5 // pred_check_branch
      %612 = sbr.rel (%p610) target = $region40
    $region39: #{forward.2} parent=5 // pred_region
      %s613 = ssub.s32 %s9, 2
      // Predicated region
      $region41: #{forward.2} parent=39 // pred_check
        %p614 = pneg %p106
      $region42: #{forward.2} parent=39 // pred_check_branch
        %616 = sbr.rel (%p614) target = $region44
      $region43: #{forward.2} parent=39 // pred_region
        %p617 = scmp.lt.s32.totalorder %s15, 1
        %s618 = scalar_select %p617, %s15, 1
        %s619 = smul.addr %s618, 14
        %s620 = smul.addr %s619, 4
        %s621 = scalar_lea.vmem %s3, %s620
      $region44: #{forward.2} parent=39 // pred_fallthru
        _
    $region40: #{forward.2} parent=5 // pred_fallthru
      _
  $region6: #{forward.2} parent=0 // loop_footer
    %s13 = sadd.s32 1, %s9
  $region7: #{forward.2} parent=0 // loop_footer_branch
    %8 = sbr.rel target = $region3
  $region8: #{forward.2} parent=0 // loop_exit
    _

// kernel: forward.3
$region0: #{forward.3}
  #allocation0 [shape = 'u32[]', space=smem, size = 0x4, offset = 0x4, fixed_abs, tag = 'smem constant byte address 0x4 - core index']
  #allocation1 [shape = 'u32[144,128]{1,0:T(1,128)}', space=vmem, size = 0x12000, scoped, tag = 'internal scratch']
  %s0 = inlined_call_operand.vmem [shape: bf16[2,12544], index: 0, kind: input, shape index: {}]
  %s1 = inlined_call_operand.vmem [shape: bf16[10,12544], index: 1, kind: input, shape index: {}]
  %s2 = inlined_call_operand.vmem [shape: f32[10,1], index: 2, kind: input, shape index: {}]
  %s3 = inlined_call_operand.vmem [shape: f32[10,2], index: 3, kind: output, shape index: {}]
  %s4 = sld [smem:[#allocation0]]
  $region22: #{forward.3} parent=0
    _
  %s6 = ssub.s32 1, %s4
  %s7 = scalar_select 0, %s6, %s4
  // Predicated region
  $region2: #{forward.3} parent=0 // pred_check
    _
  $region3: #{forward.3} parent=0 // pred_check_branch
    %9 = sbr.rel (0) target = $region5
  $region4: #{forward.3} parent=0 // pred_region
    _
  $region5: #{forward.3} parent=0 // pred_fallthru
    _
  // Predicated region
  $region6: #{forward.3} parent=0 // pred_check
    _
  $region7: #{forward.3} parent=0 // pred_check_branch
    %11 = sbr.rel (0) target = $region9
  $region8: #{forward.3} parent=0 // pred_region
    _
  $region9: #{forward.3} parent=0 // pred_fallthru
    _
  // Predicated region
  $region10: #{forward.3} parent=0 // pred_check
    _
  $region11: #{forward.3} parent=0 // pred_check_branch
    %13 = sbr.rel (0) target = $region13
  $region12: #{forward.3} parent=0 // pred_region
    _
  $region13: #{forward.3} parent=0 // pred_fallthru
    _
  %v15 = vld [vmem:[%s1] sm:$0xff]
  %v16 = vld [vmem:[%s1 + $0x8] sm:$0xff]
  %v17 = vld [vmem:[%s1 + $0x10] sm:$0xff]
  %v18 = vld [vmem:[%s1 + $0x18] sm:$0xff]
  %v19 = vld [vmem:[%s1 + $0x20] sm:$0xff]
  %v20 = vld [vmem:[%s1 + $0x28] sm:$0xff]
  %v21 = vld [vmem:[%s1 + $0x30] sm:$0xff]
  %v22 = vld [vmem:[%s1 + $0x38] sm:$0xff]
  %v23 = vld [vmem:[%s1 + $0x40] sm:$0xff]
  %v24 = vld [vmem:[%s1 + $0x48] sm:$0xff]
  %v25 = vld [vmem:[%s1 + $0x50] sm:$0xff]
  %v26 = vld [vmem:[%s1 + $0x58] sm:$0xff]
  %v27 = vld [vmem:[%s1 + $0x60] sm:$0xff]
  %v28 = vld [vmem:[%s1 + $0x68] sm:$0xff]
  %v29 = vld [vmem:[%s1 + $0x70] sm:$0xff]
  %v30 = vld [vmem:[%s1 + $0x78] sm:$0xff]
  %v31 = vld [vmem:[%s1 + $0x80] sm:$0xff]
  %v32 = vld [vmem:[%s1 + $0x88] sm:$0xff]
  %v33 = vld [vmem:[%s1 + $0x90] sm:$0xff]
  %v34 = vld [vmem:[%s1 + $0x98] sm:$0xff]
  %v35 = vld [vmem:[%s1 + $0xa0] sm:$0xff]
  %v36 = vld [vmem:[%s1 + $0xa8] sm:$0xff]
  %v37 = vld [vmem:[%s1 + $0xb0] sm:$0xff]
  %v38 = vld [vmem:[%s1 + $0xb8] sm:$0xff]
  %v39 = vld [vmem:[%s1 + $0xc0] sm:$0xff]
  %v40 = vld [vmem:[%s1 + $0xc8] sm:$0xff]
  %v41 = vld [vmem:[%s1 + $0xd0] sm:$0xff]
  %v42 = vld [vmem:[%s1 + $0xd8] sm:$0xff]
  %v43 = vld [vmem:[%s1 + $0xe0] sm:$0xff]
  %v44 = vld [vmem:[%s1 + $0xe8] sm:$0xff]
  %v45 = vld [vmem:[%s1 + $0xf0] sm:$0xff]
  %v46 = vld [vmem:[%s1 + $0xf8] sm:$0xff]
  %v47 = vld [vmem:[%s1 + $0x100] sm:$0xff]
  %v48 = vld [vmem:[%s1 + $0x108] sm:$0xff]
  %v49 = vld [vmem:[%s1 + $0x110] sm:$0xff]
  %v50 = vld [vmem:[%s1 + $0x118] sm:$0xff]
  %v51 = vld [vmem:[%s1 + $0x120] sm:$0xff]
  %v52 = vld [vmem:[%s1 + $0x128] sm:$0xff]
  %v53 = vld [vmem:[%s1 + $0x130] sm:$0xff]
  %v54 = vld [vmem:[%s1 + $0x138] sm:$0xff]
  %v55 = vld [vmem:[%s1 + $0x140] sm:$0xff]
  %v56 = vld [vmem:[%s1 + $0x148] sm:$0xff]
  %v57 = vld [vmem:[%s1 + $0x150] sm:$0xff]
  %v58 = vld [vmem:[%s1 + $0x158] sm:$0xff]
  %v59 = vld [vmem:[%s1 + $0x160] sm:$0xff]
  %v60 = vld [vmem:[%s1 + $0x168] sm:$0xff]
  %v61 = vld [vmem:[%s1 + $0x170] sm:$0xff]
  %v62 = vld [vmem:[%s1 + $0x178] sm:$0xff]
  %v63 = vld [vmem:[%s1 + $0x180] sm:$0xff]
  %v64 = vld [vmem:[%s1 + $0x188] sm:$0x11]
  %v65 = vld [vmem:[%s1 + $0x190] sm:$0x11]
  %v66 = vld [vmem:[%s1 + $0x198] sm:$0x11]
  %v67 = vld [vmem:[%s1 + $0x1a0] sm:$0x11]
  %v68 = vld [vmem:[%s1 + $0x1a8] sm:$0x11]
  %v69 = vld [vmem:[%s1 + $0x1b0] sm:$0x11]
  %v70 = vld [vmem:[%s1 + $0x1b8] sm:$0x11]
  %v71 = vld [vmem:[%s1 + $0x1c0] sm:$0x11]
  %v72 = vld [vmem:[%s1 + $0x1c8] sm:$0x11]
  %v73 = vld [vmem:[%s1 + $0x1d0] sm:$0x11]
  %v74 = vld [vmem:[%s1 + $0x1d8] sm:$0x11]
  %v75 = vld [vmem:[%s1 + $0x1e0] sm:$0x11]
  %v76 = vld [vmem:[%s1 + $0x1e8] sm:$0x11]
  %v77 = vld [vmem:[%s1 + $0x1f0] sm:$0x11]
  %v78 = vld [vmem:[%s1 + $0x1f8] sm:$0x11]
  %v79 = vld [vmem:[%s1 + $0x200] sm:$0x11]
  %v80 = vld [vmem:[%s1 + $0x208] sm:$0x11]
  %v81 = vld [vmem:[%s1 + $0x210] sm:$0x11]
  %v82 = vld [vmem:[%s1 + $0x218] sm:$0x11]
  %v83 = vld [vmem:[%s1 + $0x220] sm:$0x11]
  %v84 = vld [vmem:[%s1 + $0x228] sm:$0x11]
  %v85 = vld [vmem:[%s1 + $0x230] sm:$0x11]
  %v86 = vld [vmem:[%s1 + $0x238] sm:$0x11]
  %v87 = vld [vmem:[%s1 + $0x240] sm:$0x11]
  %v88 = vld [vmem:[%s1 + $0x248] sm:$0x11]
  %v89 = vld [vmem:[%s1 + $0x250] sm:$0x11]
  %v90 = vld [vmem:[%s1 + $0x258] sm:$0x11]
  %v91 = vld [vmem:[%s1 + $0x260] sm:$0x11]
  %v92 = vld [vmem:[%s1 + $0x268] sm:$0x11]
  %v93 = vld [vmem:[%s1 + $0x270] sm:$0x11]
  %v94 = vld [vmem:[%s1 + $0x278] sm:$0x11]
  %v95 = vld [vmem:[%s1 + $0x280] sm:$0x11]
  %v96 = vld [vmem:[%s1 + $0x288] sm:$0x11]
  %v97 = vld [vmem:[%s1 + $0x290] sm:$0x11]
  %v98 = vld [vmem:[%s1 + $0x298] sm:$0x11]
  %v99 = vld [vmem:[%s1 + $0x2a0] sm:$0x11]
  %v100 = vld [vmem:[%s1 + $0x2a8] sm:$0x11]
  %v101 = vld [vmem:[%s1 + $0x2b0] sm:$0x11]
  %v102 = vld [vmem:[%s1 + $0x2b8] sm:$0x11]
  %v103 = vld [vmem:[%s1 + $0x2c0] sm:$0x11]
  %v104 = vld [vmem:[%s1 + $0x2c8] sm:$0x11]
  %v105 = vld [vmem:[%s1 + $0x2d0] sm:$0x11]
  %v106 = vld [vmem:[%s1 + $0x2d8] sm:$0x11]
  %v107 = vld [vmem:[%s1 + $0x2e0] sm:$0x11]
  %v108 = vld [vmem:[%s1 + $0x2e8] sm:$0x11]
  %v109 = vld [vmem:[%s1 + $0x2f0] sm:$0x11]
  %v110 = vld [vmem:[%s1 + $0x2f8] sm:$0x11]
  %v111 = vld [vmem:[%s1 + $0x300] sm:$0x11]
  %v112 = vld [vmem:[%s1 + $0x308] sm:$0x11]
  %v113 = vld [vmem:[%s0] sm:$0xff]
  %v114 = vld [vmem:[%s0 + $0x8] sm:$0xff]
  %v115 = vld [vmem:[%s0 + $0x10] sm:$0xff]
  %v116 = vld [vmem:[%s0 + $0x18] sm:$0xff]
  %v117 = vld [vmem:[%s0 + $0x20] sm:$0xff]
  %v118 = vld [vmem:[%s0 + $0x28] sm:$0xff]
  %v119 = vld [vmem:[%s0 + $0x30] sm:$0xff]
  %v120 = vld [vmem:[%s0 + $0x38] sm:$0xff]
  %v121 = vld [vmem:[%s0 + $0x40] sm:$0xff]
  %v122 = vld [vmem:[%s0 + $0x48] sm:$0xff]
  %v123 = vld [vmem:[%s0 + $0x50] sm:$0xff]
  %v124 = vld [vmem:[%s0 + $0x58] sm:$0xff]
  %v125 = vld [vmem:[%s0 + $0x60] sm:$0x3]
  %v126 = vld [vmem:[%s2] sm:$0xff]
  %v127 = vld [vmem:[%s2 + $0x8] sm:$0x3]
  %129 = vset.pattern.permute.xlu0 0
  %130 = vperm.xlu0 %129, %v126
  %v131 = vpop.permute.xlu0 %130
  %134 = vset.pattern.permute.xlu0 0
  %135 = vperm.xlu0 %134, %v127
  %v136 = vpop.permute.xlu0 %135
  %v236 = vunpack.c.l.b16 %v15
  %v237 = vunpack.c.h.b16 %v15
  %v238 = vunpack.c.l.b16 %v16
  %v239 = vunpack.c.h.b16 %v16
  %v240 = vunpack.c.l.b16 %v17
  %v241 = vunpack.c.h.b16 %v17
  %v242 = vunpack.c.l.b16 %v18
  %v243 = vunpack.c.h.b16 %v18
  %v244 = vunpack.c.l.b16 %v19
  %v245 = vunpack.c.h.b16 %v19
  %v246 = vunpack.c.l.b16 %v20
  %v247 = vunpack.c.h.b16 %v20
  %v248 = vunpack.c.l.b16 %v21
  %v249 = vunpack.c.h.b16 %v21
  %v250 = vunpack.c.l.b16 %v22
  %v251 = vunpack.c.h.b16 %v22
  %v252 = vunpack.c.l.b16 %v23
  %v253 = vunpack.c.h.b16 %v23
  %v254 = vunpack.c.l.b16 %v24
  %v255 = vunpack.c.h.b16 %v24
  %v256 = vunpack.c.l.b16 %v25
  %v257 = vunpack.c.h.b16 %v25
  %v258 = vunpack.c.l.b16 %v26
  %v259 = vunpack.c.h.b16 %v26
  %v260 = vunpack.c.l.b16 %v27
  %v261 = vunpack.c.h.b16 %v27
  %v262 = vunpack.c.l.b16 %v28
  %v263 = vunpack.c.h.b16 %v28
  %v264 = vunpack.c.l.b16 %v29
  %v265 = vunpack.c.h.b16 %v29
  %v266 = vunpack.c.l.b16 %v30
  %v267 = vunpack.c.h.b16 %v30
  %v268 = vunpack.c.l.b16 %v31
  %v269 = vunpack.c.h.b16 %v31
  %v270 = vunpack.c.l.b16 %v32
  %v271 = vunpack.c.h.b16 %v32
  %v272 = vunpack.c.l.b16 %v33
  %v273 = vunpack.c.h.b16 %v33
  %v274 = vunpack.c.l.b16 %v34
  %v275 = vunpack.c.h.b16 %v34
  %v276 = vunpack.c.l.b16 %v35
  %v277 = vunpack.c.h.b16 %v35
  %v278 = vunpack.c.l.b16 %v36
  %v279 = vunpack.c.h.b16 %v36
  %v280 = vunpack.c.l.b16 %v37
  %v281 = vunpack.c.h.b16 %v37
  %v282 = vunpack.c.l.b16 %v38
  %v283 = vunpack.c.h.b16 %v38
  %v284 = vunpack.c.l.b16 %v39
  %v285 = vunpack.c.h.b16 %v39
  %v286 = vunpack.c.l.b16 %v40
  %v287 = vunpack.c.h.b16 %v40
  %v288 = vunpack.c.l.b16 %v41
  %v289 = vunpack.c.h.b16 %v41
  %v290 = vunpack.c.l.b16 %v42
  %v291 = vunpack.c.h.b16 %v42
  %v292 = vunpack.c.l.b16 %v43
  %v293 = vunpack.c.h.b16 %v43
  %v294 = vunpack.c.l.b16 %v44
  %v295 = vunpack.c.h.b16 %v44
  %v296 = vunpack.c.l.b16 %v45
  %v297 = vunpack.c.h.b16 %v45
  %v298 = vunpack.c.l.b16 %v46
  %v299 = vunpack.c.h.b16 %v46
  %v300 = vunpack.c.l.b16 %v47
  %v301 = vunpack.c.h.b16 %v47
  %v302 = vunpack.c.l.b16 %v48
  %v303 = vunpack.c.h.b16 %v48
  %v304 = vunpack.c.l.b16 %v49
  %v305 = vunpack.c.h.b16 %v49
  %v306 = vunpack.c.l.b16 %v50
  %v307 = vunpack.c.h.b16 %v50
  %v308 = vunpack.c.l.b16 %v51
  %v309 = vunpack.c.h.b16 %v51
  %v310 = vunpack.c.l.b16 %v52
  %v311 = vunpack.c.h.b16 %v52
  %v312 = vunpack.c.l.b16 %v53
  %v313 = vunpack.c.h.b16 %v53
  %v314 = vunpack.c.l.b16 %v54
  %v315 = vunpack.c.h.b16 %v54
  %v316 = vunpack.c.l.b16 %v55
  %v317 = vunpack.c.h.b16 %v55
  %v318 = vunpack.c.l.b16 %v56
  %v319 = vunpack.c.h.b16 %v56
  %v320 = vunpack.c.l.b16 %v57
  %v321 = vunpack.c.h.b16 %v57
  %v322 = vunpack.c.l.b16 %v58
  %v323 = vunpack.c.h.b16 %v58
  %v324 = vunpack.c.l.b16 %v59
  %v325 = vunpack.c.h.b16 %v59
  %v326 = vunpack.c.l.b16 %v60
  %v327 = vunpack.c.h.b16 %v60
  %v328 = vunpack.c.l.b16 %v61
  %v329 = vunpack.c.h.b16 %v61
  %v330 = vunpack.c.l.b16 %v62
  %v331 = vunpack.c.h.b16 %v62
  %v332 = vunpack.c.l.b16 %v63
  %v333 = vunpack.c.h.b16 %v63
  %v334 = vunpack.c.l.b16 %v64
  %v335 = vunpack.c.h.b16 %v64
  %v336 = vunpack.c.l.b16 %v65
  %v337 = vunpack.c.h.b16 %v65
  %v338 = vunpack.c.l.b16 %v66
  %v339 = vunpack.c.h.b16 %v66
  %v340 = vunpack.c.l.b16 %v67
  %v341 = vunpack.c.h.b16 %v67
  %v342 = vunpack.c.l.b16 %v68
  %v343 = vunpack.c.h.b16 %v68
  %v344 = vunpack.c.l.b16 %v69
  %v345 = vunpack.c.h.b16 %v69
  %v346 = vunpack.c.l.b16 %v70
  %v347 = vunpack.c.h.b16 %v70
  %v348 = vunpack.c.l.b16 %v71
  %v349 = vunpack.c.h.b16 %v71
  %v350 = vunpack.c.l.b16 %v72
  %v351 = vunpack.c.h.b16 %v72
  %v352 = vunpack.c.l.b16 %v73
  %v353 = vunpack.c.h.b16 %v73
  %v354 = vunpack.c.l.b16 %v74
  %v355 = vunpack.c.h.b16 %v74
  %v356 = vunpack.c.l.b16 %v75
  %v357 = vunpack.c.h.b16 %v75
  %v358 = vunpack.c.l.b16 %v76
  %v359 = vunpack.c.h.b16 %v76
  %v360 = vunpack.c.l.b16 %v77
  %v361 = vunpack.c.h.b16 %v77
  %v362 = vunpack.c.l.b16 %v78
  %v363 = vunpack.c.h.b16 %v78
  %v364 = vunpack.c.l.b16 %v79
  %v365 = vunpack.c.h.b16 %v79
  %v366 = vunpack.c.l.b16 %v80
  %v367 = vunpack.c.h.b16 %v80
  %v368 = vunpack.c.l.b16 %v81
  %v369 = vunpack.c.h.b16 %v81
  %v370 = vunpack.c.l.b16 %v82
  %v371 = vunpack.c.h.b16 %v82
  %v372 = vunpack.c.l.b16 %v83
  %v373 = vunpack.c.h.b16 %v83
  %v374 = vunpack.c.l.b16 %v84
  %v375 = vunpack.c.h.b16 %v84
  %v376 = vunpack.c.l.b16 %v85
  %v377 = vunpack.c.h.b16 %v85
  %v378 = vunpack.c.l.b16 %v86
  %v379 = vunpack.c.h.b16 %v86
  %v380 = vunpack.c.l.b16 %v87
  %v381 = vunpack.c.h.b16 %v87
  %v382 = vunpack.c.l.b16 %v88
  %v383 = vunpack.c.h.b16 %v88
  %v384 = vunpack.c.l.b16 %v89
  %v385 = vunpack.c.h.b16 %v89
  %v386 = vunpack.c.l.b16 %v90
  %v387 = vunpack.c.h.b16 %v90
  %v388 = vunpack.c.l.b16 %v91
  %v389 = vunpack.c.h.b16 %v91
  %v390 = vunpack.c.l.b16 %v92
  %v391 = vunpack.c.h.b16 %v92
  %v392 = vunpack.c.l.b16 %v93
  %v393 = vunpack.c.h.b16 %v93
  %v394 = vunpack.c.l.b16 %v94
  %v395 = vunpack.c.h.b16 %v94
  %v396 = vunpack.c.l.b16 %v95
  %v397 = vunpack.c.h.b16 %v95
  %v398 = vunpack.c.l.b16 %v96
  %v399 = vunpack.c.h.b16 %v96
  %v400 = vunpack.c.l.b16 %v97
  %v401 = vunpack.c.h.b16 %v97
  %v402 = vunpack.c.l.b16 %v98
  %v403 = vunpack.c.h.b16 %v98
  %v404 = vunpack.c.l.b16 %v99
  %v405 = vunpack.c.h.b16 %v99
  %v406 = vunpack.c.l.b16 %v100
  %v407 = vunpack.c.h.b16 %v100
  %v408 = vunpack.c.l.b16 %v101
  %v409 = vunpack.c.h.b16 %v101
  %v410 = vunpack.c.l.b16 %v102
  %v411 = vunpack.c.h.b16 %v102
  %v412 = vunpack.c.l.b16 %v103
  %v413 = vunpack.c.h.b16 %v103
  %v414 = vunpack.c.l.b16 %v104
  %v415 = vunpack.c.h.b16 %v104
  %v416 = vunpack.c.l.b16 %v105
  %v417 = vunpack.c.h.b16 %v105
  %v418 = vunpack.c.l.b16 %v106
  %v419 = vunpack.c.h.b16 %v106
  %v420 = vunpack.c.l.b16 %v107
  %v421 = vunpack.c.h.b16 %v107
  %v422 = vunpack.c.l.b16 %v108
  %v423 = vunpack.c.h.b16 %v108
  %v424 = vunpack.c.l.b16 %v109
  %v425 = vunpack.c.h.b16 %v109
  %v426 = vunpack.c.l.b16 %v110
  %v427 = vunpack.c.h.b16 %v110
  %v428 = vunpack.c.l.b16 %v111
  %v429 = vunpack.c.h.b16 %v111
  %v430 = vunpack.c.l.b16 %v112
  %v431 = vunpack.c.h.b16 %v112
  %v432 = vpack.c.b16 %v334, %v236
  %v433 = vpack.c.b16 %v335, %v237
  %v434 = vpack.c.b16 %v336, %v238
  %v435 = vpack.c.b16 %v337, %v239
  %v436 = vpack.c.b16 %v338, %v240
  %v437 = vpack.c.b16 %v339, %v241
  %v438 = vpack.c.b16 %v340, %v242
  %v439 = vpack.c.b16 %v341, %v243
  %v440 = vpack.c.b16 %v342, %v244
  %v441 = vpack.c.b16 %v343, %v245
  %v442 = vpack.c.b16 %v344, %v246
  %v443 = vpack.c.b16 %v345, %v247
  %v444 = vpack.c.b16 %v346, %v248
  %v445 = vpack.c.b16 %v347, %v249
  %v446 = vpack.c.b16 %v348, %v250
  %v447 = vpack.c.b16 %v349, %v251
  %v448 = vpack.c.b16 %v350, %v252
  %v449 = vpack.c.b16 %v351, %v253
  %v450 = vpack.c.b16 %v352, %v254
  %v451 = vpack.c.b16 %v353, %v255
  %v452 = vpack.c.b16 %v354, %v256
  %v453 = vpack.c.b16 %v355, %v257
  %v454 = vpack.c.b16 %v356, %v258
  %v455 = vpack.c.b16 %v357, %v259
  %v456 = vpack.c.b16 %v358, %v260
  %v457 = vpack.c.b16 %v359, %v261
  %v458 = vpack.c.b16 %v360, %v262
  %v459 = vpack.c.b16 %v361, %v263
  %v460 = vpack.c.b16 %v362, %v264
  %v461 = vpack.c.b16 %v363, %v265
  %v462 = vpack.c.b16 %v364, %v266
  %v463 = vpack.c.b16 %v365, %v267
  %v464 = vpack.c.b16 %v366, %v268
  %v465 = vpack.c.b16 %v367, %v269
  %v466 = vpack.c.b16 %v368, %v270
  %v467 = vpack.c.b16 %v369, %v271
  %v468 = vpack.c.b16 %v370, %v272
  %v469 = vpack.c.b16 %v371, %v273
  %v470 = vpack.c.b16 %v372, %v274
  %v471 = vpack.c.b16 %v373, %v275
  %v472 = vpack.c.b16 %v374, %v276
  %v473 = vpack.c.b16 %v375, %v277
  %v474 = vpack.c.b16 %v376, %v278
  %v475 = vpack.c.b16 %v377, %v279
  %v476 = vpack.c.b16 %v378, %v280
  %v477 = vpack.c.b16 %v379, %v281
  %v478 = vpack.c.b16 %v380, %v282
  %v479 = vpack.c.b16 %v381, %v283
  %v480 = vpack.c.b16 %v382, %v284
  %v481 = vpack.c.b16 %v383, %v285
  %v482 = vpack.c.b16 %v384, %v286
  %v483 = vpack.c.b16 %v385, %v287
  %v484 = vpack.c.b16 %v386, %v288
  %v485 = vpack.c.b16 %v387, %v289
  %v486 = vpack.c.b16 %v388, %v290
  %v487 = vpack.c.b16 %v389, %v291
  %v488 = vpack.c.b16 %v390, %v292
  %v489 = vpack.c.b16 %v391, %v293
  %v490 = vpack.c.b16 %v392, %v294
  %v491 = vpack.c.b16 %v393, %v295
  %v492 = vpack.c.b16 %v394, %v296
  %v493 = vpack.c.b16 %v395, %v297
  %v494 = vpack.c.b16 %v396, %v298
  %v495 = vpack.c.b16 %v397, %v299
  %v496 = vpack.c.b16 %v398, %v300
  %v497 = vpack.c.b16 %v399, %v301
  %v498 = vpack.c.b16 %v400, %v302
  %v499 = vpack.c.b16 %v401, %v303
  %v500 = vpack.c.b16 %v402, %v304
  %v501 = vpack.c.b16 %v403, %v305
  %v502 = vpack.c.b16 %v404, %v306
  %v503 = vpack.c.b16 %v405, %v307
  %v504 = vpack.c.b16 %v406, %v308
  %v505 = vpack.c.b16 %v407, %v309
  %v506 = vpack.c.b16 %v408, %v310
  %v507 = vpack.c.b16 %v409, %v311
  %v508 = vpack.c.b16 %v410, %v312
  %v509 = vpack.c.b16 %v411, %v313
  %v510 = vpack.c.b16 %v412, %v314
  %v511 = vpack.c.b16 %v413, %v315
  %v512 = vpack.c.b16 %v414, %v316
  %v513 = vpack.c.b16 %v415, %v317
  %v514 = vpack.c.b16 %v416, %v318
  %v515 = vpack.c.b16 %v417, %v319
  %v516 = vpack.c.b16 %v418, %v320
  %v517 = vpack.c.b16 %v419, %v321
  %v518 = vpack.c.b16 %v420, %v322
  %v519 = vpack.c.b16 %v421, %v323
  %v520 = vpack.c.b16 %v422, %v324
  %v521 = vpack.c.b16 %v423, %v325
  %v522 = vpack.c.b16 %v424, %v326
  %v523 = vpack.c.b16 %v425, %v327
  %v524 = vpack.c.b16 %v426, %v328
  %v525 = vpack.c.b16 %v427, %v329
  %v526 = vpack.c.b16 %v428, %v330
  %v527 = vpack.c.b16 %v429, %v331
  %v528 = vpack.c.b16 %v430, %v332
  %v529 = vpack.c.b16 %v431, %v333
  %v641 = vcombine.high %v113, %v113
  %v643 = vunpack.c.l.s4 1966171168
  %v644 = vunpack.c.0.s8 %v643
  %v645 = vlaneseq
  %v646 = vshrl.u32 %v645, 7
  %v647 = vsub.s32 %v644, %v646
  %v648 = vrot.slane %v113, %v647
  %v650 = vunpack.c.l.s4 1966171168
  %v651 = vunpack.c.0.s8 %v650
  %v652 = vlaneseq
  %v653 = vshrl.u32 %v652, 7
  %v654 = vsub.s32 %v651, %v653
  %v655 = vrot.slane %v641, %v654
  %v656 = vcombine.high %v648, %v648
  %v657 = vcombine.high %v655, %v655
  %v659 = vunpack.c.l.s4 1966171168
  %v660 = vunpack.c.0.s8 %v659
  %v661 = vlaneseq
  %v662 = vshrl.u32 %v661, 7
  %v663 = vsub.s32 %v660, %v662
  %v664 = vrot.slane %v648, %v663
  %v666 = vunpack.c.l.s4 1966171168
  %v667 = vunpack.c.0.s8 %v666
  %v668 = vlaneseq
  %v669 = vshrl.u32 %v668, 7
  %v670 = vsub.s32 %v667, %v669
  %v671 = vrot.slane %v655, %v670
  %v673 = vunpack.c.l.s4 1966171168
  %v674 = vunpack.c.0.s8 %v673
  %v675 = vlaneseq
  %v676 = vshrl.u32 %v675, 7
  %v677 = vsub.s32 %v674, %v676
  %v678 = vrot.slane %v656, %v677
  %v680 = vunpack.c.l.s4 1966171168
  %v681 = vunpack.c.0.s8 %v680
  %v682 = vlaneseq
  %v683 = vshrl.u32 %v682, 7
  %v684 = vsub.s32 %v681, %v683
  %v685 = vrot.slane %v657, %v684
  %v686 = vcombine.high %v664, %v664
  %v687 = vcombine.high %v671, %v671
  %v688 = vcombine.high %v678, %v678
  %v689 = vcombine.high %v685, %v685
  %v690 = vcombine.high %v114, %v114
  %v692 = vunpack.c.l.s4 1966171168
  %v693 = vunpack.c.0.s8 %v692
  %v694 = vlaneseq
  %v695 = vshrl.u32 %v694, 7
  %v696 = vsub.s32 %v693, %v695
  %v697 = vrot.slane %v114, %v696
  %v699 = vunpack.c.l.s4 1966171168
  %v700 = vunpack.c.0.s8 %v699
  %v701 = vlaneseq
  %v702 = vshrl.u32 %v701, 7
  %v703 = vsub.s32 %v700, %v702
  %v704 = vrot.slane %v690, %v703
  %v705 = vcombine.high %v697, %v697
  %v706 = vcombine.high %v704, %v704
  %v708 = vunpack.c.l.s4 1966171168
  %v709 = vunpack.c.0.s8 %v708
  %v710 = vlaneseq
  %v711 = vshrl.u32 %v710, 7
  %v712 = vsub.s32 %v709, %v711
  %v713 = vrot.slane %v697, %v712
  %v715 = vunpack.c.l.s4 1966171168
  %v716 = vunpack.c.0.s8 %v715
  %v717 = vlaneseq
  %v718 = vshrl.u32 %v717, 7
  %v719 = vsub.s32 %v716, %v718
  %v720 = vrot.slane %v704, %v719
  %v722 = vunpack.c.l.s4 1966171168
  %v723 = vunpack.c.0.s8 %v722
  %v724 = vlaneseq
  %v725 = vshrl.u32 %v724, 7
  %v726 = vsub.s32 %v723, %v725
  %v727 = vrot.slane %v705, %v726
  %v729 = vunpack.c.l.s4 1966171168
  %v730 = vunpack.c.0.s8 %v729
  %v731 = vlaneseq
  %v732 = vshrl.u32 %v731, 7
  %v733 = vsub.s32 %v730, %v732
  %v734 = vrot.slane %v706, %v733
  %v735 = vcombine.high %v713, %v713
  %v736 = vcombine.high %v720, %v720
  %v737 = vcombine.high %v727, %v727
  %v738 = vcombine.high %v734, %v734
  %v739 = vcombine.high %v115, %v115
  %v741 = vunpack.c.l.s4 1966171168
  %v742 = vunpack.c.0.s8 %v741
  %v743 = vlaneseq
  %v744 = vshrl.u32 %v743, 7
  %v745 = vsub.s32 %v742, %v744
  %v746 = vrot.slane %v115, %v745
  %v748 = vunpack.c.l.s4 1966171168
  %v749 = vunpack.c.0.s8 %v748
  %v750 = vlaneseq
  %v751 = vshrl.u32 %v750, 7
  %v752 = vsub.s32 %v749, %v751
  %v753 = vrot.slane %v739, %v752
  %v754 = vcombine.high %v746, %v746
  %v755 = vcombine.high %v753, %v753
  %v757 = vunpack.c.l.s4 1966171168
  %v758 = vunpack.c.0.s8 %v757
  %v759 = vlaneseq
  %v760 = vshrl.u32 %v759, 7
  %v761 = vsub.s32 %v758, %v760
  %v762 = vrot.slane %v746, %v761
  %v764 = vunpack.c.l.s4 1966171168
  %v765 = vunpack.c.0.s8 %v764
  %v766 = vlaneseq
  %v767 = vshrl.u32 %v766, 7
  %v768 = vsub.s32 %v765, %v767
  %v769 = vrot.slane %v753, %v768
  %v771 = vunpack.c.l.s4 1966171168
  %v772 = vunpack.c.0.s8 %v771
  %v773 = vlaneseq
  %v774 = vshrl.u32 %v773, 7
  %v775 = vsub.s32 %v772, %v774
  %v776 = vrot.slane %v754, %v775
  %v778 = vunpack.c.l.s4 1966171168
  %v779 = vunpack.c.0.s8 %v778
  %v780 = vlaneseq
  %v781 = vshrl.u32 %v780, 7
  %v782 = vsub.s32 %v779, %v781
  %v783 = vrot.slane %v755, %v782
  %v784 = vcombine.high %v762, %v762
  %v785 = vcombine.high %v769, %v769
  %v786 = vcombine.high %v776, %v776
  %v787 = vcombine.high %v783, %v783
  %v788 = vcombine.high %v116, %v116
  %v790 = vunpack.c.l.s4 1966171168
  %v791 = vunpack.c.0.s8 %v790
  %v792 = vlaneseq
  %v793 = vshrl.u32 %v792, 7
  %v794 = vsub.s32 %v791, %v793
  %v795 = vrot.slane %v116, %v794
  %v797 = vunpack.c.l.s4 1966171168
  %v798 = vunpack.c.0.s8 %v797
  %v799 = vlaneseq
  %v800 = vshrl.u32 %v799, 7
  %v801 = vsub.s32 %v798, %v800
  %v802 = vrot.slane %v788, %v801
  %v803 = vcombine.high %v795, %v795
  %v804 = vcombine.high %v802, %v802
  %v806 = vunpack.c.l.s4 1966171168
  %v807 = vunpack.c.0.s8 %v806
  %v808 = vlaneseq
  %v809 = vshrl.u32 %v808, 7
  %v810 = vsub.s32 %v807, %v809
  %v811 = vrot.slane %v795, %v810
  %v813 = vunpack.c.l.s4 1966171168
  %v814 = vunpack.c.0.s8 %v813
  %v815 = vlaneseq
  %v816 = vshrl.u32 %v815, 7
  %v817 = vsub.s32 %v814, %v816
  %v818 = vrot.slane %v802, %v817
  %v820 = vunpack.c.l.s4 1966171168
  %v821 = vunpack.c.0.s8 %v820
  %v822 = vlaneseq
  %v823 = vshrl.u32 %v822, 7
  %v824 = vsub.s32 %v821, %v823
  %v825 = vrot.slane %v803, %v824
  %v827 = vunpack.c.l.s4 1966171168
  %v828 = vunpack.c.0.s8 %v827
  %v829 = vlaneseq
  %v830 = vshrl.u32 %v829, 7
  %v831 = vsub.s32 %v828, %v830
  %v832 = vrot.slane %v804, %v831
  %v833 = vcombine.high %v811, %v811
  %v834 = vcombine.high %v818, %v818
  %v835 = vcombine.high %v825, %v825
  %v836 = vcombine.high %v832, %v832
  %v837 = vcombine.high %v117, %v117
  %v839 = vunpack.c.l.s4 1966171168
  %v840 = vunpack.c.0.s8 %v839
  %v841 = vlaneseq
  %v842 = vshrl.u32 %v841, 7
  %v843 = vsub.s32 %v840, %v842
  %v844 = vrot.slane %v117, %v843
  %v846 = vunpack.c.l.s4 1966171168
  %v847 = vunpack.c.0.s8 %v846
  %v848 = vlaneseq
  %v849 = vshrl.u32 %v848, 7
  %v850 = vsub.s32 %v847, %v849
  %v851 = vrot.slane %v837, %v850
  %v852 = vcombine.high %v844, %v844
  %v853 = vcombine.high %v851, %v851
  %v855 = vunpack.c.l.s4 1966171168
  %v856 = vunpack.c.0.s8 %v855
  %v857 = vlaneseq
  %v858 = vshrl.u32 %v857, 7
  %v859 = vsub.s32 %v856, %v858
  %v860 = vrot.slane %v844, %v859
  %v862 = vunpack.c.l.s4 1966171168
  %v863 = vunpack.c.0.s8 %v862
  %v864 = vlaneseq
  %v865 = vshrl.u32 %v864, 7
  %v866 = vsub.s32 %v863, %v865
  %v867 = vrot.slane %v851, %v866
  %v869 = vunpack.c.l.s4 1966171168
  %v870 = vunpack.c.0.s8 %v869
  %v871 = vlaneseq
  %v872 = vshrl.u32 %v871, 7
  %v873 = vsub.s32 %v870, %v872
  %v874 = vrot.slane %v852, %v873
  %v876 = vunpack.c.l.s4 1966171168
  %v877 = vunpack.c.0.s8 %v876
  %v878 = vlaneseq
  %v879 = vshrl.u32 %v878, 7
  %v880 = vsub.s32 %v877, %v879
  %v881 = vrot.slane %v853, %v880
  %v882 = vcombine.high %v860, %v860
  %v883 = vcombine.high %v867, %v867
  %v884 = vcombine.high %v874, %v874
  %v885 = vcombine.high %v881, %v881
  %v886 = vcombine.high %v118, %v118
  %v888 = vunpack.c.l.s4 1966171168
  %v889 = vunpack.c.0.s8 %v888
  %v890 = vlaneseq
  %v891 = vshrl.u32 %v890, 7
  %v892 = vsub.s32 %v889, %v891
  %v893 = vrot.slane %v118, %v892
  %v895 = vunpack.c.l.s4 1966171168
  %v896 = vunpack.c.0.s8 %v895
  %v897 = vlaneseq
  %v898 = vshrl.u32 %v897, 7
  %v899 = vsub.s32 %v896, %v898
  %v900 = vrot.slane %v886, %v899
  %v901 = vcombine.high %v893, %v893
  %v902 = vcombine.high %v900, %v900
  %v904 = vunpack.c.l.s4 1966171168
  %v905 = vunpack.c.0.s8 %v904
  %v906 = vlaneseq
  %v907 = vshrl.u32 %v906, 7
  %v908 = vsub.s32 %v905, %v907
  %v909 = vrot.slane %v893, %v908
  %v911 = vunpack.c.l.s4 1966171168
  %v912 = vunpack.c.0.s8 %v911
  %v913 = vlaneseq
  %v914 = vshrl.u32 %v913, 7
  %v915 = vsub.s32 %v912, %v914
  %v916 = vrot.slane %v900, %v915
  %v918 = vunpack.c.l.s4 1966171168
  %v919 = vunpack.c.0.s8 %v918
  %v920 = vlaneseq
  %v921 = vshrl.u32 %v920, 7
  %v922 = vsub.s32 %v919, %v921
  %v923 = vrot.slane %v901, %v922
  %v925 = vunpack.c.l.s4 1966171168
  %v926 = vunpack.c.0.s8 %v925
  %v927 = vlaneseq
  %v928 = vshrl.u32 %v927, 7
  %v929 = vsub.s32 %v926, %v928
  %v930 = vrot.slane %v902, %v929
  %v931 = vcombine.high %v909, %v909
  %v932 = vcombine.high %v916, %v916
  %v933 = vcombine.high %v923, %v923
  %v934 = vcombine.high %v930, %v930
  %v935 = vcombine.high %v119, %v119
  %v937 = vunpack.c.l.s4 1966171168
  %v938 = vunpack.c.0.s8 %v937
  %v939 = vlaneseq
  %v940 = vshrl.u32 %v939, 7
  %v941 = vsub.s32 %v938, %v940
  %v942 = vrot.slane %v119, %v941
  %v944 = vunpack.c.l.s4 1966171168
  %v945 = vunpack.c.0.s8 %v944
  %v946 = vlaneseq
  %v947 = vshrl.u32 %v946, 7
  %v948 = vsub.s32 %v945, %v947
  %v949 = vrot.slane %v935, %v948
  %v950 = vcombine.high %v942, %v942
  %v951 = vcombine.high %v949, %v949
  %v953 = vunpack.c.l.s4 1966171168
  %v954 = vunpack.c.0.s8 %v953
  %v955 = vlaneseq
  %v956 = vshrl.u32 %v955, 7
  %v957 = vsub.s32 %v954, %v956
  %v958 = vrot.slane %v942, %v957
  %v960 = vunpack.c.l.s4 1966171168
  %v961 = vunpack.c.0.s8 %v960
  %v962 = vlaneseq
  %v963 = vshrl.u32 %v962, 7
  %v964 = vsub.s32 %v961, %v963
  %v965 = vrot.slane %v949, %v964
  %v967 = vunpack.c.l.s4 1966171168
  %v968 = vunpack.c.0.s8 %v967
  %v969 = vlaneseq
  %v970 = vshrl.u32 %v969, 7
  %v971 = vsub.s32 %v968, %v970
  %v972 = vrot.slane %v950, %v971
  %v974 = vunpack.c.l.s4 1966171168
  %v975 = vunpack.c.0.s8 %v974
  %v976 = vlaneseq
  %v977 = vshrl.u32 %v976, 7
  %v978 = vsub.s32 %v975, %v977
  %v979 = vrot.slane %v951, %v978
  %v980 = vcombine.high %v958, %v958
  %v981 = vcombine.high %v965, %v965
  %v982 = vcombine.high %v972, %v972
  %v983 = vcombine.high %v979, %v979
  %v984 = vcombine.high %v120, %v120
  %v986 = vunpack.c.l.s4 1966171168
  %v987 = vunpack.c.0.s8 %v986
  %v988 = vlaneseq
  %v989 = vshrl.u32 %v988, 7
  %v990 = vsub.s32 %v987, %v989
  %v991 = vrot.slane %v120, %v990
  %v993 = vunpack.c.l.s4 1966171168
  %v994 = vunpack.c.0.s8 %v993
  %v995 = vlaneseq
  %v996 = vshrl.u32 %v995, 7
  %v997 = vsub.s32 %v994, %v996
  %v998 = vrot.slane %v984, %v997
  %v999 = vcombine.high %v991, %v991
  %v1000 = vcombine.high %v998, %v998
  %v1002 = vunpack.c.l.s4 1966171168
  %v1003 = vunpack.c.0.s8 %v1002
  %v1004 = vlaneseq
  %v1005 = vshrl.u32 %v1004, 7
  %v1006 = vsub.s32 %v1003, %v1005
  %v1007 = vrot.slane %v991, %v1006
  %v1009 = vunpack.c.l.s4 1966171168
  %v1010 = vunpack.c.0.s8 %v1009
  %v1011 = vlaneseq
  %v1012 = vshrl.u32 %v1011, 7
  %v1013 = vsub.s32 %v1010, %v1012
  %v1014 = vrot.slane %v998, %v1013
  %v1016 = vunpack.c.l.s4 1966171168
  %v1017 = vunpack.c.0.s8 %v1016
  %v1018 = vlaneseq
  %v1019 = vshrl.u32 %v1018, 7
  %v1020 = vsub.s32 %v1017, %v1019
  %v1021 = vrot.slane %v999, %v1020
  %v1023 = vunpack.c.l.s4 1966171168
  %v1024 = vunpack.c.0.s8 %v1023
  %v1025 = vlaneseq
  %v1026 = vshrl.u32 %v1025, 7
  %v1027 = vsub.s32 %v1024, %v1026
  %v1028 = vrot.slane %v1000, %v1027
  %v1029 = vcombine.high %v1007, %v1007
  %v1030 = vcombine.high %v1014, %v1014
  %v1031 = vcombine.high %v1021, %v1021
  %v1032 = vcombine.high %v1028, %v1028
  %v1033 = vcombine.high %v121, %v121
  %v1035 = vunpack.c.l.s4 1966171168
  %v1036 = vunpack.c.0.s8 %v1035
  %v1037 = vlaneseq
  %v1038 = vshrl.u32 %v1037, 7
  %v1039 = vsub.s32 %v1036, %v1038
  %v1040 = vrot.slane %v121, %v1039
  %v1042 = vunpack.c.l.s4 1966171168
  %v1043 = vunpack.c.0.s8 %v1042
  %v1044 = vlaneseq
  %v1045 = vshrl.u32 %v1044, 7
  %v1046 = vsub.s32 %v1043, %v1045
  %v1047 = vrot.slane %v1033, %v1046
  %v1048 = vcombine.high %v1040, %v1040
  %v1049 = vcombine.high %v1047, %v1047
  %v1051 = vunpack.c.l.s4 1966171168
  %v1052 = vunpack.c.0.s8 %v1051
  %v1053 = vlaneseq
  %v1054 = vshrl.u32 %v1053, 7
  %v1055 = vsub.s32 %v1052, %v1054
  %v1056 = vrot.slane %v1040, %v1055
  %v1058 = vunpack.c.l.s4 1966171168
  %v1059 = vunpack.c.0.s8 %v1058
  %v1060 = vlaneseq
  %v1061 = vshrl.u32 %v1060, 7
  %v1062 = vsub.s32 %v1059, %v1061
  %v1063 = vrot.slane %v1047, %v1062
  %v1065 = vunpack.c.l.s4 1966171168
  %v1066 = vunpack.c.0.s8 %v1065
  %v1067 = vlaneseq
  %v1068 = vshrl.u32 %v1067, 7
  %v1069 = vsub.s32 %v1066, %v1068
  %v1070 = vrot.slane %v1048, %v1069
  %v1072 = vunpack.c.l.s4 1966171168
  %v1073 = vunpack.c.0.s8 %v1072
  %v1074 = vlaneseq
  %v1075 = vshrl.u32 %v1074, 7
  %v1076 = vsub.s32 %v1073, %v1075
  %v1077 = vrot.slane %v1049, %v1076
  %v1078 = vcombine.high %v1056, %v1056
  %v1079 = vcombine.high %v1063, %v1063
  %v1080 = vcombine.high %v1070, %v1070
  %v1081 = vcombine.high %v1077, %v1077
  %v1082 = vcombine.high %v122, %v122
  %v1084 = vunpack.c.l.s4 1966171168
  %v1085 = vunpack.c.0.s8 %v1084
  %v1086 = vlaneseq
  %v1087 = vshrl.u32 %v1086, 7
  %v1088 = vsub.s32 %v1085, %v1087
  %v1089 = vrot.slane %v122, %v1088
  %v1091 = vunpack.c.l.s4 1966171168
  %v1092 = vunpack.c.0.s8 %v1091
  %v1093 = vlaneseq
  %v1094 = vshrl.u32 %v1093, 7
  %v1095 = vsub.s32 %v1092, %v1094
  %v1096 = vrot.slane %v1082, %v1095
  %v1097 = vcombine.high %v1089, %v1089
  %v1098 = vcombine.high %v1096, %v1096
  %v1100 = vunpack.c.l.s4 1966171168
  %v1101 = vunpack.c.0.s8 %v1100
  %v1102 = vlaneseq
  %v1103 = vshrl.u32 %v1102, 7
  %v1104 = vsub.s32 %v1101, %v1103
  %v1105 = vrot.slane %v1089, %v1104
  %v1107 = vunpack.c.l.s4 1966171168
  %v1108 = vunpack.c.0.s8 %v1107
  %v1109 = vlaneseq
  %v1110 = vshrl.u32 %v1109, 7
  %v1111 = vsub.s32 %v1108, %v1110
  %v1112 = vrot.slane %v1096, %v1111
  %v1114 = vunpack.c.l.s4 1966171168
  %v1115 = vunpack.c.0.s8 %v1114
  %v1116 = vlaneseq
  %v1117 = vshrl.u32 %v1116, 7
  %v1118 = vsub.s32 %v1115, %v1117
  %v1119 = vrot.slane %v1097, %v1118
  %v1121 = vunpack.c.l.s4 1966171168
  %v1122 = vunpack.c.0.s8 %v1121
  %v1123 = vlaneseq
  %v1124 = vshrl.u32 %v1123, 7
  %v1125 = vsub.s32 %v1122, %v1124
  %v1126 = vrot.slane %v1098, %v1125
  %v1127 = vcombine.high %v1105, %v1105
  %v1128 = vcombine.high %v1112, %v1112
  %v1129 = vcombine.high %v1119, %v1119
  %v1130 = vcombine.high %v1126, %v1126
  %v1131 = vcombine.high %v123, %v123
  %v1133 = vunpack.c.l.s4 1966171168
  %v1134 = vunpack.c.0.s8 %v1133
  %v1135 = vlaneseq
  %v1136 = vshrl.u32 %v1135, 7
  %v1137 = vsub.s32 %v1134, %v1136
  %v1138 = vrot.slane %v123, %v1137
  %v1140 = vunpack.c.l.s4 1966171168
  %v1141 = vunpack.c.0.s8 %v1140
  %v1142 = vlaneseq
  %v1143 = vshrl.u32 %v1142, 7
  %v1144 = vsub.s32 %v1141, %v1143
  %v1145 = vrot.slane %v1131, %v1144
  %v1146 = vcombine.high %v1138, %v1138
  %v1147 = vcombine.high %v1145, %v1145
  %v1149 = vunpack.c.l.s4 1966171168
  %v1150 = vunpack.c.0.s8 %v1149
  %v1151 = vlaneseq
  %v1152 = vshrl.u32 %v1151, 7
  %v1153 = vsub.s32 %v1150, %v1152
  %v1154 = vrot.slane %v1138, %v1153
  %v1156 = vunpack.c.l.s4 1966171168
  %v1157 = vunpack.c.0.s8 %v1156
  %v1158 = vlaneseq
  %v1159 = vshrl.u32 %v1158, 7
  %v1160 = vsub.s32 %v1157, %v1159
  %v1161 = vrot.slane %v1145, %v1160
  %v1163 = vunpack.c.l.s4 1966171168
  %v1164 = vunpack.c.0.s8 %v1163
  %v1165 = vlaneseq
  %v1166 = vshrl.u32 %v1165, 7
  %v1167 = vsub.s32 %v1164, %v1166
  %v1168 = vrot.slane %v1146, %v1167
  %v1170 = vunpack.c.l.s4 1966171168
  %v1171 = vunpack.c.0.s8 %v1170
  %v1172 = vlaneseq
  %v1173 = vshrl.u32 %v1172, 7
  %v1174 = vsub.s32 %v1171, %v1173
  %v1175 = vrot.slane %v1147, %v1174
  %v1176 = vcombine.high %v1154, %v1154
  %v1177 = vcombine.high %v1161, %v1161
  %v1178 = vcombine.high %v1168, %v1168
  %v1179 = vcombine.high %v1175, %v1175
  %v1180 = vcombine.high %v124, %v124
  %v1182 = vunpack.c.l.s4 1966171168
  %v1183 = vunpack.c.0.s8 %v1182
  %v1184 = vlaneseq
  %v1185 = vshrl.u32 %v1184, 7
  %v1186 = vsub.s32 %v1183, %v1185
  %v1187 = vrot.slane %v124, %v1186
  %v1189 = vunpack.c.l.s4 1966171168
  %v1190 = vunpack.c.0.s8 %v1189
  %v1191 = vlaneseq
  %v1192 = vshrl.u32 %v1191, 7
  %v1193 = vsub.s32 %v1190, %v1192
  %v1194 = vrot.slane %v1180, %v1193
  %v1195 = vcombine.high %v1187, %v1187
  %v1196 = vcombine.high %v1194, %v1194
  %v1198 = vunpack.c.l.s4 1966171168
  %v1199 = vunpack.c.0.s8 %v1198
  %v1200 = vlaneseq
  %v1201 = vshrl.u32 %v1200, 7
  %v1202 = vsub.s32 %v1199, %v1201
  %v1203 = vrot.slane %v1187, %v1202
  %v1205 = vunpack.c.l.s4 1966171168
  %v1206 = vunpack.c.0.s8 %v1205
  %v1207 = vlaneseq
  %v1208 = vshrl.u32 %v1207, 7
  %v1209 = vsub.s32 %v1206, %v1208
  %v1210 = vrot.slane %v1194, %v1209
  %v1212 = vunpack.c.l.s4 1966171168
  %v1213 = vunpack.c.0.s8 %v1212
  %v1214 = vlaneseq
  %v1215 = vshrl.u32 %v1214, 7
  %v1216 = vsub.s32 %v1213, %v1215
  %v1217 = vrot.slane %v1195, %v1216
  %v1219 = vunpack.c.l.s4 1966171168
  %v1220 = vunpack.c.0.s8 %v1219
  %v1221 = vlaneseq
  %v1222 = vshrl.u32 %v1221, 7
  %v1223 = vsub.s32 %v1220, %v1222
  %v1224 = vrot.slane %v1196, %v1223
  %v1225 = vcombine.high %v1203, %v1203
  %v1226 = vcombine.high %v1210, %v1210
  %v1227 = vcombine.high %v1217, %v1217
  %v1228 = vcombine.high %v1224, %v1224
  %v1230 = vunpack.c.l.s4 1966171168
  %v1231 = vunpack.c.0.s8 %v1230
  %v1232 = vlaneseq
  %v1233 = vshrl.u32 %v1232, 7
  %v1234 = vsub.s32 %v1231, %v1233
  %v1235 = vrot.slane %v125, %v1234
  %v1236 = vcombine.high %v1235, %v1235
  %v1238 = vunpack.c.l.s4 1966171168
  %v1239 = vunpack.c.0.s8 %v1238
  %v1240 = vlaneseq
  %v1241 = vshrl.u32 %v1240, 7
  %v1242 = vsub.s32 %v1239, %v1241
  %v1243 = vrot.slane %v1235, %v1242
  %v1245 = vunpack.c.l.s4 1966171168
  %v1246 = vunpack.c.0.s8 %v1245
  %v1247 = vlaneseq
  %v1248 = vshrl.u32 %v1247, 7
  %v1249 = vsub.s32 %v1246, %v1248
  %v1250 = vrot.slane %v1236, %v1249
  %1349 = vmatprep.subr.bf16.mxu0 0
  %1350 = vmatpush1.bf16.xpose.msra.mxu0 0
  %1351 = vmatprep.subr.bf16.mxu0 0
  %1352 = vmatpush1.bf16.xpose.msra.mxu0 0
  %1353 = vmatprep.subr.bf16.mxu0 0
  %1354 = vmatpush1.bf16.xpose.msra.mxu0 0
  %1355 = vmatprep.subr.bf16.mxu0 0
  %1356 = vmatpush1.bf16.xpose.msra.mxu0 0
  %1357 = vmatprep.subr.bf16.mxu0 0
  %1358 = vmatpush1.bf16.xpose.msra.mxu0 0
  %1359 = vmatprep.subr.bf16.mxu0 0
  %1360 = vmatpush1.bf16.xpose.msra.mxu0 0
  %1361 = vmatprep.subr.bf16.mxu0 0
  %1362 = vmatpush1.bf16.xpose.msra.mxu0 0
  %1363 = vmatprep.subr.bf16.mxu0 %v678
  %1364 = vmatpush1.bf16.xpose.msra.mxu0 %v664
  %1365 = vmatprep.subr.bf16.mxu0 0
  %1366 = vmatpush2.bf16.xpose.msra.mxu0 0
  %1367 = vmatprep.subr.bf16.mxu0 0
  %1368 = vmatpush2.bf16.xpose.msra.mxu0 0
  %1369 = vmatprep.subr.bf16.mxu0 0
  %1370 = vmatpush2.bf16.xpose.msra.mxu0 0
  %1371 = vmatprep.subr.bf16.mxu0 0
  %1372 = vmatpush2.bf16.xpose.msra.mxu0 0
  %1373 = vmatprep.subr.bf16.mxu0 0
  %1374 = vmatpush2.bf16.xpose.msra.mxu0 0
  %1375 = vmatprep.subr.bf16.mxu0 0
  %1376 = vmatpush2.bf16.xpose.msra.mxu0 0
  %1377 = vmatprep.subr.bf16.mxu0 0
  %1378 = vmatpush2.bf16.xpose.msra.mxu0 0
  %1379 = vmatprep.subr.bf16.mxu0 0
  %1380 = vmatpush2.bf16.xpose.msra.mxu0 0
  %1381 = vmatprep.mubr.bf16.mxu0 %v433
  %1382 = vmatmul.mubr.bf16.gmra.mxu0 %v432
  %v1383 = vpop.f32.mrf.mxu0
  %v1384 = vadd.f32 %v131, %v1383
  %v1385 = vpop.f32.mrf.mxu0
  %v1386 = vpop.f32.mrf.mxu0
  %v1387 = vadd.f32 %v136, %v1386
  %v1388 = vpop.f32.mrf.mxu0
  %1389 = vdwg.mxu0
  %1390 = vmatprep.subr.bf16.mxu0 0
  %1391 = vmatpush1.bf16.xpose.msra.mxu0 0
  %1392 = vmatprep.subr.bf16.mxu0 0
  %1393 = vmatpush1.bf16.xpose.msra.mxu0 0
  %1394 = vmatprep.subr.bf16.mxu0 0
  %1395 = vmatpush1.bf16.xpose.msra.mxu0 0
  %1396 = vmatprep.subr.bf16.mxu0 0
  %1397 = vmatpush1.bf16.xpose.msra.mxu0 0
  %1398 = vmatprep.subr.bf16.mxu0 0
  %1399 = vmatpush1.bf16.xpose.msra.mxu0 0
  %1400 = vmatprep.subr.bf16.mxu0 0
  %1401 = vmatpush1.bf16.xpose.msra.mxu0 0
  %1402 = vmatprep.subr.bf16.mxu0 0
  %1403 = vmatpush1.bf16.xpose.msra.mxu0 0
  %1404 = vmatprep.subr.bf16.mxu0 %v688
  %1405 = vmatpush1.bf16.xpose.msra.mxu0 %v686
  %1406 = vmatprep.subr.bf16.mxu0 0
  %1407 = vmatpush2.bf16.xpose.msra.mxu0 0
  %1408 = vmatprep.subr.bf16.mxu0 0
  %1409 = vmatpush2.bf16.xpose.msra.mxu0 0
  %1410 = vmatprep.subr.bf16.mxu0 0
  %1411 = vmatpush2.bf16.xpose.msra.mxu0 0
  %1412 = vmatprep.subr.bf16.mxu0 0
  %1413 = vmatpush2.bf16.xpose.msra.mxu0 0
  %1414 = vmatprep.subr.bf16.mxu0 0
  %1415 = vmatpush2.bf16.xpose.msra.mxu0 0
  %1416 = vmatprep.subr.bf16.mxu0 0
  %1417 = vmatpush2.bf16.xpose.msra.mxu0 0
  %1418 = vmatprep.subr.bf16.mxu0 0
  %1419 = vmatpush2.bf16.xpose.msra.mxu0 0
  %1420 = vmatprep.subr.bf16.mxu0 0
  %1421 = vmatpush2.bf16.xpose.msra.mxu0 0
  %1422 = vmatprep.mubr.bf16.mxu0 %v435
  %1423 = vmatmul.mubr.bf16.gmra.mxu0 %v434
  %v1424 = vpop.f32.mrf.mxu0
  %v1425 = vadd.f32 %v1384, %v1424
  %v1426 = vpop.f32.mrf.mxu0
  %v1427 = vpop.f32.mrf.mxu0
  %v1428 = vadd.f32 %v1387, %v1427
  %v1429 = vpop.f32.mrf.mxu0
  %1430 = vdwg.mxu0
  %1431 = vmatprep.subr.bf16.mxu0 0
  %1432 = vmatpush1.bf16.xpose.msra.mxu0 0
  %1433 = vmatprep.subr.bf16.mxu0 0
  %1434 = vmatpush1.bf16.xpose.msra.mxu0 0
  %1435 = vmatprep.subr.bf16.mxu0 0
  %1436 = vmatpush1.bf16.xpose.msra.mxu0 0
  %1437 = vmatprep.subr.bf16.mxu0 0
  %1438 = vmatpush1.bf16.xpose.msra.mxu0 0
  %1439 = vmatprep.subr.bf16.mxu0 0
  %1440 = vmatpush1.bf16.xpose.msra.mxu0 0
  %1441 = vmatprep.subr.bf16.mxu0 0
  %1442 = vmatpush1.bf16.xpose.msra.mxu0 0
  %1443 = vmatprep.subr.bf16.mxu0 0
  %1444 = vmatpush1.bf16.xpose.msra.mxu0 0
  %1445 = vmatprep.subr.bf16.mxu0 %v685
  %1446 = vmatpush1.bf16.xpose.msra.mxu0 %v671
  %1447 = vmatprep.subr.bf16.mxu0 0
  %1448 = vmatpush2.bf16.xpose.msra.mxu0 0
  %1449 = vmatprep.subr.bf16.mxu0 0
  %1450 = vmatpush2.bf16.xpose.msra.mxu0 0
  %1451 = vmatprep.subr.bf16.mxu0 0
  %1452 = vmatpush2.bf16.xpose.msra.mxu0 0
  %1453 = vmatprep.subr.bf16.mxu0 0
  %1454 = vmatpush2.bf16.xpose.msra.mxu0 0
  %1455 = vmatprep.subr.bf16.mxu0 0
  %1456 = vmatpush2.bf16.xpose.msra.mxu0 0
  %1457 = vmatprep.subr.bf16.mxu0 0
  %1458 = vmatpush2.bf16.xpose.msra.mxu0 0
  %1459 = vmatprep.subr.bf16.mxu0 0
  %1460 = vmatpush2.bf16.xpose.msra.mxu0 0
  %1461 = vmatprep.subr.bf16.mxu0 0
  %1462 = vmatpush2.bf16.xpose.msra.mxu0 0
  %1463 = vmatprep.mubr.bf16.mxu0 %v437
  %1464 = vmatmul.mubr.bf16.gmra.mxu0 %v436
  %v1465 = vpop.f32.mrf.mxu0
  %v1466 = vadd.f32 %v1425, %v1465
  %v1467 = vpop.f32.mrf.mxu0
  %v1468 = vpop.f32.mrf.mxu0
  %v1469 = vadd.f32 %v1428, %v1468
  %v1470 = vpop.f32.mrf.mxu0
  %1471 = vdwg.mxu0
  %1472 = vmatprep.subr.bf16.mxu0 0
  %1473 = vmatpush1.bf16.xpose.msra.mxu0 0
  %1474 = vmatprep.subr.bf16.mxu0 0
  %1475 = vmatpush1.bf16.xpose.msra.mxu0 0
  %1476 = vmatprep.subr.bf16.mxu0 0
  %1477 = vmatpush1.bf16.xpose.msra.mxu0 0
  %1478 = vmatprep.subr.bf16.mxu0 0
  %1479 = vmatpush1.bf16.xpose.msra.mxu0 0
  %1480 = vmatprep.subr.bf16.mxu0 0
  %1481 = vmatpush1.bf16.xpose.msra.mxu0 0
  %1482 = vmatprep.subr.bf16.mxu0 0
  %1483 = vmatpush1.bf16.xpose.msra.mxu0 0
  %1484 = vmatprep.subr.bf16.mxu0 0
  %1485 = vmatpush1.bf16.xpose.msra.mxu0 0
  %1486 = vmatprep.subr.bf16.mxu0 %v689
  %1487 = vmatpush1.bf16.xpose.msra.mxu0 %v687
  %1488 = vmatprep.subr.bf16.mxu0 0
  %1489 = vmatpush2.bf16.xpose.msra.mxu0 0
  %1490 = vmatprep.subr.bf16.mxu0 0
  %1491 = vmatpush2.bf16.xpose.msra.mxu0 0
  %1492 = vmatprep.subr.bf16.mxu0 0
  %1493 = vmatpush2.bf16.xpose.msra.mxu0 0
  %1494 = vmatprep.subr.bf16.mxu0 0
  %1495 = vmatpush2.bf16.xpose.msra.mxu0 0
  %1496 = vmatprep.subr.bf16.mxu0 0
  %1497 = vmatpush2.bf16.xpose.msra.mxu0 0
  %1498 = vmatprep.subr.bf16.mxu0 0
  %1499 = vmatpush2.bf16.xpose.msra.mxu0 0
  %1500 = vmatprep.subr.bf16.mxu0 0
  %1501 = vmatpush2.bf16.xpose.msra.mxu0 0
  %1502 = vmatprep.subr.bf16.mxu0 0
  %1503 = vmatpush2.bf16.xpose.msra.mxu0 0
  %1504 = vmatprep.mubr.bf16.mxu0 %v439
  %1505 = vmatmul.mubr.bf16.gmra.mxu0 %v438
  %v1506 = vpop.f32.mrf.mxu0
  %v1507 = vadd.f32 %v1466, %v1506
  %v1508 = vpop.f32.mrf.mxu0
  %v1509 = vpop.f32.mrf.mxu0
  %v1510 = vadd.f32 %v1469, %v1509
  %v1511 = vpop.f32.mrf.mxu0
  %1512 = vdwg.mxu0
  %1513 = vmatprep.subr.bf16.mxu0 0
  %1514 = vmatpush1.bf16.xpose.msra.mxu0 0
  %1515 = vmatprep.subr.bf16.mxu0 0
  %1516 = vmatpush1.bf16.xpose.msra.mxu0 0
  %1517 = vmatprep.subr.bf16.mxu0 0
  %1518 = vmatpush1.bf16.xpose.msra.mxu0 0
  %1519 = vmatprep.subr.bf16.mxu0 0
  %1520 = vmatpush1.bf16.xpose.msra.mxu0 0
  %1521 = vmatprep.subr.bf16.mxu0 0
  %1522 = vmatpush1.bf16.xpose.msra.mxu0 0
  %1523 = vmatprep.subr.bf16.mxu0 0
  %1524 = vmatpush1.bf16.xpose.msra.mxu0 0
  %1525 = vmatprep.subr.bf16.mxu0 0
  %1526 = vmatpush1.bf16.xpose.msra.mxu0 0
  %1527 = vmatprep.subr.bf16.mxu0 %v727
  %1528 = vmatpush1.bf16.xpose.msra.mxu0 %v713
  %1529 = vmatprep.subr.bf16.mxu0 0
  %1530 = vmatpush2.bf16.xpose.msra.mxu0 0
  %1531 = vmatprep.subr.bf16.mxu0 0
  %1532 = vmatpush2.bf16.xpose.msra.mxu0 0
  %1533 = vmatprep.subr.bf16.mxu0 0
  %1534 = vmatpush2.bf16.xpose.msra.mxu0 0
  %1535 = vmatprep.subr.bf16.mxu0 0
  %1536 = vmatpush2.bf16.xpose.msra.mxu0 0
  %1537 = vmatprep.subr.bf16.mxu0 0
  %1538 = vmatpush2.bf16.xpose.msra.mxu0 0
  %1539 = vmatprep.subr.bf16.mxu0 0
  %1540 = vmatpush2.bf16.xpose.msra.mxu0 0
  %1541 = vmatprep.subr.bf16.mxu0 0
  %1542 = vmatpush2.bf16.xpose.msra.mxu0 0
  %1543 = vmatprep.subr.bf16.mxu0 0
  %1544 = vmatpush2.bf16.xpose.msra.mxu0 0
  %1545 = vmatprep.mubr.bf16.mxu0 %v441
  %1546 = vmatmul.mubr.bf16.gmra.mxu0 %v440
  %v1547 = vpop.f32.mrf.mxu0
  %v1548 = vadd.f32 %v1507, %v1547
  %v1549 = vpop.f32.mrf.mxu0
  %v1550 = vpop.f32.mrf.mxu0
  %v1551 = vadd.f32 %v1510, %v1550
  %v1552 = vpop.f32.mrf.mxu0
  %1553 = vdwg.mxu0
  %1554 = vmatprep.subr.bf16.mxu0 0
  %1555 = vmatpush1.bf16.xpose.msra.mxu0 0
  %1556 = vmatprep.subr.bf16.mxu0 0
  %1557 = vmatpush1.bf16.xpose.msra.mxu0 0
  %1558 = vmatprep.subr.bf16.mxu0 0
  %1559 = vmatpush1.bf16.xpose.msra.mxu0 0
  %1560 = vmatprep.subr.bf16.mxu0 0
  %1561 = vmatpush1.bf16.xpose.msra.mxu0 0
  %1562 = vmatprep.subr.bf16.mxu0 0
  %1563 = vmatpush1.bf16.xpose.msra.mxu0 0
  %1564 = vmatprep.subr.bf16.mxu0 0
  %1565 = vmatpush1.bf16.xpose.msra.mxu0 0
  %1566 = vmatprep.subr.bf16.mxu0 0
  %1567 = vmatpush1.bf16.xpose.msra.mxu0 0
  %1568 = vmatprep.subr.bf16.mxu0 %v737
  %1569 = vmatpush1.bf16.xpose.msra.mxu0 %v735
  %1570 = vmatprep.subr.bf16.mxu0 0
  %1571 = vmatpush2.bf16.xpose.msra.mxu0 0
  %1572 = vmatprep.subr.bf16.mxu0 0
  %1573 = vmatpush2.bf16.xpose.msra.mxu0 0
  %1574 = vmatprep.subr.bf16.mxu0 0
  %1575 = vmatpush2.bf16.xpose.msra.mxu0 0
  %1576 = vmatprep.subr.bf16.mxu0 0
  %1577 = vmatpush2.bf16.xpose.msra.mxu0 0
  %1578 = vmatprep.subr.bf16.mxu0 0
  %1579 = vmatpush2.bf16.xpose.msra.mxu0 0
  %1580 = vmatprep.subr.bf16.mxu0 0
  %1581 = vmatpush2.bf16.xpose.msra.mxu0 0
  %1582 = vmatprep.subr.bf16.mxu0 0
  %1583 = vmatpush2.bf16.xpose.msra.mxu0 0
  %1584 = vmatprep.subr.bf16.mxu0 0
  %1585 = vmatpush2.bf16.xpose.msra.mxu0 0
  %1586 = vmatprep.mubr.bf16.mxu0 %v443
  %1587 = vmatmul.mubr.bf16.gmra.mxu0 %v442
  %v1588 = vpop.f32.mrf.mxu0
  %v1589 = vadd.f32 %v1548, %v1588
  %v1590 = vpop.f32.mrf.mxu0
  %v1591 = vpop.f32.mrf.mxu0
  %v1592 = vadd.f32 %v1551, %v1591
  %v1593 = vpop.f32.mrf.mxu0
  %1594 = vdwg.mxu0
  %1595 = vmatprep.subr.bf16.mxu0 0
  %1596 = vmatpush1.bf16.xpose.msra.mxu0 0
  %1597 = vmatprep.subr.bf16.mxu0 0
  %1598 = vmatpush1.bf16.xpose.msra.mxu0 0
  %1599 = vmatprep.subr.bf16.mxu0 0
  %1600 = vmatpush1.bf16.xpose.msra.mxu0 0
  %1601 = vmatprep.subr.bf16.mxu0 0
  %1602 = vmatpush1.bf16.xpose.msra.mxu0 0
  %1603 = vmatprep.subr.bf16.mxu0 0
  %1604 = vmatpush1.bf16.xpose.msra.mxu0 0
  %1605 = vmatprep.subr.bf16.mxu0 0
  %1606 = vmatpush1.bf16.xpose.msra.mxu0 0
  %1607 = vmatprep.subr.bf16.mxu0 0
  %1608 = vmatpush1.bf16.xpose.msra.mxu0 0
  %1609 = vmatprep.subr.bf16.mxu0 %v734
  %1610 = vmatpush1.bf16.xpose.msra.mxu0 %v720
  %1611 = vmatprep.subr.bf16.mxu0 0
  %1612 = vmatpush2.bf16.xpose.msra.mxu0 0
  %1613 = vmatprep.subr.bf16.mxu0 0
  %1614 = vmatpush2.bf16.xpose.msra.mxu0 0
  %1615 = vmatprep.subr.bf16.mxu0 0
  %1616 = vmatpush2.bf16.xpose.msra.mxu0 0
  %1617 = vmatprep.subr.bf16.mxu0 0
  %1618 = vmatpush2.bf16.xpose.msra.mxu0 0
  %1619 = vmatprep.subr.bf16.mxu0 0
  %1620 = vmatpush2.bf16.xpose.msra.mxu0 0
  %1621 = vmatprep.subr.bf16.mxu0 0
  %1622 = vmatpush2.bf16.xpose.msra.mxu0 0
  %1623 = vmatprep.subr.bf16.mxu0 0
  %1624 = vmatpush2.bf16.xpose.msra.mxu0 0
  %1625 = vmatprep.subr.bf16.mxu0 0
  %1626 = vmatpush2.bf16.xpose.msra.mxu0 0
  %1627 = vmatprep.mubr.bf16.mxu0 %v445
  %1628 = vmatmul.mubr.bf16.gmra.mxu0 %v444
  %v1629 = vpop.f32.mrf.mxu0
  %v1630 = vadd.f32 %v1589, %v1629
  %v1631 = vpop.f32.mrf.mxu0
  %v1632 = vpop.f32.mrf.mxu0
  %v1633 = vadd.f32 %v1592, %v1632
  %v1634 = vpop.f32.mrf.mxu0
  %1635 = vdwg.mxu0
  %1636 = vmatprep.subr.bf16.mxu0 0
  %1637 = vmatpush1.bf16.xpose.msra.mxu0 0
  %1638 = vmatprep.subr.bf16.mxu0 0
  %1639 = vmatpush1.bf16.xpose.msra.mxu0 0
  %1640 = vmatprep.subr.bf16.mxu0 0
  %1641 = vmatpush1.bf16.xpose.msra.mxu0 0
  %1642 = vmatprep.subr.bf16.mxu0 0
  %1643 = vmatpush1.bf16.xpose.msra.mxu0 0
  %1644 = vmatprep.subr.bf16.mxu0 0
  %1645 = vmatpush1.bf16.xpose.msra.mxu0 0
  %1646 = vmatprep.subr.bf16.mxu0 0
  %1647 = vmatpush1.bf16.xpose.msra.mxu0 0
  %1648 = vmatprep.subr.bf16.mxu0 0
  %1649 = vmatpush1.bf16.xpose.msra.mxu0 0
  %1650 = vmatprep.subr.bf16.mxu0 %v738
  %1651 = vmatpush1.bf16.xpose.msra.mxu0 %v736
  %1652 = vmatprep.subr.bf16.mxu0 0
  %1653 = vmatpush2.bf16.xpose.msra.mxu0 0
  %1654 = vmatprep.subr.bf16.mxu0 0
  %1655 = vmatpush2.bf16.xpose.msra.mxu0 0
  %1656 = vmatprep.subr.bf16.mxu0 0
  %1657 = vmatpush2.bf16.xpose.msra.mxu0 0
  %1658 = vmatprep.subr.bf16.mxu0 0
  %1659 = vmatpush2.bf16.xpose.msra.mxu0 0
  %1660 = vmatprep.subr.bf16.mxu0 0
  %1661 = vmatpush2.bf16.xpose.msra.mxu0 0
  %1662 = vmatprep.subr.bf16.mxu0 0
  %1663 = vmatpush2.bf16.xpose.msra.mxu0 0
  %1664 = vmatprep.subr.bf16.mxu0 0
  %1665 = vmatpush2.bf16.xpose.msra.mxu0 0
  %1666 = vmatprep.subr.bf16.mxu0 0
  %1667 = vmatpush2.bf16.xpose.msra.mxu0 0
  %1668 = vmatprep.mubr.bf16.mxu0 %v447
  %1669 = vmatmul.mubr.bf16.gmra.mxu0 %v446
  %v1670 = vpop.f32.mrf.mxu0
  %v1671 = vadd.f32 %v1630, %v1670
  %v1672 = vpop.f32.mrf.mxu0
  %v1673 = vpop.f32.mrf.mxu0
  %v1674 = vadd.f32 %v1633, %v1673
  %v1675 = vpop.f32.mrf.mxu0
  %1676 = vdwg.mxu0
  %1677 = vmatprep.subr.bf16.mxu0 0
  %1678 = vmatpush1.bf16.xpose.msra.mxu0 0
  %1679 = vmatprep.subr.bf16.mxu0 0
  %1680 = vmatpush1.bf16.xpose.msra.mxu0 0
  %1681 = vmatprep.subr.bf16.mxu0 0
  %1682 = vmatpush1.bf16.xpose.msra.mxu0 0
  %1683 = vmatprep.subr.bf16.mxu0 0
  %1684 = vmatpush1.bf16.xpose.msra.mxu0 0
  %1685 = vmatprep.subr.bf16.mxu0 0
  %1686 = vmatpush1.bf16.xpose.msra.mxu0 0
  %1687 = vmatprep.subr.bf16.mxu0 0
  %1688 = vmatpush1.bf16.xpose.msra.mxu0 0
  %1689 = vmatprep.subr.bf16.mxu0 0
  %1690 = vmatpush1.bf16.xpose.msra.mxu0 0
  %1691 = vmatprep.subr.bf16.mxu0 %v776
  %1692 = vmatpush1.bf16.xpose.msra.mxu0 %v762
  %1693 = vmatprep.subr.bf16.mxu0 0
  %1694 = vmatpush2.bf16.xpose.msra.mxu0 0
  %1695 = vmatprep.subr.bf16.mxu0 0
  %1696 = vmatpush2.bf16.xpose.msra.mxu0 0
  %1697 = vmatprep.subr.bf16.mxu0 0
  %1698 = vmatpush2.bf16.xpose.msra.mxu0 0
  %1699 = vmatprep.subr.bf16.mxu0 0
  %1700 = vmatpush2.bf16.xpose.msra.mxu0 0
  %1701 = vmatprep.subr.bf16.mxu0 0
  %1702 = vmatpush2.bf16.xpose.msra.mxu0 0
  %1703 = vmatprep.subr.bf16.mxu0 0
  %1704 = vmatpush2.bf16.xpose.msra.mxu0 0
  %1705 = vmatprep.subr.bf16.mxu0 0
  %1706 = vmatpush2.bf16.xpose.msra.mxu0 0
  %1707 = vmatprep.subr.bf16.mxu0 0
  %1708 = vmatpush2.bf16.xpose.msra.mxu0 0
  %1709 = vmatprep.mubr.bf16.mxu0 %v449
  %1710 = vmatmul.mubr.bf16.gmra.mxu0 %v448
  %v1711 = vpop.f32.mrf.mxu0
  %v1712 = vadd.f32 %v1671, %v1711
  %v1713 = vpop.f32.mrf.mxu0
  %v1714 = vpop.f32.mrf.mxu0
  %v1715 = vadd.f32 %v1674, %v1714
  %v1716 = vpop.f32.mrf.mxu0
  %1717 = vdwg.mxu0
  %1718 = vmatprep.subr.bf16.mxu0 0
  %1719 = vmatpush1.bf16.xpose.msra.mxu0 0
  %1720 = vmatprep.subr.bf16.mxu0 0
  %1721 = vmatpush1.bf16.xpose.msra.mxu0 0
  %1722 = vmatprep.subr.bf16.mxu0 0
  %1723 = vmatpush1.bf16.xpose.msra.mxu0 0
  %1724 = vmatprep.subr.bf16.mxu0 0
  %1725 = vmatpush1.bf16.xpose.msra.mxu0 0
  %1726 = vmatprep.subr.bf16.mxu0 0
  %1727 = vmatpush1.bf16.xpose.msra.mxu0 0
  %1728 = vmatprep.subr.bf16.mxu0 0
  %1729 = vmatpush1.bf16.xpose.msra.mxu0 0
  %1730 = vmatprep.subr.bf16.mxu0 0
  %1731 = vmatpush1.bf16.xpose.msra.mxu0 0
  %1732 = vmatprep.subr.bf16.mxu0 %v786
  %1733 = vmatpush1.bf16.xpose.msra.mxu0 %v784
  %1734 = vmatprep.subr.bf16.mxu0 0
  %1735 = vmatpush2.bf16.xpose.msra.mxu0 0
  %1736 = vmatprep.subr.bf16.mxu0 0
  %1737 = vmatpush2.bf16.xpose.msra.mxu0 0
  %1738 = vmatprep.subr.bf16.mxu0 0
  %1739 = vmatpush2.bf16.xpose.msra.mxu0 0
  %1740 = vmatprep.subr.bf16.mxu0 0
  %1741 = vmatpush2.bf16.xpose.msra.mxu0 0
  %1742 = vmatprep.subr.bf16.mxu0 0
  %1743 = vmatpush2.bf16.xpose.msra.mxu0 0
  %1744 = vmatprep.subr.bf16.mxu0 0
  %1745 = vmatpush2.bf16.xpose.msra.mxu0 0
  %1746 = vmatprep.subr.bf16.mxu0 0
  %1747 = vmatpush2.bf16.xpose.msra.mxu0 0
  %1748 = vmatprep.subr.bf16.mxu0 0
  %1749 = vmatpush2.bf16.xpose.msra.mxu0 0
  %1750 = vmatprep.mubr.bf16.mxu0 %v451
  %1751 = vmatmul.mubr.bf16.gmra.mxu0 %v450
  %v1752 = vpop.f32.mrf.mxu0
  %v1753 = vadd.f32 %v1712, %v1752
  %v1754 = vpop.f32.mrf.mxu0
  %v1755 = vpop.f32.mrf.mxu0
  %v1756 = vadd.f32 %v1715, %v1755
  %v1757 = vpop.f32.mrf.mxu0
  %1758 = vdwg.mxu0
  %1759 = vmatprep.subr.bf16.mxu0 0
  %1760 = vmatpush1.bf16.xpose.msra.mxu0 0
  %1761 = vmatprep.subr.bf16.mxu0 0
  %1762 = vmatpush1.bf16.xpose.msra.mxu0 0
  %1763 = vmatprep.subr.bf16.mxu0 0
  %1764 = vmatpush1.bf16.xpose.msra.mxu0 0
  %1765 = vmatprep.subr.bf16.mxu0 0
  %1766 = vmatpush1.bf16.xpose.msra.mxu0 0
  %1767 = vmatprep.subr.bf16.mxu0 0
  %1768 = vmatpush1.bf16.xpose.msra.mxu0 0
  %1769 = vmatprep.subr.bf16.mxu0 0
  %1770 = vmatpush1.bf16.xpose.msra.mxu0 0
  %1771 = vmatprep.subr.bf16.mxu0 0
  %1772 = vmatpush1.bf16.xpose.msra.mxu0 0
  %1773 = vmatprep.subr.bf16.mxu0 %v783
  %1774 = vmatpush1.bf16.xpose.msra.mxu0 %v769
  %1775 = vmatprep.subr.bf16.mxu0 0
  %1776 = vmatpush2.bf16.xpose.msra.mxu0 0
  %1777 = vmatprep.subr.bf16.mxu0 0
  %1778 = vmatpush2.bf16.xpose.msra.mxu0 0
  %1779 = vmatprep.subr.bf16.mxu0 0
  %1780 = vmatpush2.bf16.xpose.msra.mxu0 0
  %1781 = vmatprep.subr.bf16.mxu0 0
  %1782 = vmatpush2.bf16.xpose.msra.mxu0 0
  %1783 = vmatprep.subr.bf16.mxu0 0
  %1784 = vmatpush2.bf16.xpose.msra.mxu0 0
  %1785 = vmatprep.subr.bf16.mxu0 0
  %1786 = vmatpush2.bf16.xpose.msra.mxu0 0
  %1787 = vmatprep.subr.bf16.mxu0 0
  %1788 = vmatpush2.bf16.xpose.msra.mxu0 0
  %1789 = vmatprep.subr.bf16.mxu0 0
  %1790 = vmatpush2.bf16.xpose.msra.mxu0 0
  %1791 = vmatprep.mubr.bf16.mxu0 %v453
  %1792 = vmatmul.mubr.bf16.gmra.mxu0 %v452
  %v1793 = vpop.f32.mrf.mxu0
  %v1794 = vadd.f32 %v1753, %v1793
  %v1795 = vpop.f32.mrf.mxu0
  %v1796 = vpop.f32.mrf.mxu0
  %v1797 = vadd.f32 %v1756, %v1796
  %v1798 = vpop.f32.mrf.mxu0
  %1799 = vdwg.mxu0
  %1800 = vmatprep.subr.bf16.mxu0 0
  %1801 = vmatpush1.bf16.xpose.msra.mxu0 0
  %1802 = vmatprep.subr.bf16.mxu0 0
  %1803 = vmatpush1.bf16.xpose.msra.mxu0 0
  %1804 = vmatprep.subr.bf16.mxu0 0
  %1805 = vmatpush1.bf16.xpose.msra.mxu0 0
  %1806 = vmatprep.subr.bf16.mxu0 0
  %1807 = vmatpush1.bf16.xpose.msra.mxu0 0
  %1808 = vmatprep.subr.bf16.mxu0 0
  %1809 = vmatpush1.bf16.xpose.msra.mxu0 0
  %1810 = vmatprep.subr.bf16.mxu0 0
  %1811 = vmatpush1.bf16.xpose.msra.mxu0 0
  %1812 = vmatprep.subr.bf16.mxu0 0
  %1813 = vmatpush1.bf16.xpose.msra.mxu0 0
  %1814 = vmatprep.subr.bf16.mxu0 %v787
  %1815 = vmatpush1.bf16.xpose.msra.mxu0 %v785
  %1816 = vmatprep.subr.bf16.mxu0 0
  %1817 = vmatpush2.bf16.xpose.msra.mxu0 0
  %1818 = vmatprep.subr.bf16.mxu0 0
  %1819 = vmatpush2.bf16.xpose.msra.mxu0 0
  %1820 = vmatprep.subr.bf16.mxu0 0
  %1821 = vmatpush2.bf16.xpose.msra.mxu0 0
  %1822 = vmatprep.subr.bf16.mxu0 0
  %1823 = vmatpush2.bf16.xpose.msra.mxu0 0
  %1824 = vmatprep.subr.bf16.mxu0 0
  %1825 = vmatpush2.bf16.xpose.msra.mxu0 0
  %1826 = vmatprep.subr.bf16.mxu0 0
  %1827 = vmatpush2.bf16.xpose.msra.mxu0 0
  %1828 = vmatprep.subr.bf16.mxu0 0
  %1829 = vmatpush2.bf16.xpose.msra.mxu0 0
  %1830 = vmatprep.subr.bf16.mxu0 0
  %1831 = vmatpush2.bf16.xpose.msra.mxu0 0
  %1832 = vmatprep.mubr.bf16.mxu0 %v455
  %1833 = vmatmul.mubr.bf16.gmra.mxu0 %v454
  %v1834 = vpop.f32.mrf.mxu0
  %v1835 = vadd.f32 %v1794, %v1834
  %v1836 = vpop.f32.mrf.mxu0
  %v1837 = vpop.f32.mrf.mxu0
  %v1838 = vadd.f32 %v1797, %v1837
  %v1839 = vpop.f32.mrf.mxu0
  %1840 = vdwg.mxu0
  %1841 = vmatprep.subr.bf16.mxu0 0
  %1842 = vmatpush1.bf16.xpose.msra.mxu0 0
  %1843 = vmatprep.subr.bf16.mxu0 0
  %1844 = vmatpush1.bf16.xpose.msra.mxu0 0
  %1845 = vmatprep.subr.bf16.mxu0 0
  %1846 = vmatpush1.bf16.xpose.msra.mxu0 0
  %1847 = vmatprep.subr.bf16.mxu0 0
  %1848 = vmatpush1.bf16.xpose.msra.mxu0 0
  %1849 = vmatprep.subr.bf16.mxu0 0
  %1850 = vmatpush1.bf16.xpose.msra.mxu0 0
  %1851 = vmatprep.subr.bf16.mxu0 0
  %1852 = vmatpush1.bf16.xpose.msra.mxu0 0
  %1853 = vmatprep.subr.bf16.mxu0 0
  %1854 = vmatpush1.bf16.xpose.msra.mxu0 0
  %1855 = vmatprep.subr.bf16.mxu0 %v825
  %1856 = vmatpush1.bf16.xpose.msra.mxu0 %v811
  %1857 = vmatprep.subr.bf16.mxu0 0
  %1858 = vmatpush2.bf16.xpose.msra.mxu0 0
  %1859 = vmatprep.subr.bf16.mxu0 0
  %1860 = vmatpush2.bf16.xpose.msra.mxu0 0
  %1861 = vmatprep.subr.bf16.mxu0 0
  %1862 = vmatpush2.bf16.xpose.msra.mxu0 0
  %1863 = vmatprep.subr.bf16.mxu0 0
  %1864 = vmatpush2.bf16.xpose.msra.mxu0 0
  %1865 = vmatprep.subr.bf16.mxu0 0
  %1866 = vmatpush2.bf16.xpose.msra.mxu0 0
  %1867 = vmatprep.subr.bf16.mxu0 0
  %1868 = vmatpush2.bf16.xpose.msra.mxu0 0
  %1869 = vmatprep.subr.bf16.mxu0 0
  %1870 = vmatpush2.bf16.xpose.msra.mxu0 0
  %1871 = vmatprep.subr.bf16.mxu0 0
  %1872 = vmatpush2.bf16.xpose.msra.mxu0 0
  %1873 = vmatprep.mubr.bf16.mxu0 %v457
  %1874 = vmatmul.mubr.bf16.gmra.mxu0 %v456
  %v1875 = vpop.f32.mrf.mxu0
  %v1876 = vadd.f32 %v1835, %v1875
  %v1877 = vpop.f32.mrf.mxu0
  %v1878 = vpop.f32.mrf.mxu0
  %v1879 = vadd.f32 %v1838, %v1878
  %v1880 = vpop.f32.mrf.mxu0
  %1881 = vdwg.mxu0
  %1882 = vmatprep.subr.bf16.mxu0 0
  %1883 = vmatpush1.bf16.xpose.msra.mxu0 0
  %1884 = vmatprep.subr.bf16.mxu0 0
  %1885 = vmatpush1.bf16.xpose.msra.mxu0 0
  %1886 = vmatprep.subr.bf16.mxu0 0
  %1887 = vmatpush1.bf16.xpose.msra.mxu0 0
  %1888 = vmatprep.subr.bf16.mxu0 0
  %1889 = vmatpush1.bf16.xpose.msra.mxu0 0
  %1890 = vmatprep.subr.bf16.mxu0 0
  %1891 = vmatpush1.bf16.xpose.msra.mxu0 0
  %1892 = vmatprep.subr.bf16.mxu0 0
  %1893 = vmatpush1.bf16.xpose.msra.mxu0 0
  %1894 = vmatprep.subr.bf16.mxu0 0
  %1895 = vmatpush1.bf16.xpose.msra.mxu0 0
  %1896 = vmatprep.subr.bf16.mxu0 %v835
  %1897 = vmatpush1.bf16.xpose.msra.mxu0 %v833
  %1898 = vmatprep.subr.bf16.mxu0 0
  %1899 = vmatpush2.bf16.xpose.msra.mxu0 0
  %1900 = vmatprep.subr.bf16.mxu0 0
  %1901 = vmatpush2.bf16.xpose.msra.mxu0 0
  %1902 = vmatprep.subr.bf16.mxu0 0
  %1903 = vmatpush2.bf16.xpose.msra.mxu0 0
  %1904 = vmatprep.subr.bf16.mxu0 0
  %1905 = vmatpush2.bf16.xpose.msra.mxu0 0
  %1906 = vmatprep.subr.bf16.mxu0 0
  %1907 = vmatpush2.bf16.xpose.msra.mxu0 0
  %1908 = vmatprep.subr.bf16.mxu0 0
  %1909 = vmatpush2.bf16.xpose.msra.mxu0 0
  %1910 = vmatprep.subr.bf16.mxu0 0
  %1911 = vmatpush2.bf16.xpose.msra.mxu0 0
  %1912 = vmatprep.subr.bf16.mxu0 0
  %1913 = vmatpush2.bf16.xpose.msra.mxu0 0
  %1914 = vmatprep.mubr.bf16.mxu0 %v459
  %1915 = vmatmul.mubr.bf16.gmra.mxu0 %v458
  %v1916 = vpop.f32.mrf.mxu0
  %v1917 = vadd.f32 %v1876, %v1916
  %v1918 = vpop.f32.mrf.mxu0
  %v1919 = vpop.f32.mrf.mxu0
  %v1920 = vadd.f32 %v1879, %v1919
  %v1921 = vpop.f32.mrf.mxu0
  %1922 = vdwg.mxu0
  %1923 = vmatprep.subr.bf16.mxu0 0
  %1924 = vmatpush1.bf16.xpose.msra.mxu0 0
  %1925 = vmatprep.subr.bf16.mxu0 0
  %1926 = vmatpush1.bf16.xpose.msra.mxu0 0
  %1927 = vmatprep.subr.bf16.mxu0 0
  %1928 = vmatpush1.bf16.xpose.msra.mxu0 0
  %1929 = vmatprep.subr.bf16.mxu0 0
  %1930 = vmatpush1.bf16.xpose.msra.mxu0 0
  %1931 = vmatprep.subr.bf16.mxu0 0
  %1932 = vmatpush1.bf16.xpose.msra.mxu0 0
  %1933 = vmatprep.subr.bf16.mxu0 0
  %1934 = vmatpush1.bf16.xpose.msra.mxu0 0
  %1935 = vmatprep.subr.bf16.mxu0 0
  %1936 = vmatpush1.bf16.xpose.msra.mxu0 0
  %1937 = vmatprep.subr.bf16.mxu0 %v832
  %1938 = vmatpush1.bf16.xpose.msra.mxu0 %v818
  %1939 = vmatprep.subr.bf16.mxu0 0
  %1940 = vmatpush2.bf16.xpose.msra.mxu0 0
  %1941 = vmatprep.subr.bf16.mxu0 0
  %1942 = vmatpush2.bf16.xpose.msra.mxu0 0
  %1943 = vmatprep.subr.bf16.mxu0 0
  %1944 = vmatpush2.bf16.xpose.msra.mxu0 0
  %1945 = vmatprep.subr.bf16.mxu0 0
  %1946 = vmatpush2.bf16.xpose.msra.mxu0 0
  %1947 = vmatprep.subr.bf16.mxu0 0
  %1948 = vmatpush2.bf16.xpose.msra.mxu0 0
  %1949 = vmatprep.subr.bf16.mxu0 0
  %1950 = vmatpush2.bf16.xpose.msra.mxu0 0
  %1951 = vmatprep.subr.bf16.mxu0 0
  %1952 = vmatpush2.bf16.xpose.msra.mxu0 0
  %1953 = vmatprep.subr.bf16.mxu0 0
  %1954 = vmatpush2.bf16.xpose.msra.mxu0 0
  %1955 = vmatprep.mubr.bf16.mxu0 %v461
  %1956 = vmatmul.mubr.bf16.gmra.mxu0 %v460
  %v1957 = vpop.f32.mrf.mxu0
  %v1958 = vadd.f32 %v1917, %v1957
  %v1959 = vpop.f32.mrf.mxu0
  %v1960 = vpop.f32.mrf.mxu0
  %v1961 = vadd.f32 %v1920, %v1960
  %v1962 = vpop.f32.mrf.mxu0
  %1963 = vdwg.mxu0
  %1964 = vmatprep.subr.bf16.mxu0 0
  %1965 = vmatpush1.bf16.xpose.msra.mxu0 0
  %1966 = vmatprep.subr.bf16.mxu0 0
  %1967 = vmatpush1.bf16.xpose.msra.mxu0 0
  %1968 = vmatprep.subr.bf16.mxu0 0
  %1969 = vmatpush1.bf16.xpose.msra.mxu0 0
  %1970 = vmatprep.subr.bf16.mxu0 0
  %1971 = vmatpush1.bf16.xpose.msra.mxu0 0
  %1972 = vmatprep.subr.bf16.mxu0 0
  %1973 = vmatpush1.bf16.xpose.msra.mxu0 0
  %1974 = vmatprep.subr.bf16.mxu0 0
  %1975 = vmatpush1.bf16.xpose.msra.mxu0 0
  %1976 = vmatprep.subr.bf16.mxu0 0
  %1977 = vmatpush1.bf16.xpose.msra.mxu0 0
  %1978 = vmatprep.subr.bf16.mxu0 %v836
  %1979 = vmatpush1.bf16.xpose.msra.mxu0 %v834
  %1980 = vmatprep.subr.bf16.mxu0 0
  %1981 = vmatpush2.bf16.xpose.msra.mxu0 0
  %1982 = vmatprep.subr.bf16.mxu0 0
  %1983 = vmatpush2.bf16.xpose.msra.mxu0 0
  %1984 = vmatprep.subr.bf16.mxu0 0
  %1985 = vmatpush2.bf16.xpose.msra.mxu0 0
  %1986 = vmatprep.subr.bf16.mxu0 0
  %1987 = vmatpush2.bf16.xpose.msra.mxu0 0
  %1988 = vmatprep.subr.bf16.mxu0 0
  %1989 = vmatpush2.bf16.xpose.msra.mxu0 0
  %1990 = vmatprep.subr.bf16.mxu0 0
  %1991 = vmatpush2.bf16.xpose.msra.mxu0 0
  %1992 = vmatprep.subr.bf16.mxu0 0
  %1993 = vmatpush2.bf16.xpose.msra.mxu0 0
  %1994 = vmatprep.subr.bf16.mxu0 0
  %1995 = vmatpush2.bf16.xpose.msra.mxu0 0
  %1996 = vmatprep.mubr.bf16.mxu0 %v463
  %1997 = vmatmul.mubr.bf16.gmra.mxu0 %v462
  %v1998 = vpop.f32.mrf.mxu0
  %v1999 = vadd.f32 %v1958, %v1998
  %v2000 = vpop.f32.mrf.mxu0
  %v2001 = vpop.f32.mrf.mxu0
  %v2002 = vadd.f32 %v1961, %v2001
  %v2003 = vpop.f32.mrf.mxu0
  %2004 = vdwg.mxu0
  %2005 = vmatprep.subr.bf16.mxu0 0
  %2006 = vmatpush1.bf16.xpose.msra.mxu0 0
  %2007 = vmatprep.subr.bf16.mxu0 0
  %2008 = vmatpush1.bf16.xpose.msra.mxu0 0
  %2009 = vmatprep.subr.bf16.mxu0 0
  %2010 = vmatpush1.bf16.xpose.msra.mxu0 0
  %2011 = vmatprep.subr.bf16.mxu0 0
  %2012 = vmatpush1.bf16.xpose.msra.mxu0 0
  %2013 = vmatprep.subr.bf16.mxu0 0
  %2014 = vmatpush1.bf16.xpose.msra.mxu0 0
  %2015 = vmatprep.subr.bf16.mxu0 0
  %2016 = vmatpush1.bf16.xpose.msra.mxu0 0
  %2017 = vmatprep.subr.bf16.mxu0 0
  %2018 = vmatpush1.bf16.xpose.msra.mxu0 0
  %2019 = vmatprep.subr.bf16.mxu0 %v874
  %2020 = vmatpush1.bf16.xpose.msra.mxu0 %v860
  %2021 = vmatprep.subr.bf16.mxu0 0
  %2022 = vmatpush2.bf16.xpose.msra.mxu0 0
  %2023 = vmatprep.subr.bf16.mxu0 0
  %2024 = vmatpush2.bf16.xpose.msra.mxu0 0
  %2025 = vmatprep.subr.bf16.mxu0 0
  %2026 = vmatpush2.bf16.xpose.msra.mxu0 0
  %2027 = vmatprep.subr.bf16.mxu0 0
  %2028 = vmatpush2.bf16.xpose.msra.mxu0 0
  %2029 = vmatprep.subr.bf16.mxu0 0
  %2030 = vmatpush2.bf16.xpose.msra.mxu0 0
  %2031 = vmatprep.subr.bf16.mxu0 0
  %2032 = vmatpush2.bf16.xpose.msra.mxu0 0
  %2033 = vmatprep.subr.bf16.mxu0 0
  %2034 = vmatpush2.bf16.xpose.msra.mxu0 0
  %2035 = vmatprep.subr.bf16.mxu0 0
  %2036 = vmatpush2.bf16.xpose.msra.mxu0 0
  %2037 = vmatprep.mubr.bf16.mxu0 %v465
  %2038 = vmatmul.mubr.bf16.gmra.mxu0 %v464
  %v2039 = vpop.f32.mrf.mxu0
  %v2040 = vadd.f32 %v1999, %v2039
  %v2041 = vpop.f32.mrf.mxu0
  %v2042 = vpop.f32.mrf.mxu0
  %v2043 = vadd.f32 %v2002, %v2042
  %v2044 = vpop.f32.mrf.mxu0
  %2045 = vdwg.mxu0
  %2046 = vmatprep.subr.bf16.mxu0 0
  %2047 = vmatpush1.bf16.xpose.msra.mxu0 0
  %2048 = vmatprep.subr.bf16.mxu0 0
  %2049 = vmatpush1.bf16.xpose.msra.mxu0 0
  %2050 = vmatprep.subr.bf16.mxu0 0
  %2051 = vmatpush1.bf16.xpose.msra.mxu0 0
  %2052 = vmatprep.subr.bf16.mxu0 0
  %2053 = vmatpush1.bf16.xpose.msra.mxu0 0
  %2054 = vmatprep.subr.bf16.mxu0 0
  %2055 = vmatpush1.bf16.xpose.msra.mxu0 0
  %2056 = vmatprep.subr.bf16.mxu0 0
  %2057 = vmatpush1.bf16.xpose.msra.mxu0 0
  %2058 = vmatprep.subr.bf16.mxu0 0
  %2059 = vmatpush1.bf16.xpose.msra.mxu0 0
  %2060 = vmatprep.subr.bf16.mxu0 %v884
  %2061 = vmatpush1.bf16.xpose.msra.mxu0 %v882
  %2062 = vmatprep.subr.bf16.mxu0 0
  %2063 = vmatpush2.bf16.xpose.msra.mxu0 0
  %2064 = vmatprep.subr.bf16.mxu0 0
  %2065 = vmatpush2.bf16.xpose.msra.mxu0 0
  %2066 = vmatprep.subr.bf16.mxu0 0
  %2067 = vmatpush2.bf16.xpose.msra.mxu0 0
  %2068 = vmatprep.subr.bf16.mxu0 0
  %2069 = vmatpush2.bf16.xpose.msra.mxu0 0
  %2070 = vmatprep.subr.bf16.mxu0 0
  %2071 = vmatpush2.bf16.xpose.msra.mxu0 0
  %2072 = vmatprep.subr.bf16.mxu0 0
  %2073 = vmatpush2.bf16.xpose.msra.mxu0 0
  %2074 = vmatprep.subr.bf16.mxu0 0
  %2075 = vmatpush2.bf16.xpose.msra.mxu0 0
  %2076 = vmatprep.subr.bf16.mxu0 0
  %2077 = vmatpush2.bf16.xpose.msra.mxu0 0
  %2078 = vmatprep.mubr.bf16.mxu0 %v467
  %2079 = vmatmul.mubr.bf16.gmra.mxu0 %v466
  %v2080 = vpop.f32.mrf.mxu0
  %v2081 = vadd.f32 %v2040, %v2080
  %v2082 = vpop.f32.mrf.mxu0
  %v2083 = vpop.f32.mrf.mxu0
  %v2084 = vadd.f32 %v2043, %v2083
  %v2085 = vpop.f32.mrf.mxu0
  %2086 = vdwg.mxu0
  %2087 = vmatprep.subr.bf16.mxu0 0
  %2088 = vmatpush1.bf16.xpose.msra.mxu0 0
  %2089 = vmatprep.subr.bf16.mxu0 0
  %2090 = vmatpush1.bf16.xpose.msra.mxu0 0
  %2091 = vmatprep.subr.bf16.mxu0 0
  %2092 = vmatpush1.bf16.xpose.msra.mxu0 0
  %2093 = vmatprep.subr.bf16.mxu0 0
  %2094 = vmatpush1.bf16.xpose.msra.mxu0 0
  %2095 = vmatprep.subr.bf16.mxu0 0
  %2096 = vmatpush1.bf16.xpose.msra.mxu0 0
  %2097 = vmatprep.subr.bf16.mxu0 0
  %2098 = vmatpush1.bf16.xpose.msra.mxu0 0
  %2099 = vmatprep.subr.bf16.mxu0 0
  %2100 = vmatpush1.bf16.xpose.msra.mxu0 0
  %2101 = vmatprep.subr.bf16.mxu0 %v881
  %2102 = vmatpush1.bf16.xpose.msra.mxu0 %v867
  %2103 = vmatprep.subr.bf16.mxu0 0
  %2104 = vmatpush2.bf16.xpose.msra.mxu0 0
  %2105 = vmatprep.subr.bf16.mxu0 0
  %2106 = vmatpush2.bf16.xpose.msra.mxu0 0
  %2107 = vmatprep.subr.bf16.mxu0 0
  %2108 = vmatpush2.bf16.xpose.msra.mxu0 0
  %2109 = vmatprep.subr.bf16.mxu0 0
  %2110 = vmatpush2.bf16.xpose.msra.mxu0 0
  %2111 = vmatprep.subr.bf16.mxu0 0
  %2112 = vmatpush2.bf16.xpose.msra.mxu0 0
  %2113 = vmatprep.subr.bf16.mxu0 0
  %2114 = vmatpush2.bf16.xpose.msra.mxu0 0
  %2115 = vmatprep.subr.bf16.mxu0 0
  %2116 = vmatpush2.bf16.xpose.msra.mxu0 0
  %2117 = vmatprep.subr.bf16.mxu0 0
  %2118 = vmatpush2.bf16.xpose.msra.mxu0 0
  %2119 = vmatprep.mubr.bf16.mxu0 %v469
  %2120 = vmatmul.mubr.bf16.gmra.mxu0 %v468
  %v2121 = vpop.f32.mrf.mxu0
  %v2122 = vadd.f32 %v2081, %v2121
  %v2123 = vpop.f32.mrf.mxu0
  %v2124 = vpop.f32.mrf.mxu0
  %v2125 = vadd.f32 %v2084, %v2124
  %v2126 = vpop.f32.mrf.mxu0
  %2127 = vdwg.mxu0
  %2128 = vmatprep.subr.bf16.mxu0 0
  %2129 = vmatpush1.bf16.xpose.msra.mxu0 0
  %2130 = vmatprep.subr.bf16.mxu0 0
  %2131 = vmatpush1.bf16.xpose.msra.mxu0 0
  %2132 = vmatprep.subr.bf16.mxu0 0
  %2133 = vmatpush1.bf16.xpose.msra.mxu0 0
  %2134 = vmatprep.subr.bf16.mxu0 0
  %2135 = vmatpush1.bf16.xpose.msra.mxu0 0
  %2136 = vmatprep.subr.bf16.mxu0 0
  %2137 = vmatpush1.bf16.xpose.msra.mxu0 0
  %2138 = vmatprep.subr.bf16.mxu0 0
  %2139 = vmatpush1.bf16.xpose.msra.mxu0 0
  %2140 = vmatprep.subr.bf16.mxu0 0
  %2141 = vmatpush1.bf16.xpose.msra.mxu0 0
  %2142 = vmatprep.subr.bf16.mxu0 %v885
  %2143 = vmatpush1.bf16.xpose.msra.mxu0 %v883
  %2144 = vmatprep.subr.bf16.mxu0 0
  %2145 = vmatpush2.bf16.xpose.msra.mxu0 0
  %2146 = vmatprep.subr.bf16.mxu0 0
  %2147 = vmatpush2.bf16.xpose.msra.mxu0 0
  %2148 = vmatprep.subr.bf16.mxu0 0
  %2149 = vmatpush2.bf16.xpose.msra.mxu0 0
  %2150 = vmatprep.subr.bf16.mxu0 0
  %2151 = vmatpush2.bf16.xpose.msra.mxu0 0
  %2152 = vmatprep.subr.bf16.mxu0 0
  %2153 = vmatpush2.bf16.xpose.msra.mxu0 0
  %2154 = vmatprep.subr.bf16.mxu0 0
  %2155 = vmatpush2.bf16.xpose.msra.mxu0 0
  %2156 = vmatprep.subr.bf16.mxu0 0
  %2157 = vmatpush2.bf16.xpose.msra.mxu0 0
  %2158 = vmatprep.subr.bf16.mxu0 0
  %2159 = vmatpush2.bf16.xpose.msra.mxu0 0
  %2160 = vmatprep.mubr.bf16.mxu0 %v471
  %2161 = vmatmul.mubr.bf16.gmra.mxu0 %v470
  %v2162 = vpop.f32.mrf.mxu0
  %v2163 = vadd.f32 %v2122, %v2162
  %v2164 = vpop.f32.mrf.mxu0
  %v2165 = vpop.f32.mrf.mxu0
  %v2166 = vadd.f32 %v2125, %v2165
  %v2167 = vpop.f32.mrf.mxu0
  %2168 = vdwg.mxu0
  %2169 = vmatprep.subr.bf16.mxu0 0
  %2170 = vmatpush1.bf16.xpose.msra.mxu0 0
  %2171 = vmatprep.subr.bf16.mxu0 0
  %2172 = vmatpush1.bf16.xpose.msra.mxu0 0
  %2173 = vmatprep.subr.bf16.mxu0 0
  %2174 = vmatpush1.bf16.xpose.msra.mxu0 0
  %2175 = vmatprep.subr.bf16.mxu0 0
  %2176 = vmatpush1.bf16.xpose.msra.mxu0 0
  %2177 = vmatprep.subr.bf16.mxu0 0
  %2178 = vmatpush1.bf16.xpose.msra.mxu0 0
  %2179 = vmatprep.subr.bf16.mxu0 0
  %2180 = vmatpush1.bf16.xpose.msra.mxu0 0
  %2181 = vmatprep.subr.bf16.mxu0 0
  %2182 = vmatpush1.bf16.xpose.msra.mxu0 0
  %2183 = vmatprep.subr.bf16.mxu0 %v923
  %2184 = vmatpush1.bf16.xpose.msra.mxu0 %v909
  %2185 = vmatprep.subr.bf16.mxu0 0
  %2186 = vmatpush2.bf16.xpose.msra.mxu0 0
  %2187 = vmatprep.subr.bf16.mxu0 0
  %2188 = vmatpush2.bf16.xpose.msra.mxu0 0
  %2189 = vmatprep.subr.bf16.mxu0 0
  %2190 = vmatpush2.bf16.xpose.msra.mxu0 0
  %2191 = vmatprep.subr.bf16.mxu0 0
  %2192 = vmatpush2.bf16.xpose.msra.mxu0 0
  %2193 = vmatprep.subr.bf16.mxu0 0
  %2194 = vmatpush2.bf16.xpose.msra.mxu0 0
  %2195 = vmatprep.subr.bf16.mxu0 0
  %2196 = vmatpush2.bf16.xpose.msra.mxu0 0
  %2197 = vmatprep.subr.bf16.mxu0 0
  %2198 = vmatpush2.bf16.xpose.msra.mxu0 0
  %2199 = vmatprep.subr.bf16.mxu0 0
  %2200 = vmatpush2.bf16.xpose.msra.mxu0 0
  %2201 = vmatprep.mubr.bf16.mxu0 %v473
  %2202 = vmatmul.mubr.bf16.gmra.mxu0 %v472
  %v2203 = vpop.f32.mrf.mxu0
  %v2204 = vadd.f32 %v2163, %v2203
  %v2205 = vpop.f32.mrf.mxu0
  %v2206 = vpop.f32.mrf.mxu0
  %v2207 = vadd.f32 %v2166, %v2206
  %v2208 = vpop.f32.mrf.mxu0
  %2209 = vdwg.mxu0
  %2210 = vmatprep.subr.bf16.mxu0 0
  %2211 = vmatpush1.bf16.xpose.msra.mxu0 0
  %2212 = vmatprep.subr.bf16.mxu0 0
  %2213 = vmatpush1.bf16.xpose.msra.mxu0 0
  %2214 = vmatprep.subr.bf16.mxu0 0
  %2215 = vmatpush1.bf16.xpose.msra.mxu0 0
  %2216 = vmatprep.subr.bf16.mxu0 0
  %2217 = vmatpush1.bf16.xpose.msra.mxu0 0
  %2218 = vmatprep.subr.bf16.mxu0 0
  %2219 = vmatpush1.bf16.xpose.msra.mxu0 0
  %2220 = vmatprep.subr.bf16.mxu0 0
  %2221 = vmatpush1.bf16.xpose.msra.mxu0 0
  %2222 = vmatprep.subr.bf16.mxu0 0
  %2223 = vmatpush1.bf16.xpose.msra.mxu0 0
  %2224 = vmatprep.subr.bf16.mxu0 %v933
  %2225 = vmatpush1.bf16.xpose.msra.mxu0 %v931
  %2226 = vmatprep.subr.bf16.mxu0 0
  %2227 = vmatpush2.bf16.xpose.msra.mxu0 0
  %2228 = vmatprep.subr.bf16.mxu0 0
  %2229 = vmatpush2.bf16.xpose.msra.mxu0 0
  %2230 = vmatprep.subr.bf16.mxu0 0
  %2231 = vmatpush2.bf16.xpose.msra.mxu0 0
  %2232 = vmatprep.subr.bf16.mxu0 0
  %2233 = vmatpush2.bf16.xpose.msra.mxu0 0
  %2234 = vmatprep.subr.bf16.mxu0 0
  %2235 = vmatpush2.bf16.xpose.msra.mxu0 0
  %2236 = vmatprep.subr.bf16.mxu0 0
  %2237 = vmatpush2.bf16.xpose.msra.mxu0 0
  %2238 = vmatprep.subr.bf16.mxu0 0
  %2239 = vmatpush2.bf16.xpose.msra.mxu0 0
  %2240 = vmatprep.subr.bf16.mxu0 0
  %2241 = vmatpush2.bf16.xpose.msra.mxu0 0
  %2242 = vmatprep.mubr.bf16.mxu0 %v475
  %2243 = vmatmul.mubr.bf16.gmra.mxu0 %v474
  %v2244 = vpop.f32.mrf.mxu0
  %v2245 = vadd.f32 %v2204, %v2244
  %v2246 = vpop.f32.mrf.mxu0
  %v2247 = vpop.f32.mrf.mxu0
  %v2248 = vadd.f32 %v2207, %v2247
  %v2249 = vpop.f32.mrf.mxu0
  %2250 = vdwg.mxu0
  %2251 = vmatprep.subr.bf16.mxu0 0
  %2252 = vmatpush1.bf16.xpose.msra.mxu0 0
  %2253 = vmatprep.subr.bf16.mxu0 0
  %2254 = vmatpush1.bf16.xpose.msra.mxu0 0
  %2255 = vmatprep.subr.bf16.mxu0 0
  %2256 = vmatpush1.bf16.xpose.msra.mxu0 0
  %2257 = vmatprep.subr.bf16.mxu0 0
  %2258 = vmatpush1.bf16.xpose.msra.mxu0 0
  %2259 = vmatprep.subr.bf16.mxu0 0
  %2260 = vmatpush1.bf16.xpose.msra.mxu0 0
  %2261 = vmatprep.subr.bf16.mxu0 0
  %2262 = vmatpush1.bf16.xpose.msra.mxu0 0
  %2263 = vmatprep.subr.bf16.mxu0 0
  %2264 = vmatpush1.bf16.xpose.msra.mxu0 0
  %2265 = vmatprep.subr.bf16.mxu0 %v930
  %2266 = vmatpush1.bf16.xpose.msra.mxu0 %v916
  %2267 = vmatprep.subr.bf16.mxu0 0
  %2268 = vmatpush2.bf16.xpose.msra.mxu0 0
  %2269 = vmatprep.subr.bf16.mxu0 0
  %2270 = vmatpush2.bf16.xpose.msra.mxu0 0
  %2271 = vmatprep.subr.bf16.mxu0 0
  %2272 = vmatpush2.bf16.xpose.msra.mxu0 0
  %2273 = vmatprep.subr.bf16.mxu0 0
  %2274 = vmatpush2.bf16.xpose.msra.mxu0 0
  %2275 = vmatprep.subr.bf16.mxu0 0
  %2276 = vmatpush2.bf16.xpose.msra.mxu0 0
  %2277 = vmatprep.subr.bf16.mxu0 0
  %2278 = vmatpush2.bf16.xpose.msra.mxu0 0
  %2279 = vmatprep.subr.bf16.mxu0 0
  %2280 = vmatpush2.bf16.xpose.msra.mxu0 0
  %2281 = vmatprep.subr.bf16.mxu0 0
  %2282 = vmatpush2.bf16.xpose.msra.mxu0 0
  %2283 = vmatprep.mubr.bf16.mxu0 %v477
  %2284 = vmatmul.mubr.bf16.gmra.mxu0 %v476
  %v2285 = vpop.f32.mrf.mxu0
  %v2286 = vadd.f32 %v2245, %v2285
  %v2287 = vpop.f32.mrf.mxu0
  %v2288 = vpop.f32.mrf.mxu0
  %v2289 = vadd.f32 %v2248, %v2288
  %v2290 = vpop.f32.mrf.mxu0
  %2291 = vdwg.mxu0
  %2292 = vmatprep.subr.bf16.mxu0 0
  %2293 = vmatpush1.bf16.xpose.msra.mxu0 0
  %2294 = vmatprep.subr.bf16.mxu0 0
  %2295 = vmatpush1.bf16.xpose.msra.mxu0 0
  %2296 = vmatprep.subr.bf16.mxu0 0
  %2297 = vmatpush1.bf16.xpose.msra.mxu0 0
  %2298 = vmatprep.subr.bf16.mxu0 0
  %2299 = vmatpush1.bf16.xpose.msra.mxu0 0
  %2300 = vmatprep.subr.bf16.mxu0 0
  %2301 = vmatpush1.bf16.xpose.msra.mxu0 0
  %2302 = vmatprep.subr.bf16.mxu0 0
  %2303 = vmatpush1.bf16.xpose.msra.mxu0 0
  %2304 = vmatprep.subr.bf16.mxu0 0
  %2305 = vmatpush1.bf16.xpose.msra.mxu0 0
  %2306 = vmatprep.subr.bf16.mxu0 %v934
  %2307 = vmatpush1.bf16.xpose.msra.mxu0 %v932
  %2308 = vmatprep.subr.bf16.mxu0 0
  %2309 = vmatpush2.bf16.xpose.msra.mxu0 0
  %2310 = vmatprep.subr.bf16.mxu0 0
  %2311 = vmatpush2.bf16.xpose.msra.mxu0 0
  %2312 = vmatprep.subr.bf16.mxu0 0
  %2313 = vmatpush2.bf16.xpose.msra.mxu0 0
  %2314 = vmatprep.subr.bf16.mxu0 0
  %2315 = vmatpush2.bf16.xpose.msra.mxu0 0
  %2316 = vmatprep.subr.bf16.mxu0 0
  %2317 = vmatpush2.bf16.xpose.msra.mxu0 0
  %2318 = vmatprep.subr.bf16.mxu0 0
  %2319 = vmatpush2.bf16.xpose.msra.mxu0 0
  %2320 = vmatprep.subr.bf16.mxu0 0
  %2321 = vmatpush2.bf16.xpose.msra.mxu0 0
  %2322 = vmatprep.subr.bf16.mxu0 0
  %2323 = vmatpush2.bf16.xpose.msra.mxu0 0
  %2324 = vmatprep.mubr.bf16.mxu0 %v479
  %2325 = vmatmul.mubr.bf16.gmra.mxu0 %v478
  %v2326 = vpop.f32.mrf.mxu0
  %v2327 = vadd.f32 %v2286, %v2326
  %v2328 = vpop.f32.mrf.mxu0
  %v2329 = vpop.f32.mrf.mxu0
  %v2330 = vadd.f32 %v2289, %v2329
  %v2331 = vpop.f32.mrf.mxu0
  %2332 = vdwg.mxu0
  %2333 = vmatprep.subr.bf16.mxu0 0
  %2334 = vmatpush1.bf16.xpose.msra.mxu0 0
  %2335 = vmatprep.subr.bf16.mxu0 0
  %2336 = vmatpush1.bf16.xpose.msra.mxu0 0
  %2337 = vmatprep.subr.bf16.mxu0 0
  %2338 = vmatpush1.bf16.xpose.msra.mxu0 0
  %2339 = vmatprep.subr.bf16.mxu0 0
  %2340 = vmatpush1.bf16.xpose.msra.mxu0 0
  %2341 = vmatprep.subr.bf16.mxu0 0
  %2342 = vmatpush1.bf16.xpose.msra.mxu0 0
  %2343 = vmatprep.subr.bf16.mxu0 0
  %2344 = vmatpush1.bf16.xpose.msra.mxu0 0
  %2345 = vmatprep.subr.bf16.mxu0 0
  %2346 = vmatpush1.bf16.xpose.msra.mxu0 0
  %2347 = vmatprep.subr.bf16.mxu0 %v972
  %2348 = vmatpush1.bf16.xpose.msra.mxu0 %v958
  %2349 = vmatprep.subr.bf16.mxu0 0
  %2350 = vmatpush2.bf16.xpose.msra.mxu0 0
  %2351 = vmatprep.subr.bf16.mxu0 0
  %2352 = vmatpush2.bf16.xpose.msra.mxu0 0
  %2353 = vmatprep.subr.bf16.mxu0 0
  %2354 = vmatpush2.bf16.xpose.msra.mxu0 0
  %2355 = vmatprep.subr.bf16.mxu0 0
  %2356 = vmatpush2.bf16.xpose.msra.mxu0 0
  %2357 = vmatprep.subr.bf16.mxu0 0
  %2358 = vmatpush2.bf16.xpose.msra.mxu0 0
  %2359 = vmatprep.subr.bf16.mxu0 0
  %2360 = vmatpush2.bf16.xpose.msra.mxu0 0
  %2361 = vmatprep.subr.bf16.mxu0 0
  %2362 = vmatpush2.bf16.xpose.msra.mxu0 0
  %2363 = vmatprep.subr.bf16.mxu0 0
  %2364 = vmatpush2.bf16.xpose.msra.mxu0 0
  %2365 = vmatprep.mubr.bf16.mxu0 %v481
  %2366 = vmatmul.mubr.bf16.gmra.mxu0 %v480
  %v2367 = vpop.f32.mrf.mxu0
  %v2368 = vadd.f32 %v2327, %v2367
  %v2369 = vpop.f32.mrf.mxu0
  %v2370 = vpop.f32.mrf.mxu0
  %v2371 = vadd.f32 %v2330, %v2370
  %v2372 = vpop.f32.mrf.mxu0
  %2373 = vdwg.mxu0
  %2374 = vmatprep.subr.bf16.mxu0 0
  %2375 = vmatpush1.bf16.xpose.msra.mxu0 0
  %2376 = vmatprep.subr.bf16.mxu0 0
  %2377 = vmatpush1.bf16.xpose.msra.mxu0 0
  %2378 = vmatprep.subr.bf16.mxu0 0
  %2379 = vmatpush1.bf16.xpose.msra.mxu0 0
  %2380 = vmatprep.subr.bf16.mxu0 0
  %2381 = vmatpush1.bf16.xpose.msra.mxu0 0
  %2382 = vmatprep.subr.bf16.mxu0 0
  %2383 = vmatpush1.bf16.xpose.msra.mxu0 0
  %2384 = vmatprep.subr.bf16.mxu0 0
  %2385 = vmatpush1.bf16.xpose.msra.mxu0 0
  %2386 = vmatprep.subr.bf16.mxu0 0
  %2387 = vmatpush1.bf16.xpose.msra.mxu0 0
  %2388 = vmatprep.subr.bf16.mxu0 %v982
  %2389 = vmatpush1.bf16.xpose.msra.mxu0 %v980
  %2390 = vmatprep.subr.bf16.mxu0 0
  %2391 = vmatpush2.bf16.xpose.msra.mxu0 0
  %2392 = vmatprep.subr.bf16.mxu0 0
  %2393 = vmatpush2.bf16.xpose.msra.mxu0 0
  %2394 = vmatprep.subr.bf16.mxu0 0
  %2395 = vmatpush2.bf16.xpose.msra.mxu0 0
  %2396 = vmatprep.subr.bf16.mxu0 0
  %2397 = vmatpush2.bf16.xpose.msra.mxu0 0
  %2398 = vmatprep.subr.bf16.mxu0 0
  %2399 = vmatpush2.bf16.xpose.msra.mxu0 0
  %2400 = vmatprep.subr.bf16.mxu0 0
  %2401 = vmatpush2.bf16.xpose.msra.mxu0 0
  %2402 = vmatprep.subr.bf16.mxu0 0
  %2403 = vmatpush2.bf16.xpose.msra.mxu0 0
  %2404 = vmatprep.subr.bf16.mxu0 0
  %2405 = vmatpush2.bf16.xpose.msra.mxu0 0
  %2406 = vmatprep.mubr.bf16.mxu0 %v483
  %2407 = vmatmul.mubr.bf16.gmra.mxu0 %v482
  %v2408 = vpop.f32.mrf.mxu0
  %v2409 = vadd.f32 %v2368, %v2408
  %v2410 = vpop.f32.mrf.mxu0
  %v2411 = vpop.f32.mrf.mxu0
  %v2412 = vadd.f32 %v2371, %v2411
  %v2413 = vpop.f32.mrf.mxu0
  %2414 = vdwg.mxu0
  %2415 = vmatprep.subr.bf16.mxu0 0
  %2416 = vmatpush1.bf16.xpose.msra.mxu0 0
  %2417 = vmatprep.subr.bf16.mxu0 0
  %2418 = vmatpush1.bf16.xpose.msra.mxu0 0
  %2419 = vmatprep.subr.bf16.mxu0 0
  %2420 = vmatpush1.bf16.xpose.msra.mxu0 0
  %2421 = vmatprep.subr.bf16.mxu0 0
  %2422 = vmatpush1.bf16.xpose.msra.mxu0 0
  %2423 = vmatprep.subr.bf16.mxu0 0
  %2424 = vmatpush1.bf16.xpose.msra.mxu0 0
  %2425 = vmatprep.subr.bf16.mxu0 0
  %2426 = vmatpush1.bf16.xpose.msra.mxu0 0
  %2427 = vmatprep.subr.bf16.mxu0 0
  %2428 = vmatpush1.bf16.xpose.msra.mxu0 0
  %2429 = vmatprep.subr.bf16.mxu0 %v979
  %2430 = vmatpush1.bf16.xpose.msra.mxu0 %v965
  %2431 = vmatprep.subr.bf16.mxu0 0
  %2432 = vmatpush2.bf16.xpose.msra.mxu0 0
  %2433 = vmatprep.subr.bf16.mxu0 0
  %2434 = vmatpush2.bf16.xpose.msra.mxu0 0
  %2435 = vmatprep.subr.bf16.mxu0 0
  %2436 = vmatpush2.bf16.xpose.msra.mxu0 0
  %2437 = vmatprep.subr.bf16.mxu0 0
  %2438 = vmatpush2.bf16.xpose.msra.mxu0 0
  %2439 = vmatprep.subr.bf16.mxu0 0
  %2440 = vmatpush2.bf16.xpose.msra.mxu0 0
  %2441 = vmatprep.subr.bf16.mxu0 0
  %2442 = vmatpush2.bf16.xpose.msra.mxu0 0
  %2443 = vmatprep.subr.bf16.mxu0 0
  %2444 = vmatpush2.bf16.xpose.msra.mxu0 0
  %2445 = vmatprep.subr.bf16.mxu0 0
  %2446 = vmatpush2.bf16.xpose.msra.mxu0 0
  %2447 = vmatprep.mubr.bf16.mxu0 %v485
  %2448 = vmatmul.mubr.bf16.gmra.mxu0 %v484
  %v2449 = vpop.f32.mrf.mxu0
  %v2450 = vadd.f32 %v2409, %v2449
  %v2451 = vpop.f32.mrf.mxu0
  %v2452 = vpop.f32.mrf.mxu0
  %v2453 = vadd.f32 %v2412, %v2452
  %v2454 = vpop.f32.mrf.mxu0
  %2455 = vdwg.mxu0
  %2456 = vmatprep.subr.bf16.mxu0 0
  %2457 = vmatpush1.bf16.xpose.msra.mxu0 0
  %2458 = vmatprep.subr.bf16.mxu0 0
  %2459 = vmatpush1.bf16.xpose.msra.mxu0 0
  %2460 = vmatprep.subr.bf16.mxu0 0
  %2461 = vmatpush1.bf16.xpose.msra.mxu0 0
  %2462 = vmatprep.subr.bf16.mxu0 0
  %2463 = vmatpush1.bf16.xpose.msra.mxu0 0
  %2464 = vmatprep.subr.bf16.mxu0 0
  %2465 = vmatpush1.bf16.xpose.msra.mxu0 0
  %2466 = vmatprep.subr.bf16.mxu0 0
  %2467 = vmatpush1.bf16.xpose.msra.mxu0 0
  %2468 = vmatprep.subr.bf16.mxu0 0
  %2469 = vmatpush1.bf16.xpose.msra.mxu0 0
  %2470 = vmatprep.subr.bf16.mxu0 %v983
  %2471 = vmatpush1.bf16.xpose.msra.mxu0 %v981
  %2472 = vmatprep.subr.bf16.mxu0 0
  %2473 = vmatpush2.bf16.xpose.msra.mxu0 0
  %2474 = vmatprep.subr.bf16.mxu0 0
  %2475 = vmatpush2.bf16.xpose.msra.mxu0 0
  %2476 = vmatprep.subr.bf16.mxu0 0
  %2477 = vmatpush2.bf16.xpose.msra.mxu0 0
  %2478 = vmatprep.subr.bf16.mxu0 0
  %2479 = vmatpush2.bf16.xpose.msra.mxu0 0
  %2480 = vmatprep.subr.bf16.mxu0 0
  %2481 = vmatpush2.bf16.xpose.msra.mxu0 0
  %2482 = vmatprep.subr.bf16.mxu0 0
  %2483 = vmatpush2.bf16.xpose.msra.mxu0 0
  %2484 = vmatprep.subr.bf16.mxu0 0
  %2485 = vmatpush2.bf16.xpose.msra.mxu0 0
  %2486 = vmatprep.subr.bf16.mxu0 0
  %2487 = vmatpush2.bf16.xpose.msra.mxu0 0
  %2488 = vmatprep.mubr.bf16.mxu0 %v487
  %2489 = vmatmul.mubr.bf16.gmra.mxu0 %v486
  %v2490 = vpop.f32.mrf.mxu0
  %v2491 = vadd.f32 %v2450, %v2490
  %v2492 = vpop.f32.mrf.mxu0
  %v2493 = vpop.f32.mrf.mxu0
  %v2494 = vadd.f32 %v2453, %v2493
  %v2495 = vpop.f32.mrf.mxu0
  %2496 = vdwg.mxu0
  %2497 = vmatprep.subr.bf16.mxu0 0
  %2498 = vmatpush1.bf16.xpose.msra.mxu0 0
  %2499 = vmatprep.subr.bf16.mxu0 0
  %2500 = vmatpush1.bf16.xpose.msra.mxu0 0
  %2501 = vmatprep.subr.bf16.mxu0 0
  %2502 = vmatpush1.bf16.xpose.msra.mxu0 0
  %2503 = vmatprep.subr.bf16.mxu0 0
  %2504 = vmatpush1.bf16.xpose.msra.mxu0 0
  %2505 = vmatprep.subr.bf16.mxu0 0
  %2506 = vmatpush1.bf16.xpose.msra.mxu0 0
  %2507 = vmatprep.subr.bf16.mxu0 0
  %2508 = vmatpush1.bf16.xpose.msra.mxu0 0
  %2509 = vmatprep.subr.bf16.mxu0 0
  %2510 = vmatpush1.bf16.xpose.msra.mxu0 0
  %2511 = vmatprep.subr.bf16.mxu0 %v1021
  %2512 = vmatpush1.bf16.xpose.msra.mxu0 %v1007
  %2513 = vmatprep.subr.bf16.mxu0 0
  %2514 = vmatpush2.bf16.xpose.msra.mxu0 0
  %2515 = vmatprep.subr.bf16.mxu0 0
  %2516 = vmatpush2.bf16.xpose.msra.mxu0 0
  %2517 = vmatprep.subr.bf16.mxu0 0
  %2518 = vmatpush2.bf16.xpose.msra.mxu0 0
  %2519 = vmatprep.subr.bf16.mxu0 0
  %2520 = vmatpush2.bf16.xpose.msra.mxu0 0
  %2521 = vmatprep.subr.bf16.mxu0 0
  %2522 = vmatpush2.bf16.xpose.msra.mxu0 0
  %2523 = vmatprep.subr.bf16.mxu0 0
  %2524 = vmatpush2.bf16.xpose.msra.mxu0 0
  %2525 = vmatprep.subr.bf16.mxu0 0
  %2526 = vmatpush2.bf16.xpose.msra.mxu0 0
  %2527 = vmatprep.subr.bf16.mxu0 0
  %2528 = vmatpush2.bf16.xpose.msra.mxu0 0
  %2529 = vmatprep.mubr.bf16.mxu0 %v489
  %2530 = vmatmul.mubr.bf16.gmra.mxu0 %v488
  %v2531 = vpop.f32.mrf.mxu0
  %v2532 = vadd.f32 %v2491, %v2531
  %v2533 = vpop.f32.mrf.mxu0
  %v2534 = vpop.f32.mrf.mxu0
  %v2535 = vadd.f32 %v2494, %v2534
  %v2536 = vpop.f32.mrf.mxu0
  %2537 = vdwg.mxu0
  %2538 = vmatprep.subr.bf16.mxu0 0
  %2539 = vmatpush1.bf16.xpose.msra.mxu0 0
  %2540 = vmatprep.subr.bf16.mxu0 0
  %2541 = vmatpush1.bf16.xpose.msra.mxu0 0
  %2542 = vmatprep.subr.bf16.mxu0 0
  %2543 = vmatpush1.bf16.xpose.msra.mxu0 0
  %2544 = vmatprep.subr.bf16.mxu0 0
  %2545 = vmatpush1.bf16.xpose.msra.mxu0 0
  %2546 = vmatprep.subr.bf16.mxu0 0
  %2547 = vmatpush1.bf16.xpose.msra.mxu0 0
  %2548 = vmatprep.subr.bf16.mxu0 0
  %2549 = vmatpush1.bf16.xpose.msra.mxu0 0
  %2550 = vmatprep.subr.bf16.mxu0 0
  %2551 = vmatpush1.bf16.xpose.msra.mxu0 0
  %2552 = vmatprep.subr.bf16.mxu0 %v1031
  %2553 = vmatpush1.bf16.xpose.msra.mxu0 %v1029
  %2554 = vmatprep.subr.bf16.mxu0 0
  %2555 = vmatpush2.bf16.xpose.msra.mxu0 0
  %2556 = vmatprep.subr.bf16.mxu0 0
  %2557 = vmatpush2.bf16.xpose.msra.mxu0 0
  %2558 = vmatprep.subr.bf16.mxu0 0
  %2559 = vmatpush2.bf16.xpose.msra.mxu0 0
  %2560 = vmatprep.subr.bf16.mxu0 0
  %2561 = vmatpush2.bf16.xpose.msra.mxu0 0
  %2562 = vmatprep.subr.bf16.mxu0 0
  %2563 = vmatpush2.bf16.xpose.msra.mxu0 0
  %2564 = vmatprep.subr.bf16.mxu0 0
  %2565 = vmatpush2.bf16.xpose.msra.mxu0 0
  %2566 = vmatprep.subr.bf16.mxu0 0
  %2567 = vmatpush2.bf16.xpose.msra.mxu0 0
  %2568 = vmatprep.subr.bf16.mxu0 0
  %2569 = vmatpush2.bf16.xpose.msra.mxu0 0
  %2570 = vmatprep.mubr.bf16.mxu0 %v491
  %2571 = vmatmul.mubr.bf16.gmra.mxu0 %v490
  %v2572 = vpop.f32.mrf.mxu0
  %v2573 = vadd.f32 %v2532, %v2572
  %v2574 = vpop.f32.mrf.mxu0
  %v2575 = vpop.f32.mrf.mxu0
  %v2576 = vadd.f32 %v2535, %v2575
  %v2577 = vpop.f32.mrf.mxu0
  %2578 = vdwg.mxu0
  %2579 = vmatprep.subr.bf16.mxu0 0
  %2580 = vmatpush1.bf16.xpose.msra.mxu0 0
  %2581 = vmatprep.subr.bf16.mxu0 0
  %2582 = vmatpush1.bf16.xpose.msra.mxu0 0
  %2583 = vmatprep.subr.bf16.mxu0 0
  %2584 = vmatpush1.bf16.xpose.msra.mxu0 0
  %2585 = vmatprep.subr.bf16.mxu0 0
  %2586 = vmatpush1.bf16.xpose.msra.mxu0 0
  %2587 = vmatprep.subr.bf16.mxu0 0
  %2588 = vmatpush1.bf16.xpose.msra.mxu0 0
  %2589 = vmatprep.subr.bf16.mxu0 0
  %2590 = vmatpush1.bf16.xpose.msra.mxu0 0
  %2591 = vmatprep.subr.bf16.mxu0 0
  %2592 = vmatpush1.bf16.xpose.msra.mxu0 0
  %2593 = vmatprep.subr.bf16.mxu0 %v1028
  %2594 = vmatpush1.bf16.xpose.msra.mxu0 %v1014
  %2595 = vmatprep.subr.bf16.mxu0 0
  %2596 = vmatpush2.bf16.xpose.msra.mxu0 0
  %2597 = vmatprep.subr.bf16.mxu0 0
  %2598 = vmatpush2.bf16.xpose.msra.mxu0 0
  %2599 = vmatprep.subr.bf16.mxu0 0
  %2600 = vmatpush2.bf16.xpose.msra.mxu0 0
  %2601 = vmatprep.subr.bf16.mxu0 0
  %2602 = vmatpush2.bf16.xpose.msra.mxu0 0
  %2603 = vmatprep.subr.bf16.mxu0 0
  %2604 = vmatpush2.bf16.xpose.msra.mxu0 0
  %2605 = vmatprep.subr.bf16.mxu0 0
  %2606 = vmatpush2.bf16.xpose.msra.mxu0 0
  %2607 = vmatprep.subr.bf16.mxu0 0
  %2608 = vmatpush2.bf16.xpose.msra.mxu0 0
  %2609 = vmatprep.subr.bf16.mxu0 0
  %2610 = vmatpush2.bf16.xpose.msra.mxu0 0
  %2611 = vmatprep.mubr.bf16.mxu0 %v493
  %2612 = vmatmul.mubr.bf16.gmra.mxu0 %v492
  %v2613 = vpop.f32.mrf.mxu0
  %v2614 = vadd.f32 %v2573, %v2613
  %v2615 = vpop.f32.mrf.mxu0
  %v2616 = vpop.f32.mrf.mxu0
  %v2617 = vadd.f32 %v2576, %v2616
  %v2618 = vpop.f32.mrf.mxu0
  %2619 = vdwg.mxu0
  %2620 = vmatprep.subr.bf16.mxu0 0
  %2621 = vmatpush1.bf16.xpose.msra.mxu0 0
  %2622 = vmatprep.subr.bf16.mxu0 0
  %2623 = vmatpush1.bf16.xpose.msra.mxu0 0
  %2624 = vmatprep.subr.bf16.mxu0 0
  %2625 = vmatpush1.bf16.xpose.msra.mxu0 0
  %2626 = vmatprep.subr.bf16.mxu0 0
  %2627 = vmatpush1.bf16.xpose.msra.mxu0 0
  %2628 = vmatprep.subr.bf16.mxu0 0
  %2629 = vmatpush1.bf16.xpose.msra.mxu0 0
  %2630 = vmatprep.subr.bf16.mxu0 0
  %2631 = vmatpush1.bf16.xpose.msra.mxu0 0
  %2632 = vmatprep.subr.bf16.mxu0 0
  %2633 = vmatpush1.bf16.xpose.msra.mxu0 0
  %2634 = vmatprep.subr.bf16.mxu0 %v1032
  %2635 = vmatpush1.bf16.xpose.msra.mxu0 %v1030
  %2636 = vmatprep.subr.bf16.mxu0 0
  %2637 = vmatpush2.bf16.xpose.msra.mxu0 0
  %2638 = vmatprep.subr.bf16.mxu0 0
  %2639 = vmatpush2.bf16.xpose.msra.mxu0 0
  %2640 = vmatprep.subr.bf16.mxu0 0
  %2641 = vmatpush2.bf16.xpose.msra.mxu0 0
  %2642 = vmatprep.subr.bf16.mxu0 0
  %2643 = vmatpush2.bf16.xpose.msra.mxu0 0
  %2644 = vmatprep.subr.bf16.mxu0 0
  %2645 = vmatpush2.bf16.xpose.msra.mxu0 0
  %2646 = vmatprep.subr.bf16.mxu0 0
  %2647 = vmatpush2.bf16.xpose.msra.mxu0 0
  %2648 = vmatprep.subr.bf16.mxu0 0
  %2649 = vmatpush2.bf16.xpose.msra.mxu0 0
  %2650 = vmatprep.subr.bf16.mxu0 0
  %2651 = vmatpush2.bf16.xpose.msra.mxu0 0
  %2652 = vmatprep.mubr.bf16.mxu0 %v495
  %2653 = vmatmul.mubr.bf16.gmra.mxu0 %v494
  %v2654 = vpop.f32.mrf.mxu0
  %v2655 = vadd.f32 %v2614, %v2654
  %v2656 = vpop.f32.mrf.mxu0
  %v2657 = vpop.f32.mrf.mxu0
  %v2658 = vadd.f32 %v2617, %v2657
  %v2659 = vpop.f32.mrf.mxu0
  %2660 = vdwg.mxu0
  %2661 = vmatprep.subr.bf16.mxu0 0
  %2662 = vmatpush1.bf16.xpose.msra.mxu0 0
  %2663 = vmatprep.subr.bf16.mxu0 0
  %2664 = vmatpush1.bf16.xpose.msra.mxu0 0
  %2665 = vmatprep.subr.bf16.mxu0 0
  %2666 = vmatpush1.bf16.xpose.msra.mxu0 0
  %2667 = vmatprep.subr.bf16.mxu0 0
  %2668 = vmatpush1.bf16.xpose.msra.mxu0 0
  %2669 = vmatprep.subr.bf16.mxu0 0
  %2670 = vmatpush1.bf16.xpose.msra.mxu0 0
  %2671 = vmatprep.subr.bf16.mxu0 0
  %2672 = vmatpush1.bf16.xpose.msra.mxu0 0
  %2673 = vmatprep.subr.bf16.mxu0 0
  %2674 = vmatpush1.bf16.xpose.msra.mxu0 0
  %2675 = vmatprep.subr.bf16.mxu0 %v1070
  %2676 = vmatpush1.bf16.xpose.msra.mxu0 %v1056
  %2677 = vmatprep.subr.bf16.mxu0 0
  %2678 = vmatpush2.bf16.xpose.msra.mxu0 0
  %2679 = vmatprep.subr.bf16.mxu0 0
  %2680 = vmatpush2.bf16.xpose.msra.mxu0 0
  %2681 = vmatprep.subr.bf16.mxu0 0
  %2682 = vmatpush2.bf16.xpose.msra.mxu0 0
  %2683 = vmatprep.subr.bf16.mxu0 0
  %2684 = vmatpush2.bf16.xpose.msra.mxu0 0
  %2685 = vmatprep.subr.bf16.mxu0 0
  %2686 = vmatpush2.bf16.xpose.msra.mxu0 0
  %2687 = vmatprep.subr.bf16.mxu0 0
  %2688 = vmatpush2.bf16.xpose.msra.mxu0 0
  %2689 = vmatprep.subr.bf16.mxu0 0
  %2690 = vmatpush2.bf16.xpose.msra.mxu0 0
  %2691 = vmatprep.subr.bf16.mxu0 0
  %2692 = vmatpush2.bf16.xpose.msra.mxu0 0
  %2693 = vmatprep.mubr.bf16.mxu0 %v497
  %2694 = vmatmul.mubr.bf16.gmra.mxu0 %v496
  %v2695 = vpop.f32.mrf.mxu0
  %v2696 = vadd.f32 %v2655, %v2695
  %v2697 = vpop.f32.mrf.mxu0
  %v2698 = vpop.f32.mrf.mxu0
  %v2699 = vadd.f32 %v2658, %v2698
  %v2700 = vpop.f32.mrf.mxu0
  %2701 = vdwg.mxu0
  %2702 = vmatprep.subr.bf16.mxu0 0
  %2703 = vmatpush1.bf16.xpose.msra.mxu0 0
  %2704 = vmatprep.subr.bf16.mxu0 0
  %2705 = vmatpush1.bf16.xpose.msra.mxu0 0
  %2706 = vmatprep.subr.bf16.mxu0 0
  %2707 = vmatpush1.bf16.xpose.msra.mxu0 0
  %2708 = vmatprep.subr.bf16.mxu0 0
  %2709 = vmatpush1.bf16.xpose.msra.mxu0 0
  %2710 = vmatprep.subr.bf16.mxu0 0
  %2711 = vmatpush1.bf16.xpose.msra.mxu0 0
  %2712 = vmatprep.subr.bf16.mxu0 0
  %2713 = vmatpush1.bf16.xpose.msra.mxu0 0
  %2714 = vmatprep.subr.bf16.mxu0 0
  %2715 = vmatpush1.bf16.xpose.msra.mxu0 0
  %2716 = vmatprep.subr.bf16.mxu0 %v1080
  %2717 = vmatpush1.bf16.xpose.msra.mxu0 %v1078
  %2718 = vmatprep.subr.bf16.mxu0 0
  %2719 = vmatpush2.bf16.xpose.msra.mxu0 0
  %2720 = vmatprep.subr.bf16.mxu0 0
  %2721 = vmatpush2.bf16.xpose.msra.mxu0 0
  %2722 = vmatprep.subr.bf16.mxu0 0
  %2723 = vmatpush2.bf16.xpose.msra.mxu0 0
  %2724 = vmatprep.subr.bf16.mxu0 0
  %2725 = vmatpush2.bf16.xpose.msra.mxu0 0
  %2726 = vmatprep.subr.bf16.mxu0 0
  %2727 = vmatpush2.bf16.xpose.msra.mxu0 0
  %2728 = vmatprep.subr.bf16.mxu0 0
  %2729 = vmatpush2.bf16.xpose.msra.mxu0 0
  %2730 = vmatprep.subr.bf16.mxu0 0
  %2731 = vmatpush2.bf16.xpose.msra.mxu0 0
  %2732 = vmatprep.subr.bf16.mxu0 0
  %2733 = vmatpush2.bf16.xpose.msra.mxu0 0
  %2734 = vmatprep.mubr.bf16.mxu0 %v499
  %2735 = vmatmul.mubr.bf16.gmra.mxu0 %v498
  %v2736 = vpop.f32.mrf.mxu0
  %v2737 = vadd.f32 %v2696, %v2736
  %v2738 = vpop.f32.mrf.mxu0
  %v2739 = vpop.f32.mrf.mxu0
  %v2740 = vadd.f32 %v2699, %v2739
  %v2741 = vpop.f32.mrf.mxu0
  %2742 = vdwg.mxu0
  %2743 = vmatprep.subr.bf16.mxu0 0
  %2744 = vmatpush1.bf16.xpose.msra.mxu0 0
  %2745 = vmatprep.subr.bf16.mxu0 0
  %2746 = vmatpush1.bf16.xpose.msra.mxu0 0
  %2747 = vmatprep.subr.bf16.mxu0 0
  %2748 = vmatpush1.bf16.xpose.msra.mxu0 0
  %2749 = vmatprep.subr.bf16.mxu0 0
  %2750 = vmatpush1.bf16.xpose.msra.mxu0 0
  %2751 = vmatprep.subr.bf16.mxu0 0
  %2752 = vmatpush1.bf16.xpose.msra.mxu0 0
  %2753 = vmatprep.subr.bf16.mxu0 0
  %2754 = vmatpush1.bf16.xpose.msra.mxu0 0
  %2755 = vmatprep.subr.bf16.mxu0 0
  %2756 = vmatpush1.bf16.xpose.msra.mxu0 0
  %2757 = vmatprep.subr.bf16.mxu0 %v1077
  %2758 = vmatpush1.bf16.xpose.msra.mxu0 %v1063
  %2759 = vmatprep.subr.bf16.mxu0 0
  %2760 = vmatpush2.bf16.xpose.msra.mxu0 0
  %2761 = vmatprep.subr.bf16.mxu0 0
  %2762 = vmatpush2.bf16.xpose.msra.mxu0 0
  %2763 = vmatprep.subr.bf16.mxu0 0
  %2764 = vmatpush2.bf16.xpose.msra.mxu0 0
  %2765 = vmatprep.subr.bf16.mxu0 0
  %2766 = vmatpush2.bf16.xpose.msra.mxu0 0
  %2767 = vmatprep.subr.bf16.mxu0 0
  %2768 = vmatpush2.bf16.xpose.msra.mxu0 0
  %2769 = vmatprep.subr.bf16.mxu0 0
  %2770 = vmatpush2.bf16.xpose.msra.mxu0 0
  %2771 = vmatprep.subr.bf16.mxu0 0
  %2772 = vmatpush2.bf16.xpose.msra.mxu0 0
  %2773 = vmatprep.subr.bf16.mxu0 0
  %2774 = vmatpush2.bf16.xpose.msra.mxu0 0
  %2775 = vmatprep.mubr.bf16.mxu0 %v501
  %2776 = vmatmul.mubr.bf16.gmra.mxu0 %v500
  %v2777 = vpop.f32.mrf.mxu0
  %v2778 = vadd.f32 %v2737, %v2777
  %v2779 = vpop.f32.mrf.mxu0
  %v2780 = vpop.f32.mrf.mxu0
  %v2781 = vadd.f32 %v2740, %v2780
  %v2782 = vpop.f32.mrf.mxu0
  %2783 = vdwg.mxu0
  %2784 = vmatprep.subr.bf16.mxu0 0
  %2785 = vmatpush1.bf16.xpose.msra.mxu0 0
  %2786 = vmatprep.subr.bf16.mxu0 0
  %2787 = vmatpush1.bf16.xpose.msra.mxu0 0
  %2788 = vmatprep.subr.bf16.mxu0 0
  %2789 = vmatpush1.bf16.xpose.msra.mxu0 0
  %2790 = vmatprep.subr.bf16.mxu0 0
  %2791 = vmatpush1.bf16.xpose.msra.mxu0 0
  %2792 = vmatprep.subr.bf16.mxu0 0
  %2793 = vmatpush1.bf16.xpose.msra.mxu0 0
  %2794 = vmatprep.subr.bf16.mxu0 0
  %2795 = vmatpush1.bf16.xpose.msra.mxu0 0
  %2796 = vmatprep.subr.bf16.mxu0 0
  %2797 = vmatpush1.bf16.xpose.msra.mxu0 0
  %2798 = vmatprep.subr.bf16.mxu0 %v1081
  %2799 = vmatpush1.bf16.xpose.msra.mxu0 %v1079
  %2800 = vmatprep.subr.bf16.mxu0 0
  %2801 = vmatpush2.bf16.xpose.msra.mxu0 0
  %2802 = vmatprep.subr.bf16.mxu0 0
  %2803 = vmatpush2.bf16.xpose.msra.mxu0 0
  %2804 = vmatprep.subr.bf16.mxu0 0
  %2805 = vmatpush2.bf16.xpose.msra.mxu0 0
  %2806 = vmatprep.subr.bf16.mxu0 0
  %2807 = vmatpush2.bf16.xpose.msra.mxu0 0
  %2808 = vmatprep.subr.bf16.mxu0 0
  %2809 = vmatpush2.bf16.xpose.msra.mxu0 0
  %2810 = vmatprep.subr.bf16.mxu0 0
  %2811 = vmatpush2.bf16.xpose.msra.mxu0 0
  %2812 = vmatprep.subr.bf16.mxu0 0
  %2813 = vmatpush2.bf16.xpose.msra.mxu0 0
  %2814 = vmatprep.subr.bf16.mxu0 0
  %2815 = vmatpush2.bf16.xpose.msra.mxu0 0
  %2816 = vmatprep.mubr.bf16.mxu0 %v503
  %2817 = vmatmul.mubr.bf16.gmra.mxu0 %v502
  %v2818 = vpop.f32.mrf.mxu0
  %v2819 = vadd.f32 %v2778, %v2818
  %v2820 = vpop.f32.mrf.mxu0
  %v2821 = vpop.f32.mrf.mxu0
  %v2822 = vadd.f32 %v2781, %v2821
  %v2823 = vpop.f32.mrf.mxu0
  %2824 = vdwg.mxu0
  %2825 = vmatprep.subr.bf16.mxu0 0
  %2826 = vmatpush1.bf16.xpose.msra.mxu0 0
  %2827 = vmatprep.subr.bf16.mxu0 0
  %2828 = vmatpush1.bf16.xpose.msra.mxu0 0
  %2829 = vmatprep.subr.bf16.mxu0 0
  %2830 = vmatpush1.bf16.xpose.msra.mxu0 0
  %2831 = vmatprep.subr.bf16.mxu0 0
  %2832 = vmatpush1.bf16.xpose.msra.mxu0 0
  %2833 = vmatprep.subr.bf16.mxu0 0
  %2834 = vmatpush1.bf16.xpose.msra.mxu0 0
  %2835 = vmatprep.subr.bf16.mxu0 0
  %2836 = vmatpush1.bf16.xpose.msra.mxu0 0
  %2837 = vmatprep.subr.bf16.mxu0 0
  %2838 = vmatpush1.bf16.xpose.msra.mxu0 0
  %2839 = vmatprep.subr.bf16.mxu0 %v1119
  %2840 = vmatpush1.bf16.xpose.msra.mxu0 %v1105
  %2841 = vmatprep.subr.bf16.mxu0 0
  %2842 = vmatpush2.bf16.xpose.msra.mxu0 0
  %2843 = vmatprep.subr.bf16.mxu0 0
  %2844 = vmatpush2.bf16.xpose.msra.mxu0 0
  %2845 = vmatprep.subr.bf16.mxu0 0
  %2846 = vmatpush2.bf16.xpose.msra.mxu0 0
  %2847 = vmatprep.subr.bf16.mxu0 0
  %2848 = vmatpush2.bf16.xpose.msra.mxu0 0
  %2849 = vmatprep.subr.bf16.mxu0 0
  %2850 = vmatpush2.bf16.xpose.msra.mxu0 0
  %2851 = vmatprep.subr.bf16.mxu0 0
  %2852 = vmatpush2.bf16.xpose.msra.mxu0 0
  %2853 = vmatprep.subr.bf16.mxu0 0
  %2854 = vmatpush2.bf16.xpose.msra.mxu0 0
  %2855 = vmatprep.subr.bf16.mxu0 0
  %2856 = vmatpush2.bf16.xpose.msra.mxu0 0
  %2857 = vmatprep.mubr.bf16.mxu0 %v505
  %2858 = vmatmul.mubr.bf16.gmra.mxu0 %v504
  %v2859 = vpop.f32.mrf.mxu0
  %v2860 = vadd.f32 %v2819, %v2859
  %v2861 = vpop.f32.mrf.mxu0
  %v2862 = vpop.f32.mrf.mxu0
  %v2863 = vadd.f32 %v2822, %v2862
  %v2864 = vpop.f32.mrf.mxu0
  %2865 = vdwg.mxu0
  %2866 = vmatprep.subr.bf16.mxu0 0
  %2867 = vmatpush1.bf16.xpose.msra.mxu0 0
  %2868 = vmatprep.subr.bf16.mxu0 0
  %2869 = vmatpush1.bf16.xpose.msra.mxu0 0
  %2870 = vmatprep.subr.bf16.mxu0 0
  %2871 = vmatpush1.bf16.xpose.msra.mxu0 0
  %2872 = vmatprep.subr.bf16.mxu0 0
  %2873 = vmatpush1.bf16.xpose.msra.mxu0 0
  %2874 = vmatprep.subr.bf16.mxu0 0
  %2875 = vmatpush1.bf16.xpose.msra.mxu0 0
  %2876 = vmatprep.subr.bf16.mxu0 0
  %2877 = vmatpush1.bf16.xpose.msra.mxu0 0
  %2878 = vmatprep.subr.bf16.mxu0 0
  %2879 = vmatpush1.bf16.xpose.msra.mxu0 0
  %2880 = vmatprep.subr.bf16.mxu0 %v1129
  %2881 = vmatpush1.bf16.xpose.msra.mxu0 %v1127
  %2882 = vmatprep.subr.bf16.mxu0 0
  %2883 = vmatpush2.bf16.xpose.msra.mxu0 0
  %2884 = vmatprep.subr.bf16.mxu0 0
  %2885 = vmatpush2.bf16.xpose.msra.mxu0 0
  %2886 = vmatprep.subr.bf16.mxu0 0
  %2887 = vmatpush2.bf16.xpose.msra.mxu0 0
  %2888 = vmatprep.subr.bf16.mxu0 0
  %2889 = vmatpush2.bf16.xpose.msra.mxu0 0
  %2890 = vmatprep.subr.bf16.mxu0 0
  %2891 = vmatpush2.bf16.xpose.msra.mxu0 0
  %2892 = vmatprep.subr.bf16.mxu0 0
  %2893 = vmatpush2.bf16.xpose.msra.mxu0 0
  %2894 = vmatprep.subr.bf16.mxu0 0
  %2895 = vmatpush2.bf16.xpose.msra.mxu0 0
  %2896 = vmatprep.subr.bf16.mxu0 0
  %2897 = vmatpush2.bf16.xpose.msra.mxu0 0
  %2898 = vmatprep.mubr.bf16.mxu0 %v507
  %2899 = vmatmul.mubr.bf16.gmra.mxu0 %v506
  %v2900 = vpop.f32.mrf.mxu0
  %v2901 = vadd.f32 %v2860, %v2900
  %v2902 = vpop.f32.mrf.mxu0
  %v2903 = vpop.f32.mrf.mxu0
  %v2904 = vadd.f32 %v2863, %v2903
  %v2905 = vpop.f32.mrf.mxu0
  %2906 = vdwg.mxu0
  %2907 = vmatprep.subr.bf16.mxu0 0
  %2908 = vmatpush1.bf16.xpose.msra.mxu0 0
  %2909 = vmatprep.subr.bf16.mxu0 0
  %2910 = vmatpush1.bf16.xpose.msra.mxu0 0
  %2911 = vmatprep.subr.bf16.mxu0 0
  %2912 = vmatpush1.bf16.xpose.msra.mxu0 0
  %2913 = vmatprep.subr.bf16.mxu0 0
  %2914 = vmatpush1.bf16.xpose.msra.mxu0 0
  %2915 = vmatprep.subr.bf16.mxu0 0
  %2916 = vmatpush1.bf16.xpose.msra.mxu0 0
  %2917 = vmatprep.subr.bf16.mxu0 0
  %2918 = vmatpush1.bf16.xpose.msra.mxu0 0
  %2919 = vmatprep.subr.bf16.mxu0 0
  %2920 = vmatpush1.bf16.xpose.msra.mxu0 0
  %2921 = vmatprep.subr.bf16.mxu0 %v1126
  %2922 = vmatpush1.bf16.xpose.msra.mxu0 %v1112
  %2923 = vmatprep.subr.bf16.mxu0 0
  %2924 = vmatpush2.bf16.xpose.msra.mxu0 0
  %2925 = vmatprep.subr.bf16.mxu0 0
  %2926 = vmatpush2.bf16.xpose.msra.mxu0 0
  %2927 = vmatprep.subr.bf16.mxu0 0
  %2928 = vmatpush2.bf16.xpose.msra.mxu0 0
  %2929 = vmatprep.subr.bf16.mxu0 0
  %2930 = vmatpush2.bf16.xpose.msra.mxu0 0
  %2931 = vmatprep.subr.bf16.mxu0 0
  %2932 = vmatpush2.bf16.xpose.msra.mxu0 0
  %2933 = vmatprep.subr.bf16.mxu0 0
  %2934 = vmatpush2.bf16.xpose.msra.mxu0 0
  %2935 = vmatprep.subr.bf16.mxu0 0
  %2936 = vmatpush2.bf16.xpose.msra.mxu0 0
  %2937 = vmatprep.subr.bf16.mxu0 0
  %2938 = vmatpush2.bf16.xpose.msra.mxu0 0
  %2939 = vmatprep.mubr.bf16.mxu0 %v509
  %2940 = vmatmul.mubr.bf16.gmra.mxu0 %v508
  %v2941 = vpop.f32.mrf.mxu0
  %v2942 = vadd.f32 %v2901, %v2941
  %v2943 = vpop.f32.mrf.mxu0
  %v2944 = vpop.f32.mrf.mxu0
  %v2945 = vadd.f32 %v2904, %v2944
  %v2946 = vpop.f32.mrf.mxu0
  %2947 = vdwg.mxu0
  %2948 = vmatprep.subr.bf16.mxu0 0
  %2949 = vmatpush1.bf16.xpose.msra.mxu0 0
  %2950 = vmatprep.subr.bf16.mxu0 0
  %2951 = vmatpush1.bf16.xpose.msra.mxu0 0
  %2952 = vmatprep.subr.bf16.mxu0 0
  %2953 = vmatpush1.bf16.xpose.msra.mxu0 0
  %2954 = vmatprep.subr.bf16.mxu0 0
  %2955 = vmatpush1.bf16.xpose.msra.mxu0 0
  %2956 = vmatprep.subr.bf16.mxu0 0
  %2957 = vmatpush1.bf16.xpose.msra.mxu0 0
  %2958 = vmatprep.subr.bf16.mxu0 0
  %2959 = vmatpush1.bf16.xpose.msra.mxu0 0
  %2960 = vmatprep.subr.bf16.mxu0 0
  %2961 = vmatpush1.bf16.xpose.msra.mxu0 0
  %2962 = vmatprep.subr.bf16.mxu0 %v1130
  %2963 = vmatpush1.bf16.xpose.msra.mxu0 %v1128
  %2964 = vmatprep.subr.bf16.mxu0 0
  %2965 = vmatpush2.bf16.xpose.msra.mxu0 0
  %2966 = vmatprep.subr.bf16.mxu0 0
  %2967 = vmatpush2.bf16.xpose.msra.mxu0 0
  %2968 = vmatprep.subr.bf16.mxu0 0
  %2969 = vmatpush2.bf16.xpose.msra.mxu0 0
  %2970 = vmatprep.subr.bf16.mxu0 0
  %2971 = vmatpush2.bf16.xpose.msra.mxu0 0
  %2972 = vmatprep.subr.bf16.mxu0 0
  %2973 = vmatpush2.bf16.xpose.msra.mxu0 0
  %2974 = vmatprep.subr.bf16.mxu0 0
  %2975 = vmatpush2.bf16.xpose.msra.mxu0 0
  %2976 = vmatprep.subr.bf16.mxu0 0
  %2977 = vmatpush2.bf16.xpose.msra.mxu0 0
  %2978 = vmatprep.subr.bf16.mxu0 0
  %2979 = vmatpush2.bf16.xpose.msra.mxu0 0
  %2980 = vmatprep.mubr.bf16.mxu0 %v511
  %2981 = vmatmul.mubr.bf16.gmra.mxu0 %v510
  %v2982 = vpop.f32.mrf.mxu0
  %v2983 = vadd.f32 %v2942, %v2982
  %v2984 = vpop.f32.mrf.mxu0
  %v2985 = vpop.f32.mrf.mxu0
  %v2986 = vadd.f32 %v2945, %v2985
  %v2987 = vpop.f32.mrf.mxu0
  %2988 = vdwg.mxu0
  %2989 = vmatprep.subr.bf16.mxu0 0
  %2990 = vmatpush1.bf16.xpose.msra.mxu0 0
  %2991 = vmatprep.subr.bf16.mxu0 0
  %2992 = vmatpush1.bf16.xpose.msra.mxu0 0
  %2993 = vmatprep.subr.bf16.mxu0 0
  %2994 = vmatpush1.bf16.xpose.msra.mxu0 0
  %2995 = vmatprep.subr.bf16.mxu0 0
  %2996 = vmatpush1.bf16.xpose.msra.mxu0 0
  %2997 = vmatprep.subr.bf16.mxu0 0
  %2998 = vmatpush1.bf16.xpose.msra.mxu0 0
  %2999 = vmatprep.subr.bf16.mxu0 0
  %3000 = vmatpush1.bf16.xpose.msra.mxu0 0
  %3001 = vmatprep.subr.bf16.mxu0 0
  %3002 = vmatpush1.bf16.xpose.msra.mxu0 0
  %3003 = vmatprep.subr.bf16.mxu0 %v1168
  %3004 = vmatpush1.bf16.xpose.msra.mxu0 %v1154
  %3005 = vmatprep.subr.bf16.mxu0 0
  %3006 = vmatpush2.bf16.xpose.msra.mxu0 0
  %3007 = vmatprep.subr.bf16.mxu0 0
  %3008 = vmatpush2.bf16.xpose.msra.mxu0 0
  %3009 = vmatprep.subr.bf16.mxu0 0
  %3010 = vmatpush2.bf16.xpose.msra.mxu0 0
  %3011 = vmatprep.subr.bf16.mxu0 0
  %3012 = vmatpush2.bf16.xpose.msra.mxu0 0
  %3013 = vmatprep.subr.bf16.mxu0 0
  %3014 = vmatpush2.bf16.xpose.msra.mxu0 0
  %3015 = vmatprep.subr.bf16.mxu0 0
  %3016 = vmatpush2.bf16.xpose.msra.mxu0 0
  %3017 = vmatprep.subr.bf16.mxu0 0
  %3018 = vmatpush2.bf16.xpose.msra.mxu0 0
  %3019 = vmatprep.subr.bf16.mxu0 0
  %3020 = vmatpush2.bf16.xpose.msra.mxu0 0
  %3021 = vmatprep.mubr.bf16.mxu0 %v513
  %3022 = vmatmul.mubr.bf16.gmra.mxu0 %v512
  %v3023 = vpop.f32.mrf.mxu0
  %v3024 = vadd.f32 %v2983, %v3023
  %v3025 = vpop.f32.mrf.mxu0
  %v3026 = vpop.f32.mrf.mxu0
  %v3027 = vadd.f32 %v2986, %v3026
  %v3028 = vpop.f32.mrf.mxu0
  %3029 = vdwg.mxu0
  %3030 = vmatprep.subr.bf16.mxu0 0
  %3031 = vmatpush1.bf16.xpose.msra.mxu0 0
  %3032 = vmatprep.subr.bf16.mxu0 0
  %3033 = vmatpush1.bf16.xpose.msra.mxu0 0
  %3034 = vmatprep.subr.bf16.mxu0 0
  %3035 = vmatpush1.bf16.xpose.msra.mxu0 0
  %3036 = vmatprep.subr.bf16.mxu0 0
  %3037 = vmatpush1.bf16.xpose.msra.mxu0 0
  %3038 = vmatprep.subr.bf16.mxu0 0
  %3039 = vmatpush1.bf16.xpose.msra.mxu0 0
  %3040 = vmatprep.subr.bf16.mxu0 0
  %3041 = vmatpush1.bf16.xpose.msra.mxu0 0
  %3042 = vmatprep.subr.bf16.mxu0 0
  %3043 = vmatpush1.bf16.xpose.msra.mxu0 0
  %3044 = vmatprep.subr.bf16.mxu0 %v1178
  %3045 = vmatpush1.bf16.xpose.msra.mxu0 %v1176
  %3046 = vmatprep.subr.bf16.mxu0 0
  %3047 = vmatpush2.bf16.xpose.msra.mxu0 0
  %3048 = vmatprep.subr.bf16.mxu0 0
  %3049 = vmatpush2.bf16.xpose.msra.mxu0 0
  %3050 = vmatprep.subr.bf16.mxu0 0
  %3051 = vmatpush2.bf16.xpose.msra.mxu0 0
  %3052 = vmatprep.subr.bf16.mxu0 0
  %3053 = vmatpush2.bf16.xpose.msra.mxu0 0
  %3054 = vmatprep.subr.bf16.mxu0 0
  %3055 = vmatpush2.bf16.xpose.msra.mxu0 0
  %3056 = vmatprep.subr.bf16.mxu0 0
  %3057 = vmatpush2.bf16.xpose.msra.mxu0 0
  %3058 = vmatprep.subr.bf16.mxu0 0
  %3059 = vmatpush2.bf16.xpose.msra.mxu0 0
  %3060 = vmatprep.subr.bf16.mxu0 0
  %3061 = vmatpush2.bf16.xpose.msra.mxu0 0
  %3062 = vmatprep.mubr.bf16.mxu0 %v515
  %3063 = vmatmul.mubr.bf16.gmra.mxu0 %v514
  %v3064 = vpop.f32.mrf.mxu0
  %v3065 = vadd.f32 %v3024, %v3064
  %v3066 = vpop.f32.mrf.mxu0
  %v3067 = vpop.f32.mrf.mxu0
  %v3068 = vadd.f32 %v3027, %v3067
  %v3069 = vpop.f32.mrf.mxu0
  %3070 = vdwg.mxu0
  %3071 = vmatprep.subr.bf16.mxu0 0
  %3072 = vmatpush1.bf16.xpose.msra.mxu0 0
  %3073 = vmatprep.subr.bf16.mxu0 0
  %3074 = vmatpush1.bf16.xpose.msra.mxu0 0
  %3075 = vmatprep.subr.bf16.mxu0 0
  %3076 = vmatpush1.bf16.xpose.msra.mxu0 0
  %3077 = vmatprep.subr.bf16.mxu0 0
  %3078 = vmatpush1.bf16.xpose.msra.mxu0 0
  %3079 = vmatprep.subr.bf16.mxu0 0
  %3080 = vmatpush1.bf16.xpose.msra.mxu0 0
  %3081 = vmatprep.subr.bf16.mxu0 0
  %3082 = vmatpush1.bf16.xpose.msra.mxu0 0
  %3083 = vmatprep.subr.bf16.mxu0 0
  %3084 = vmatpush1.bf16.xpose.msra.mxu0 0
  %3085 = vmatprep.subr.bf16.mxu0 %v1175
  %3086 = vmatpush1.bf16.xpose.msra.mxu0 %v1161
  %3087 = vmatprep.subr.bf16.mxu0 0
  %3088 = vmatpush2.bf16.xpose.msra.mxu0 0
  %3089 = vmatprep.subr.bf16.mxu0 0
  %3090 = vmatpush2.bf16.xpose.msra.mxu0 0
  %3091 = vmatprep.subr.bf16.mxu0 0
  %3092 = vmatpush2.bf16.xpose.msra.mxu0 0
  %3093 = vmatprep.subr.bf16.mxu0 0
  %3094 = vmatpush2.bf16.xpose.msra.mxu0 0
  %3095 = vmatprep.subr.bf16.mxu0 0
  %3096 = vmatpush2.bf16.xpose.msra.mxu0 0
  %3097 = vmatprep.subr.bf16.mxu0 0
  %3098 = vmatpush2.bf16.xpose.msra.mxu0 0
  %3099 = vmatprep.subr.bf16.mxu0 0
  %3100 = vmatpush2.bf16.xpose.msra.mxu0 0
  %3101 = vmatprep.subr.bf16.mxu0 0
  %3102 = vmatpush2.bf16.xpose.msra.mxu0 0
  %3103 = vmatprep.mubr.bf16.mxu0 %v517
  %3104 = vmatmul.mubr.bf16.gmra.mxu0 %v516
  %v3105 = vpop.f32.mrf.mxu0
  %v3106 = vadd.f32 %v3065, %v3105
  %v3107 = vpop.f32.mrf.mxu0
  %v3108 = vpop.f32.mrf.mxu0
  %v3109 = vadd.f32 %v3068, %v3108
  %v3110 = vpop.f32.mrf.mxu0
  %3111 = vdwg.mxu0
  %3112 = vmatprep.subr.bf16.mxu0 0
  %3113 = vmatpush1.bf16.xpose.msra.mxu0 0
  %3114 = vmatprep.subr.bf16.mxu0 0
  %3115 = vmatpush1.bf16.xpose.msra.mxu0 0
  %3116 = vmatprep.subr.bf16.mxu0 0
  %3117 = vmatpush1.bf16.xpose.msra.mxu0 0
  %3118 = vmatprep.subr.bf16.mxu0 0
  %3119 = vmatpush1.bf16.xpose.msra.mxu0 0
  %3120 = vmatprep.subr.bf16.mxu0 0
  %3121 = vmatpush1.bf16.xpose.msra.mxu0 0
  %3122 = vmatprep.subr.bf16.mxu0 0
  %3123 = vmatpush1.bf16.xpose.msra.mxu0 0
  %3124 = vmatprep.subr.bf16.mxu0 0
  %3125 = vmatpush1.bf16.xpose.msra.mxu0 0
  %3126 = vmatprep.subr.bf16.mxu0 %v1179
  %3127 = vmatpush1.bf16.xpose.msra.mxu0 %v1177
  %3128 = vmatprep.subr.bf16.mxu0 0
  %3129 = vmatpush2.bf16.xpose.msra.mxu0 0
  %3130 = vmatprep.subr.bf16.mxu0 0
  %3131 = vmatpush2.bf16.xpose.msra.mxu0 0
  %3132 = vmatprep.subr.bf16.mxu0 0
  %3133 = vmatpush2.bf16.xpose.msra.mxu0 0
  %3134 = vmatprep.subr.bf16.mxu0 0
  %3135 = vmatpush2.bf16.xpose.msra.mxu0 0
  %3136 = vmatprep.subr.bf16.mxu0 0
  %3137 = vmatpush2.bf16.xpose.msra.mxu0 0
  %3138 = vmatprep.subr.bf16.mxu0 0
  %3139 = vmatpush2.bf16.xpose.msra.mxu0 0
  %3140 = vmatprep.subr.bf16.mxu0 0
  %3141 = vmatpush2.bf16.xpose.msra.mxu0 0
  %3142 = vmatprep.subr.bf16.mxu0 0
  %3143 = vmatpush2.bf16.xpose.msra.mxu0 0
  %3144 = vmatprep.mubr.bf16.mxu0 %v519
  %3145 = vmatmul.mubr.bf16.gmra.mxu0 %v518
  %v3146 = vpop.f32.mrf.mxu0
  %v3147 = vadd.f32 %v3106, %v3146
  %v3148 = vpop.f32.mrf.mxu0
  %v3149 = vpop.f32.mrf.mxu0
  %v3150 = vadd.f32 %v3109, %v3149
  %v3151 = vpop.f32.mrf.mxu0
  %3152 = vdwg.mxu0
  %3153 = vmatprep.subr.bf16.mxu0 0
  %3154 = vmatpush1.bf16.xpose.msra.mxu0 0
  %3155 = vmatprep.subr.bf16.mxu0 0
  %3156 = vmatpush1.bf16.xpose.msra.mxu0 0
  %3157 = vmatprep.subr.bf16.mxu0 0
  %3158 = vmatpush1.bf16.xpose.msra.mxu0 0
  %3159 = vmatprep.subr.bf16.mxu0 0
  %3160 = vmatpush1.bf16.xpose.msra.mxu0 0
  %3161 = vmatprep.subr.bf16.mxu0 0
  %3162 = vmatpush1.bf16.xpose.msra.mxu0 0
  %3163 = vmatprep.subr.bf16.mxu0 0
  %3164 = vmatpush1.bf16.xpose.msra.mxu0 0
  %3165 = vmatprep.subr.bf16.mxu0 0
  %3166 = vmatpush1.bf16.xpose.msra.mxu0 0
  %3167 = vmatprep.subr.bf16.mxu0 %v1217
  %3168 = vmatpush1.bf16.xpose.msra.mxu0 %v1203
  %3169 = vmatprep.subr.bf16.mxu0 0
  %3170 = vmatpush2.bf16.xpose.msra.mxu0 0
  %3171 = vmatprep.subr.bf16.mxu0 0
  %3172 = vmatpush2.bf16.xpose.msra.mxu0 0
  %3173 = vmatprep.subr.bf16.mxu0 0
  %3174 = vmatpush2.bf16.xpose.msra.mxu0 0
  %3175 = vmatprep.subr.bf16.mxu0 0
  %3176 = vmatpush2.bf16.xpose.msra.mxu0 0
  %3177 = vmatprep.subr.bf16.mxu0 0
  %3178 = vmatpush2.bf16.xpose.msra.mxu0 0
  %3179 = vmatprep.subr.bf16.mxu0 0
  %3180 = vmatpush2.bf16.xpose.msra.mxu0 0
  %3181 = vmatprep.subr.bf16.mxu0 0
  %3182 = vmatpush2.bf16.xpose.msra.mxu0 0
  %3183 = vmatprep.subr.bf16.mxu0 0
  %3184 = vmatpush2.bf16.xpose.msra.mxu0 0
  %3185 = vmatprep.mubr.bf16.mxu0 %v521
  %3186 = vmatmul.mubr.bf16.gmra.mxu0 %v520
  %v3187 = vpop.f32.mrf.mxu0
  %v3188 = vadd.f32 %v3147, %v3187
  %v3189 = vpop.f32.mrf.mxu0
  %v3190 = vpop.f32.mrf.mxu0
  %v3191 = vadd.f32 %v3150, %v3190
  %v3192 = vpop.f32.mrf.mxu0
  %3193 = vdwg.mxu0
  %3194 = vmatprep.subr.bf16.mxu0 0
  %3195 = vmatpush1.bf16.xpose.msra.mxu0 0
  %3196 = vmatprep.subr.bf16.mxu0 0
  %3197 = vmatpush1.bf16.xpose.msra.mxu0 0
  %3198 = vmatprep.subr.bf16.mxu0 0
  %3199 = vmatpush1.bf16.xpose.msra.mxu0 0
  %3200 = vmatprep.subr.bf16.mxu0 0
  %3201 = vmatpush1.bf16.xpose.msra.mxu0 0
  %3202 = vmatprep.subr.bf16.mxu0 0
  %3203 = vmatpush1.bf16.xpose.msra.mxu0 0
  %3204 = vmatprep.subr.bf16.mxu0 0
  %3205 = vmatpush1.bf16.xpose.msra.mxu0 0
  %3206 = vmatprep.subr.bf16.mxu0 0
  %3207 = vmatpush1.bf16.xpose.msra.mxu0 0
  %3208 = vmatprep.subr.bf16.mxu0 %v1227
  %3209 = vmatpush1.bf16.xpose.msra.mxu0 %v1225
  %3210 = vmatprep.subr.bf16.mxu0 0
  %3211 = vmatpush2.bf16.xpose.msra.mxu0 0
  %3212 = vmatprep.subr.bf16.mxu0 0
  %3213 = vmatpush2.bf16.xpose.msra.mxu0 0
  %3214 = vmatprep.subr.bf16.mxu0 0
  %3215 = vmatpush2.bf16.xpose.msra.mxu0 0
  %3216 = vmatprep.subr.bf16.mxu0 0
  %3217 = vmatpush2.bf16.xpose.msra.mxu0 0
  %3218 = vmatprep.subr.bf16.mxu0 0
  %3219 = vmatpush2.bf16.xpose.msra.mxu0 0
  %3220 = vmatprep.subr.bf16.mxu0 0
  %3221 = vmatpush2.bf16.xpose.msra.mxu0 0
  %3222 = vmatprep.subr.bf16.mxu0 0
  %3223 = vmatpush2.bf16.xpose.msra.mxu0 0
  %3224 = vmatprep.subr.bf16.mxu0 0
  %3225 = vmatpush2.bf16.xpose.msra.mxu0 0
  %3226 = vmatprep.mubr.bf16.mxu0 %v523
  %3227 = vmatmul.mubr.bf16.gmra.mxu0 %v522
  %v3228 = vpop.f32.mrf.mxu0
  %v3229 = vadd.f32 %v3188, %v3228
  %v3230 = vpop.f32.mrf.mxu0
  %v3231 = vpop.f32.mrf.mxu0
  %v3232 = vadd.f32 %v3191, %v3231
  %v3233 = vpop.f32.mrf.mxu0
  %3234 = vdwg.mxu0
  %3235 = vmatprep.subr.bf16.mxu0 0
  %3236 = vmatpush1.bf16.xpose.msra.mxu0 0
  %3237 = vmatprep.subr.bf16.mxu0 0
  %3238 = vmatpush1.bf16.xpose.msra.mxu0 0
  %3239 = vmatprep.subr.bf16.mxu0 0
  %3240 = vmatpush1.bf16.xpose.msra.mxu0 0
  %3241 = vmatprep.subr.bf16.mxu0 0
  %3242 = vmatpush1.bf16.xpose.msra.mxu0 0
  %3243 = vmatprep.subr.bf16.mxu0 0
  %3244 = vmatpush1.bf16.xpose.msra.mxu0 0
  %3245 = vmatprep.subr.bf16.mxu0 0
  %3246 = vmatpush1.bf16.xpose.msra.mxu0 0
  %3247 = vmatprep.subr.bf16.mxu0 0
  %3248 = vmatpush1.bf16.xpose.msra.mxu0 0
  %3249 = vmatprep.subr.bf16.mxu0 %v1224
  %3250 = vmatpush1.bf16.xpose.msra.mxu0 %v1210
  %3251 = vmatprep.subr.bf16.mxu0 0
  %3252 = vmatpush2.bf16.xpose.msra.mxu0 0
  %3253 = vmatprep.subr.bf16.mxu0 0
  %3254 = vmatpush2.bf16.xpose.msra.mxu0 0
  %3255 = vmatprep.subr.bf16.mxu0 0
  %3256 = vmatpush2.bf16.xpose.msra.mxu0 0
  %3257 = vmatprep.subr.bf16.mxu0 0
  %3258 = vmatpush2.bf16.xpose.msra.mxu0 0
  %3259 = vmatprep.subr.bf16.mxu0 0
  %3260 = vmatpush2.bf16.xpose.msra.mxu0 0
  %3261 = vmatprep.subr.bf16.mxu0 0
  %3262 = vmatpush2.bf16.xpose.msra.mxu0 0
  %3263 = vmatprep.subr.bf16.mxu0 0
  %3264 = vmatpush2.bf16.xpose.msra.mxu0 0
  %3265 = vmatprep.subr.bf16.mxu0 0
  %3266 = vmatpush2.bf16.xpose.msra.mxu0 0
  %3267 = vmatprep.mubr.bf16.mxu0 %v525
  %3268 = vmatmul.mubr.bf16.gmra.mxu0 %v524
  %v3269 = vpop.f32.mrf.mxu0
  %v3270 = vadd.f32 %v3229, %v3269
  %v3271 = vpop.f32.mrf.mxu0
  %v3272 = vpop.f32.mrf.mxu0
  %v3273 = vadd.f32 %v3232, %v3272
  %v3274 = vpop.f32.mrf.mxu0
  %3275 = vdwg.mxu0
  %3276 = vmatprep.subr.bf16.mxu0 0
  %3277 = vmatpush1.bf16.xpose.msra.mxu0 0
  %3278 = vmatprep.subr.bf16.mxu0 0
  %3279 = vmatpush1.bf16.xpose.msra.mxu0 0
  %3280 = vmatprep.subr.bf16.mxu0 0
  %3281 = vmatpush1.bf16.xpose.msra.mxu0 0
  %3282 = vmatprep.subr.bf16.mxu0 0
  %3283 = vmatpush1.bf16.xpose.msra.mxu0 0
  %3284 = vmatprep.subr.bf16.mxu0 0
  %3285 = vmatpush1.bf16.xpose.msra.mxu0 0
  %3286 = vmatprep.subr.bf16.mxu0 0
  %3287 = vmatpush1.bf16.xpose.msra.mxu0 0
  %3288 = vmatprep.subr.bf16.mxu0 0
  %3289 = vmatpush1.bf16.xpose.msra.mxu0 0
  %3290 = vmatprep.subr.bf16.mxu0 %v1228
  %3291 = vmatpush1.bf16.xpose.msra.mxu0 %v1226
  %3292 = vmatprep.subr.bf16.mxu0 0
  %3293 = vmatpush2.bf16.xpose.msra.mxu0 0
  %3294 = vmatprep.subr.bf16.mxu0 0
  %3295 = vmatpush2.bf16.xpose.msra.mxu0 0
  %3296 = vmatprep.subr.bf16.mxu0 0
  %3297 = vmatpush2.bf16.xpose.msra.mxu0 0
  %3298 = vmatprep.subr.bf16.mxu0 0
  %3299 = vmatpush2.bf16.xpose.msra.mxu0 0
  %3300 = vmatprep.subr.bf16.mxu0 0
  %3301 = vmatpush2.bf16.xpose.msra.mxu0 0
  %3302 = vmatprep.subr.bf16.mxu0 0
  %3303 = vmatpush2.bf16.xpose.msra.mxu0 0
  %3304 = vmatprep.subr.bf16.mxu0 0
  %3305 = vmatpush2.bf16.xpose.msra.mxu0 0
  %3306 = vmatprep.subr.bf16.mxu0 0
  %3307 = vmatpush2.bf16.xpose.msra.mxu0 0
  %3308 = vmatprep.mubr.bf16.mxu0 %v527
  %3309 = vmatmul.mubr.bf16.gmra.mxu0 %v526
  %v3310 = vpop.f32.mrf.mxu0
  %v3311 = vadd.f32 %v3270, %v3310
  %v3312 = vpop.f32.mrf.mxu0
  %v3313 = vpop.f32.mrf.mxu0
  %v3314 = vadd.f32 %v3273, %v3313
  %v3315 = vpop.f32.mrf.mxu0
  %3316 = vdwg.mxu0
  %3317 = vmatprep.subr.bf16.mxu0 0
  %3318 = vmatpush1.bf16.xpose.msra.mxu0 0
  %3319 = vmatprep.subr.bf16.mxu0 0
  %3320 = vmatpush1.bf16.xpose.msra.mxu0 0
  %3321 = vmatprep.subr.bf16.mxu0 0
  %3322 = vmatpush1.bf16.xpose.msra.mxu0 0
  %3323 = vmatprep.subr.bf16.mxu0 0
  %3324 = vmatpush1.bf16.xpose.msra.mxu0 0
  %3325 = vmatprep.subr.bf16.mxu0 0
  %3326 = vmatpush1.bf16.xpose.msra.mxu0 0
  %3327 = vmatprep.subr.bf16.mxu0 0
  %3328 = vmatpush1.bf16.xpose.msra.mxu0 0
  %3329 = vmatprep.subr.bf16.mxu0 0
  %3330 = vmatpush1.bf16.xpose.msra.mxu0 0
  %3331 = vmatprep.subr.bf16.mxu0 %v1250
  %3332 = vmatpush1.bf16.xpose.msra.mxu0 %v1243
  %3333 = vmatprep.subr.bf16.mxu0 0
  %3334 = vmatpush2.bf16.xpose.msra.mxu0 0
  %3335 = vmatprep.subr.bf16.mxu0 0
  %3336 = vmatpush2.bf16.xpose.msra.mxu0 0
  %3337 = vmatprep.subr.bf16.mxu0 0
  %3338 = vmatpush2.bf16.xpose.msra.mxu0 0
  %3339 = vmatprep.subr.bf16.mxu0 0
  %3340 = vmatpush2.bf16.xpose.msra.mxu0 0
  %3341 = vmatprep.subr.bf16.mxu0 0
  %3342 = vmatpush2.bf16.xpose.msra.mxu0 0
  %3343 = vmatprep.subr.bf16.mxu0 0
  %3344 = vmatpush2.bf16.xpose.msra.mxu0 0
  %3345 = vmatprep.subr.bf16.mxu0 0
  %3346 = vmatpush2.bf16.xpose.msra.mxu0 0
  %3347 = vmatprep.subr.bf16.mxu0 0
  %3348 = vmatpush2.bf16.xpose.msra.mxu0 0
  %3349 = vmatprep.mubr.bf16.mxu0 %v529
  %3350 = vmatmul.mubr.bf16.gmra.mxu0 %v528
  %v3351 = vpop.f32.mrf.mxu0
  %v3352 = vadd.f32 %v3311, %v3351
  %v3353 = vpop.f32.mrf.mxu0
  %v3354 = vpop.f32.mrf.mxu0
  %v3355 = vadd.f32 %v3314, %v3354
  %v3356 = vpop.f32.mrf.mxu0
  %3357 = vdwg.mxu0
  %vm3358 = vcmask 15360
  %3359 = vst.msk [vmem:[%s3] sm:$0xff] %vm3358, %v3352
  %vm3360 = vcmask 9216
  %3361 = vst.msk [vmem:[%s3 + $0x8] sm:$0x3] %vm3360, %v3355
  // Predicated region
  $region14: #{forward.3} parent=0 // pred_check
    _
  $region15: #{forward.3} parent=0 // pred_check_branch
    %3363 = sbr.rel (0) target = $region17
  $region16: #{forward.3} parent=0 // pred_region
    _
  $region17: #{forward.3} parent=0 // pred_fallthru
    _
  // Predicated region
  $region18: #{forward.3} parent=0 // pred_check
    _
  $region19: #{forward.3} parent=0 // pred_check_branch
    %3365 = sbr.rel (0) target = $region21
  $region20: #{forward.3} parent=0 // pred_region
    _
  $region21: #{forward.3} parent=0 // pred_fallthru
    _

</llo_original>
